<compile_context>
chip_gen: v6e
topology: v6e:2x2x1
jax: 0.10.0
libtpu: 0.0.40
codegen_flags: <defaults>
</compile_context>

<pallas_src>
import functools

import jax
import jax.numpy as jnp
from jax.experimental import pallas as pl
from jax.experimental.pallas import tpu as pltpu

MAX_TILE_N = 2048   # upper bound on collocation points (batch columns) per grid step


def _round_up(v, m):
    return ((v + m - 1) // m) * m


def _pick_tile_n(n, max_tile=MAX_TILE_N):
    """Large batch tiles (few grid steps / amortized DMA) but keep >= 2 tiles
    whenever possible so ("parallel",) can use both TensorCores on v7x."""
    half = -(-n // 2)                      # ceil(n / 2)
    tile = _round_up(max(half, 1), 128)    # lane dim must be a multiple of 128
    return max(128, min(tile, max_tile))


def _pinn_kernel(nb_layer,
                 x_ref, win0_ref, win1_ref, bin_ref,
                 whid_ref, bhid_ref, wout_ref, bout_ref,
                 o_ref):
    # x_ref:    (2, TILE_N)   transposed input tile (the 2 coords on sublanes)
    # win0_ref: (H, 1), win1_ref: (H, 1), bin_ref: (H, 1)
    # whid_ref: (L, H, H)     torch layout (out_features, in_features)
    # bhid_ref: (L, H, 1)
    # wout_ref: (H, 1), bout_ref: (1, 1)
    # o_ref:    (1, TILE_N)   lane-dense output row
    x = x_ref[...]
    xr = x[0:1, :]                      # (1, TILE_N)
    xt = x[1:2, :]                      # (1, TILE_N)

    # Input layer: K=2 contraction as VPU broadcast-FMAs (kept off the MXU).
    h = jnp.tanh(win0_ref[...] * xr + win1_ref[...] * xt + bin_ref[...])  # (H, TILE_N)

    # Hidden layers: (H,H) @ (H,TILE_N) on the MXU, f32 with HIGHEST precision.
    # nb_layer is a static Python int -> unrolled at trace time.
    for l in range(nb_layer):
        h = jnp.tanh(
            jnp.dot(whid_ref[l], h,
                    preferred_element_type=jnp.float32,
                    precision=jax.lax.Precision.HIGHEST)
            + bhid_ref[l]
        )

    # Output layer: H -> 1 as VPU multiply + sublane (XLU) reduction; result is
    # a lane-dense (1, TILE_N) row -> unmasked stores.
    logits = jnp.sum(wout_ref[...] * h, axis=0, keepdims=True) + bout_ref[...]
    o_ref[...] = jax.nn.sigmoid(logits)


def pinn_forward(x, params, nb_layer):
    """Run the PINN MLP forward pass in one Pallas call with a batch grid."""
    n = x.shape[0]
    h_dim = params["w_in"].shape[0]         # hidden width (multiple of 8)
    tile_n = _pick_tile_n(n)
    n_pad = _round_up(n, tile_n)
    num_tiles = n_pad // tile_n

    # Transposed + padded input: (2, n_pad), batch on the lane dimension.
    x_t = jnp.zeros((2, n_pad), jnp.float32).at[:, :n].set(x.T)

    # Pre-split the (H, 2) input weight into its two (H, 1) columns so the
    # kernel does pure column-broadcast FMAs.
    w_in0 = params["w_in"][:, 0:1]
    w_in1 = params["w_in"][:, 1:2]

    const2 = lambda i: (0, 0)
    const3 = lambda i: (0, 0, 0)

    out = pl.pallas_call(
        functools.partial(_pinn_kernel, nb_layer),
        out_shape=jax.ShapeDtypeStruct((1, n_pad), jnp.float32),
        grid_spec=pltpu.PrefetchScalarGridSpec(
            num_scalar_prefetch=0,
            grid=(num_tiles,),
            in_specs=[
                pl.BlockSpec((2, tile_n), lambda i: (0, i)),          # x (tiled on batch)
                pl.BlockSpec((h_dim, 1), const2),                     # w_in col 0 (resident)
                pl.BlockSpec((h_dim, 1), const2),                     # w_in col 1 (resident)
                pl.BlockSpec((h_dim, 1), const2),                     # b_in       (resident)
                pl.BlockSpec((nb_layer, h_dim, h_dim), const3),       # w_hid      (resident)
                pl.BlockSpec((nb_layer, h_dim, 1), const3),           # b_hid      (resident)
                pl.BlockSpec((h_dim, 1), const2),                     # w_out      (resident)
                pl.BlockSpec((1, 1), const2),                         # b_out      (resident)
            ],
            out_specs=pl.BlockSpec((1, tile_n), lambda i: (0, i)),    # lane-dense output row
        ),
        compiler_params=pltpu.CompilerParams(
            dimension_semantics=("parallel",),
        ),
    )(x_t, w_in0, w_in1, params["b_in"],
      params["w_hid"], params["b_hid"], params["w_out"], params["b_out"])

    return out[0, :n].reshape(n, 1)


def init_params(key, nb_layer, hidden_layer, rayon_ini):
    """torch.nn.Linear-style init (uniform(-1/sqrt(fan_in), +1/sqrt(fan_in)))
    on the true hidden width, rounded up to the 8-sublane granule only
    (numerically exact: padded units stay 0 through tanh and contribute
    nothing downstream)."""
    h_pad = _round_up(hidden_layer, 8)
    ks = jax.random.split(key, 2 * nb_layer + 4)

    def linear(kw, kb, fan_in, fan_out):
        bound = 1.0 / jnp.sqrt(float(fan_in))
        w = jax.random.uniform(kw, (fan_out, fan_in), jnp.float32, -bound, bound)
        b = jax.random.uniform(kb, (fan_out, 1), jnp.float32, -bound, bound)
        return w, b

    H = hidden_layer
    w_in, b_in = linear(ks[0], ks[1], 2, H)                    # (H,2), (H,1)
    w_in = jnp.zeros((h_pad, 2), jnp.float32).at[:H, :].set(w_in)
    b_in = jnp.zeros((h_pad, 1), jnp.float32).at[:H, :].set(b_in)

    w_hid, b_hid = [], []
    for l in range(nb_layer):
        w, b = linear(ks[2 + 2 * l], ks[3 + 2 * l], H, H)
        w_hid.append(jnp.zeros((h_pad, h_pad), jnp.float32).at[:H, :H].set(w))
        b_hid.append(jnp.zeros((h_pad, 1), jnp.float32).at[:H, :].set(b))
    w_hid = jnp.stack(w_hid, axis=0)                           # (L, h_pad, h_pad)
    b_hid = jnp.stack(b_hid, axis=0)                           # (L, h_pad, 1)

    w_out, b_out = linear(ks[-2], ks[-1], H, 1)                # (1,H), (1,1)
    w_out_col = jnp.zeros((h_pad, 1), jnp.float32).at[:H, :].set(w_out.T)

    return {
        "w_in": w_in, "b_in": b_in,
        "w_hid": w_hid, "b_hid": b_hid,
        "w_out": w_out_col, "b_out": b_out,
        # Radius parameter: exists in the module but unused by forward().
        "R": jnp.float32(rayon_ini),
    }


def reference_forward(x, params, nb_layer, hidden_layer):
    """Pure-JAX reference with PyTorch semantics on the UNPADDED weights
    (also validates that any sublane padding is numerically exact)."""
    H = hidden_layer
    hp = jax.lax.Precision.HIGHEST
    h = jnp.tanh(jnp.dot(x, params["w_in"][:H, :].T, precision=hp)
                 + params["b_in"][:H, 0][None, :])
    for l in range(nb_layer):
        h = jnp.tanh(jnp.dot(h, params["w_hid"][l, :H, :H].T, precision=hp)
                     + params["b_hid"][l, :H, 0][None, :])
    return jax.nn.sigmoid(jnp.dot(h, params["w_out"][:H, :], precision=hp)
                          + params["b_out"])


if __name__ == "__main__":
    nb_layer = 3
    hidden_layer = 32
    rayon_ini = 1.0
    coeff_normal = 1.0   # module attribute, unused by forward()
    batch = 1024         # collocation points; -> TILE_N=512, grid=(2,)

    key = jax.random.PRNGKey(0)
    k_params, k_x = jax.random.split(key)
    params = init_params(k_params, nb_layer, hidden_layer, rayon_ini)

    # Input: (batch, 2) -> e.g. (r, t) coordinates.
    x = jax.random.normal(k_x, (batch, 2), dtype=jnp.float32)

    out = pinn_forward(x, params, nb_layer)
    out = jax.block_until_ready(out)

    ref = reference_forward(x, params, nb_layer, hidden_layer)
    assert out.shape == (batch, 1)
    max_err = jnp.max(jnp.abs(out - ref))
    assert jnp.allclose(out, ref, atol=1e-5, rtol=1e-5), (
        f"mismatch: max abs err {max_err}"
    )

    print("KERNEL_OK")
</pallas_src>

<mosaic_0001>
module attributes {stable_mosaic.version = 11 : i64} {
  func.func @_pinn_kernel(%arg0: i32, %arg1: memref<2x512xf32, #tpu.memory_space<vmem>>, %arg2: memref<32x1xf32, #tpu.memory_space<vmem>>, %arg3: memref<32x1xf32, #tpu.memory_space<vmem>>, %arg4: memref<32x1xf32, #tpu.memory_space<vmem>>, %arg5: memref<3x32x32xf32, #tpu.memory_space<vmem>>, %arg6: memref<3x32x1xf32, #tpu.memory_space<vmem>>, %arg7: memref<32x1xf32, #tpu.memory_space<vmem>>, %arg8: memref<1x1xf32, #tpu.memory_space<vmem>>, %arg9: memref<1x512xf32, #tpu.memory_space<vmem>>) attributes {dimension_semantics = [#tpu.dimension_semantics<parallel>], iteration_bounds = array<i64: 2>, scalar_prefetch = 0 : i64, scratch_operands = 0 : i64, tpu.core_type = #tpu.core_type<tc>, window_params = [{transform_indices = @transform_0, window_bounds = array<i64: 2, 512>}, {pipeline_mode = #tpu.pipeline_mode<synchronous>, transform_indices = @transform_1, window_bounds = array<i64: 32, 1>}, {pipeline_mode = #tpu.pipeline_mode<synchronous>, transform_indices = @transform_2, window_bounds = array<i64: 32, 1>}, {pipeline_mode = #tpu.pipeline_mode<synchronous>, transform_indices = @transform_3, window_bounds = array<i64: 32, 1>}, {pipeline_mode = #tpu.pipeline_mode<synchronous>, transform_indices = @transform_4, window_bounds = array<i64: 3, 32, 32>}, {pipeline_mode = #tpu.pipeline_mode<synchronous>, transform_indices = @transform_5, window_bounds = array<i64: 3, 32, 1>}, {pipeline_mode = #tpu.pipeline_mode<synchronous>, transform_indices = @transform_6, window_bounds = array<i64: 32, 1>}, {pipeline_mode = #tpu.pipeline_mode<synchronous>, transform_indices = @transform_7, window_bounds = array<i64: 1, 1>}, {transform_indices = @transform_8, window_bounds = array<i64: 1, 512>}]} {
    %c0 = arith.constant 0 : index
    %c0_0 = arith.constant 0 : index
    %0 = vector.load %arg1[%c0, %c0_0] : memref<2x512xf32, #tpu.memory_space<vmem>>, vector<2x512xf32>
    %1 = vector.extract_strided_slice %0 {offsets = [0, 0], sizes = [1, 512], strides = [1, 1]} : vector<2x512xf32> to vector<1x512xf32>
    %2 = vector.extract_strided_slice %0 {offsets = [1, 0], sizes = [1, 512], strides = [1, 1]} : vector<2x512xf32> to vector<1x512xf32>
    %c0_1 = arith.constant 0 : index
    %c0_2 = arith.constant 0 : index
    %3 = vector.load %arg2[%c0_1, %c0_2] : memref<32x1xf32, #tpu.memory_space<vmem>>, vector<32x1xf32>
    %4 = vector.broadcast %3 : vector<32x1xf32> to vector<32x512xf32>
    %5 = vector.broadcast %1 : vector<1x512xf32> to vector<32x512xf32>
    %6 = arith.mulf %4, %5 : vector<32x512xf32>
    %c0_3 = arith.constant 0 : index
    %c0_4 = arith.constant 0 : index
    %7 = vector.load %arg3[%c0_3, %c0_4] : memref<32x1xf32, #tpu.memory_space<vmem>>, vector<32x1xf32>
    %8 = vector.broadcast %7 : vector<32x1xf32> to vector<32x512xf32>
    %9 = vector.broadcast %2 : vector<1x512xf32> to vector<32x512xf32>
    %10 = arith.mulf %8, %9 : vector<32x512xf32>
    %11 = arith.addf %6, %10 : vector<32x512xf32>
    %c0_5 = arith.constant 0 : index
    %c0_6 = arith.constant 0 : index
    %12 = vector.load %arg4[%c0_5, %c0_6] : memref<32x1xf32, #tpu.memory_space<vmem>>, vector<32x1xf32>
    %13 = vector.broadcast %12 : vector<32x1xf32> to vector<32x512xf32>
    %14 = arith.addf %11, %13 : vector<32x512xf32>
    %15 = math.tanh %14 : vector<32x512xf32>
    %c0_7 = arith.constant 0 : index
    %c0_8 = arith.constant 0 : index
    %c0_9 = arith.constant 0 : index
    %16 = vector.load %arg5[%c0_7, %c0_8, %c0_9] : memref<3x32x32xf32, #tpu.memory_space<vmem>>, vector<1x32x32xf32>
    %17 = vector.shape_cast %16 : vector<1x32x32xf32> to vector<32x32xf32>
    %cst = arith.constant dense<0.000000e+00> : vector<32x512xf32>
    %18 = tpu.matmul %17, %15, %cst {dimension_numbers = #tpu.dot_dimension_numbers<[1], [0], [0], [1], [0, 0, 1, 1], [], []>, precision = #tpu.contract_precision<fp32>} : vector<32x32xf32>, vector<32x512xf32>, vector<32x512xf32> -> vector<32x512xf32>
    %c0_10 = arith.constant 0 : index
    %c0_11 = arith.constant 0 : index
    %c0_12 = arith.constant 0 : index
    %19 = vector.load %arg6[%c0_10, %c0_11, %c0_12] : memref<3x32x1xf32, #tpu.memory_space<vmem>>, vector<1x32x1xf32>
    %20 = vector.shape_cast %19 : vector<1x32x1xf32> to vector<32x1xf32>
    %21 = vector.broadcast %20 : vector<32x1xf32> to vector<32x512xf32>
    %22 = arith.addf %18, %21 : vector<32x512xf32>
    %23 = math.tanh %22 : vector<32x512xf32>
    %c1 = arith.constant 1 : index
    %c0_13 = arith.constant 0 : index
    %c0_14 = arith.constant 0 : index
    %24 = vector.load %arg5[%c1, %c0_13, %c0_14] : memref<3x32x32xf32, #tpu.memory_space<vmem>>, vector<1x32x32xf32>
    %25 = vector.shape_cast %24 : vector<1x32x32xf32> to vector<32x32xf32>
    %cst_15 = arith.constant dense<0.000000e+00> : vector<32x512xf32>
    %26 = tpu.matmul %25, %23, %cst_15 {dimension_numbers = #tpu.dot_dimension_numbers<[1], [0], [0], [1], [0, 0, 1, 1], [], []>, precision = #tpu.contract_precision<fp32>} : vector<32x32xf32>, vector<32x512xf32>, vector<32x512xf32> -> vector<32x512xf32>
    %c1_16 = arith.constant 1 : index
    %c0_17 = arith.constant 0 : index
    %c0_18 = arith.constant 0 : index
    %27 = vector.load %arg6[%c1_16, %c0_17, %c0_18] : memref<3x32x1xf32, #tpu.memory_space<vmem>>, vector<1x32x1xf32>
    %28 = vector.shape_cast %27 : vector<1x32x1xf32> to vector<32x1xf32>
    %29 = vector.broadcast %28 : vector<32x1xf32> to vector<32x512xf32>
    %30 = arith.addf %26, %29 : vector<32x512xf32>
    %31 = math.tanh %30 : vector<32x512xf32>
    %c2 = arith.constant 2 : index
    %c0_19 = arith.constant 0 : index
    %c0_20 = arith.constant 0 : index
    %32 = vector.load %arg5[%c2, %c0_19, %c0_20] : memref<3x32x32xf32, #tpu.memory_space<vmem>>, vector<1x32x32xf32>
    %33 = vector.shape_cast %32 : vector<1x32x32xf32> to vector<32x32xf32>
    %cst_21 = arith.constant dense<0.000000e+00> : vector<32x512xf32>
    %34 = tpu.matmul %33, %31, %cst_21 {dimension_numbers = #tpu.dot_dimension_numbers<[1], [0], [0], [1], [0, 0, 1, 1], [], []>, precision = #tpu.contract_precision<fp32>} : vector<32x32xf32>, vector<32x512xf32>, vector<32x512xf32> -> vector<32x512xf32>
    %c2_22 = arith.constant 2 : index
    %c0_23 = arith.constant 0 : index
    %c0_24 = arith.constant 0 : index
    %35 = vector.load %arg6[%c2_22, %c0_23, %c0_24] : memref<3x32x1xf32, #tpu.memory_space<vmem>>, vector<1x32x1xf32>
    %36 = vector.shape_cast %35 : vector<1x32x1xf32> to vector<32x1xf32>
    %37 = vector.broadcast %36 : vector<32x1xf32> to vector<32x512xf32>
    %38 = arith.addf %34, %37 : vector<32x512xf32>
    %39 = math.tanh %38 : vector<32x512xf32>
    %c0_25 = arith.constant 0 : index
    %c0_26 = arith.constant 0 : index
    %40 = vector.load %arg7[%c0_25, %c0_26] : memref<32x1xf32, #tpu.memory_space<vmem>>, vector<32x1xf32>
    %41 = vector.broadcast %40 : vector<32x1xf32> to vector<32x512xf32>
    %42 = arith.mulf %41, %39 : vector<32x512xf32>
    %cst_27 = arith.constant dense<0.000000e+00> : vector<512xf32>
    %43 = vector.multi_reduction <add>, %42, %cst_27 [0] : vector<32x512xf32> to vector<512xf32>
    %44 = vector.shape_cast %43 : vector<512xf32> to vector<1x512xf32>
    %c0_28 = arith.constant 0 : index
    %c0_29 = arith.constant 0 : index
    %45 = vector.load %arg8[%c0_28, %c0_29] : memref<1x1xf32, #tpu.memory_space<vmem>>, vector<1x1xf32>
    %46 = vector.broadcast %45 : vector<1x1xf32> to vector<1x512xf32>
    %47 = arith.addf %44, %46 : vector<1x512xf32>
    %48 = arith.negf %47 : vector<1x512xf32>
    %49 = math.exp %48 : vector<1x512xf32>
    %cst_30 = arith.constant 1.000000e+00 : f32
    %50 = vector.broadcast %cst_30 : f32 to vector<1x512xf32>
    %51 = arith.addf %50, %49 : vector<1x512xf32>
    %52 = arith.divf %50, %51 : vector<1x512xf32>
    %c0_31 = arith.constant 0 : index
    %c0_32 = arith.constant 0 : index
    %53 = vector.load %arg9[%c0_31, %c0_32] : memref<1x512xf32, #tpu.memory_space<vmem>>, vector<1x512xf32>
    tpu.vector_store %arg9[%c0_31, %c0_32], %52 {strides = array<i32>} : memref<1x512xf32, #tpu.memory_space<vmem>>, vector<1x512xf32>,
    return
  }
  func.func @transform_0(%arg0: i32) -> (i32, i32) {
    %c0_i32 = arith.constant 0 : i32
    %c0_i32_0 = arith.constant 0 : i32
    return %c0_i32, %arg0 : i32, i32
  }
  func.func @transform_1(%arg0: i32) -> (i32, i32) {
    %c0_i32 = arith.constant 0 : i32
    %c0_i32_0 = arith.constant 0 : i32
    %c0_i32_1 = arith.constant 0 : i32
    return %c0_i32, %c0_i32_0 : i32, i32
  }
  func.func @transform_2(%arg0: i32) -> (i32, i32) {
    %c0_i32 = arith.constant 0 : i32
    %c0_i32_0 = arith.constant 0 : i32
    %c0_i32_1 = arith.constant 0 : i32
    return %c0_i32, %c0_i32_0 : i32, i32
  }
  func.func @transform_3(%arg0: i32) -> (i32, i32) {
    %c0_i32 = arith.constant 0 : i32
    %c0_i32_0 = arith.constant 0 : i32
    %c0_i32_1 = arith.constant 0 : i32
    return %c0_i32, %c0_i32_0 : i32, i32
  }
  func.func @transform_4(%arg0: i32) -> (i32, i32, i32) {
    %c0_i32 = arith.constant 0 : i32
    %c0_i32_0 = arith.constant 0 : i32
    %c0_i32_1 = arith.constant 0 : i32
    %c0_i32_2 = arith.constant 0 : i32
    return %c0_i32, %c0_i32_0, %c0_i32_1 : i32, i32, i32
  }
  func.func @transform_5(%arg0: i32) -> (i32, i32, i32) {
    %c0_i32 = arith.constant 0 : i32
    %c0_i32_0 = arith.constant 0 : i32
    %c0_i32_1 = arith.constant 0 : i32
    %c0_i32_2 = arith.constant 0 : i32
    return %c0_i32, %c0_i32_0, %c0_i32_1 : i32, i32, i32
  }
  func.func @transform_6(%arg0: i32) -> (i32, i32) {
    %c0_i32 = arith.constant 0 : i32
    %c0_i32_0 = arith.constant 0 : i32
    %c0_i32_1 = arith.constant 0 : i32
    return %c0_i32, %c0_i32_0 : i32, i32
  }
  func.func @transform_7(%arg0: i32) -> (i32, i32) {
    %c0_i32 = arith.constant 0 : i32
    %c0_i32_0 = arith.constant 0 : i32
    %c0_i32_1 = arith.constant 0 : i32
    return %c0_i32, %c0_i32_0 : i32, i32
  }
  func.func @transform_8(%arg0: i32) -> (i32, i32) {
    %c0_i32 = arith.constant 0 : i32
    %c0_i32_0 = arith.constant 0 : i32
    return %c0_i32, %arg0 : i32, i32
  }
}

</mosaic_0001>

<llo_original>
// kernel: tpu_custom_call.1
$region0: #{tpu_custom_call.1}
  #allocation0 [shape = 'u32[]', space=smem, size = 0x4, offset = 0x4, fixed_abs, tag = 'smem constant byte address 0x4 - core index']
  #allocation1 [shape = 'u32[144,128]{1,0:T(1,128)}', space=vmem, size = 0x12000, scoped, tag = 'internal scratch']
  #allocation2 [shape = 'f32[1,1]{1,0:T(1,128)S(1)}', space=vmem, size = 0x200, scoped, tag = 'scoped memory for tpu_custom_call.1']
  %s0 = inlined_call_operand.vmem [shape: f32[2,1024], index: 0, kind: input, shape index: {}]
  %s1 = inlined_call_operand.vmem [shape: f32[32,1], index: 1, kind: input, shape index: {}]
  %s2 = inlined_call_operand.vmem [shape: f32[32,1], index: 2, kind: input, shape index: {}]
  %s3 = inlined_call_operand.vmem [shape: f32[32,1], index: 3, kind: input, shape index: {}]
  %s4 = inlined_call_operand.vmem [shape: f32[3,32,32], index: 4, kind: input, shape index: {}]
  %s5 = inlined_call_operand.vmem [shape: f32[3,32,1], index: 5, kind: input, shape index: {}]
  %s6 = inlined_call_operand.vmem [shape: f32[32,1], index: 6, kind: input, shape index: {}]
  %s7 = inlined_call_operand.<no memory space> [shape: f32[1,1], index: 7, kind: input, shape index: {}]
  %s8 = inlined_call_operand.hbm [shape: f32[1,1024], index: 8, kind: output, shape index: {}]
  %s9 = sld [smem:[#allocation0]]
  $region65: #{tpu_custom_call.1} parent=0
    _
  %s11 = ssub.s32 1, %s9
  %s12 = scalar_select 0, %s11, %s9
  %v13 = vstv %s7
  %14 = vst [vmem:[#allocation2] sm:$0x1] %v13
  $region1: #{tpu_custom_call.1} parent=0
    #allocation3 [shape = 'u8[4096]{0}', space=vmem, size = 0x1000, scoped, tag = 'output window, operand 0']
    #allocation4 [shape = 's32[2]{0}', space=sflag, size = 0x8, scoped, tag = 'scoped memory for tpu_custom_call.1']
    %15 = vsyncpa [#allocation4], 0
    %s16 = scalar_lea.sflag [#allocation4], 1
    %17 = vsyncpa %s16, 0
    loop: start=0, step=1, limit=4
    $region2: #{tpu_custom_call.1} parent=1 // loop_pre_header
      _
    $region3: #{tpu_custom_call.1} parent=1 // loop_header
      %s19 = sphi 0, %s23
      %p20 = scmp.ge.s32.totalorder %s19, 4
      %s29 = sphi 0, %s31
      %s32 = sphi 0, %s29
      %s33 = sphi 0, %s32
      %s49 = sphi 0, %s33
      %s53 = sphi 0, %s53
      %s55 = sphi 0, %s53
      %s56 = sphi 0, %s55
      %s70 = sphi 0, %s56
      %s74 = sphi 0, %s74
      %s76 = sphi 0, %s74
      %s77 = sphi 0, %s76
      %s91 = sphi 0, %s77
      %s95 = sphi 0, %s95
      %s97 = sphi 0, %s95
      %s98 = sphi 0, %s97
      %s112 = sphi 0, %s98
      %s116 = sphi 0, %s116
      %s118 = sphi 0, %s116
      %s119 = sphi 0, %s118
      %s133 = sphi 0, %s119
      %s137 = sphi 0, %s137
      %s139 = sphi 0, %s137
      %s140 = sphi 0, %s139
      %s154 = sphi 0, %s140
      %s158 = sphi 0, %s158
      %s160 = sphi 0, %s158
      %s161 = sphi 0, %s160
      %s175 = sphi 0, %s161
      %s179 = sphi 0, %s179
      %s181 = sphi 0, %s179
      %s182 = sphi 0, %s181
      %s196 = sphi 0, %s182
      %s202 = sphi 0, %s204
      %s205 = sphi 0, %s202
      %s206 = sphi 0, %s205
      %s222 = sphi 0, %s206
    $region4: #{tpu_custom_call.1} parent=1 // loop_header_branch
      %22 = sbr.rel (%p20) target = $region8
    $region5: #{tpu_custom_call.1} parent=1 // loop_body
      %s24 = ssub.s32 %s19, 1
      %s25 = ssub.s32 %s19, 2
      %s26 = sadd.s32 %s19, 1
      %s27 = ssub.s32 %s19, %s26
      %p28 = scmp.eq.s32.totalorder %s27, 0
      %s30 = sadd.s32 %s29, 1
      %s31 = scalar_select %p28, %s29, %s30
      %p34 = pneg %p28
      %p35 = scmp.eq.s32.totalorder %s19, 1
      %p36 = por %p34, %p35
      %p37 = scmp.ne.s32.totalorder %s29, %s32
      %p38 = scmp.eq.s32.totalorder %s19, 0
      %p39 = por %p37, %p38
      %p40 = scmp.ne.s32.totalorder %s29, %s32
      %p41 = scmp.eq.s32.totalorder %s24, 1
      %p42 = por %p40, %p41
      %p43 = scmp.ne.s32.totalorder %s32, %s33
      %p44 = scmp.eq.s32.totalorder %s24, 0
      %p45 = por %p43, %p44
      %p46 = scmp.ne.s32.totalorder %s32, %s33
      %p47 = scmp.eq.s32.totalorder %s25, 1
      %p48 = por %p46, %p47
      %p50 = scmp.ne.s32.totalorder %s33, %s49
      %p51 = scmp.eq.s32.totalorder %s25, 0
      %p52 = por %p50, %p51
      %s54 = sadd.s32 %s53, 1
      %p57 = scmp.eq.s32.totalorder %s19, 1
      %p58 = scmp.ne.s32.totalorder %s53, %s55
      %p59 = scmp.eq.s32.totalorder %s19, 0
      %p60 = por %p58, %p59
      %p61 = scmp.ne.s32.totalorder %s53, %s55
      %p62 = scmp.eq.s32.totalorder %s24, 1
      %p63 = por %p61, %p62
      %p64 = scmp.ne.s32.totalorder %s55, %s56
      %p65 = scmp.eq.s32.totalorder %s24, 0
      %p66 = por %p64, %p65
      %p67 = scmp.ne.s32.totalorder %s55, %s56
      %p68 = scmp.eq.s32.totalorder %s25, 1
      %p69 = por %p67, %p68
      %p71 = scmp.ne.s32.totalorder %s56, %s70
      %p72 = scmp.eq.s32.totalorder %s25, 0
      %p73 = por %p71, %p72
      %s75 = sadd.s32 %s74, 1
      %p78 = scmp.eq.s32.totalorder %s19, 1
      %p79 = scmp.ne.s32.totalorder %s74, %s76
      %p80 = scmp.eq.s32.totalorder %s19, 0
      %p81 = por %p79, %p80
      %p82 = scmp.ne.s32.totalorder %s74, %s76
      %p83 = scmp.eq.s32.totalorder %s24, 1
      %p84 = por %p82, %p83
      %p85 = scmp.ne.s32.totalorder %s76, %s77
      %p86 = scmp.eq.s32.totalorder %s24, 0
      %p87 = por %p85, %p86
      %p88 = scmp.ne.s32.totalorder %s76, %s77
      %p89 = scmp.eq.s32.totalorder %s25, 1
      %p90 = por %p88, %p89
      %p92 = scmp.ne.s32.totalorder %s77, %s91
      %p93 = scmp.eq.s32.totalorder %s25, 0
      %p94 = por %p92, %p93
      %s96 = sadd.s32 %s95, 1
      %p99 = scmp.eq.s32.totalorder %s19, 1
      %p100 = scmp.ne.s32.totalorder %s95, %s97
      %p101 = scmp.eq.s32.totalorder %s19, 0
      %p102 = por %p100, %p101
      %p103 = scmp.ne.s32.totalorder %s95, %s97
      %p104 = scmp.eq.s32.totalorder %s24, 1
      %p105 = por %p103, %p104
      %p106 = scmp.ne.s32.totalorder %s97, %s98
      %p107 = scmp.eq.s32.totalorder %s24, 0
      %p108 = por %p106, %p107
      %p109 = scmp.ne.s32.totalorder %s97, %s98
      %p110 = scmp.eq.s32.totalorder %s25, 1
      %p111 = por %p109, %p110
      %p113 = scmp.ne.s32.totalorder %s98, %s112
      %p114 = scmp.eq.s32.totalorder %s25, 0
      %p115 = por %p113, %p114
      %s117 = sadd.s32 %s116, 1
      %p120 = scmp.eq.s32.totalorder %s19, 1
      %p121 = scmp.ne.s32.totalorder %s116, %s118
      %p122 = scmp.eq.s32.totalorder %s19, 0
      %p123 = por %p121, %p122
      %p124 = scmp.ne.s32.totalorder %s116, %s118
      %p125 = scmp.eq.s32.totalorder %s24, 1
      %p126 = por %p124, %p125
      %p127 = scmp.ne.s32.totalorder %s118, %s119
      %p128 = scmp.eq.s32.totalorder %s24, 0
      %p129 = por %p127, %p128
      %p130 = scmp.ne.s32.totalorder %s118, %s119
      %p131 = scmp.eq.s32.totalorder %s25, 1
      %p132 = por %p130, %p131
      %p134 = scmp.ne.s32.totalorder %s119, %s133
      %p135 = scmp.eq.s32.totalorder %s25, 0
      %p136 = por %p134, %p135
      %s138 = sadd.s32 %s137, 1
      %p141 = scmp.eq.s32.totalorder %s19, 1
      %p142 = scmp.ne.s32.totalorder %s137, %s139
      %p143 = scmp.eq.s32.totalorder %s19, 0
      %p144 = por %p142, %p143
      %p145 = scmp.ne.s32.totalorder %s137, %s139
      %p146 = scmp.eq.s32.totalorder %s24, 1
      %p147 = por %p145, %p146
      %p148 = scmp.ne.s32.totalorder %s139, %s140
      %p149 = scmp.eq.s32.totalorder %s24, 0
      %p150 = por %p148, %p149
      %p151 = scmp.ne.s32.totalorder %s139, %s140
      %p152 = scmp.eq.s32.totalorder %s25, 1
      %p153 = por %p151, %p152
      %p155 = scmp.ne.s32.totalorder %s140, %s154
      %p156 = scmp.eq.s32.totalorder %s25, 0
      %p157 = por %p155, %p156
      %s159 = sadd.s32 %s158, 1
      %p162 = scmp.eq.s32.totalorder %s19, 1
      %p163 = scmp.ne.s32.totalorder %s158, %s160
      %p164 = scmp.eq.s32.totalorder %s19, 0
      %p165 = por %p163, %p164
      %p166 = scmp.ne.s32.totalorder %s158, %s160
      %p167 = scmp.eq.s32.totalorder %s24, 1
      %p168 = por %p166, %p167
      %p169 = scmp.ne.s32.totalorder %s160, %s161
      %p170 = scmp.eq.s32.totalorder %s24, 0
      %p171 = por %p169, %p170
      %p172 = scmp.ne.s32.totalorder %s160, %s161
      %p173 = scmp.eq.s32.totalorder %s25, 1
      %p174 = por %p172, %p173
      %p176 = scmp.ne.s32.totalorder %s161, %s175
      %p177 = scmp.eq.s32.totalorder %s25, 0
      %p178 = por %p176, %p177
      %s180 = sadd.s32 %s179, 1
      %p183 = scmp.eq.s32.totalorder %s19, 1
      %p184 = scmp.ne.s32.totalorder %s179, %s181
      %p185 = scmp.eq.s32.totalorder %s19, 0
      %p186 = por %p184, %p185
      %p187 = scmp.ne.s32.totalorder %s179, %s181
      %p188 = scmp.eq.s32.totalorder %s24, 1
      %p189 = por %p187, %p188
      %p190 = scmp.ne.s32.totalorder %s181, %s182
      %p191 = scmp.eq.s32.totalorder %s24, 0
      %p192 = por %p190, %p191
      %p193 = scmp.ne.s32.totalorder %s181, %s182
      %p194 = scmp.eq.s32.totalorder %s25, 1
      %p195 = por %p193, %p194
      %p197 = scmp.ne.s32.totalorder %s182, %s196
      %p198 = scmp.eq.s32.totalorder %s25, 0
      %p199 = por %p197, %p198
      %s200 = ssub.s32 %s19, %s26
      %p201 = scmp.eq.s32.totalorder %s200, 0
      %s203 = sadd.s32 %s202, 1
      %s204 = scalar_select %p201, %s202, %s203
      %p207 = pneg %p201
      %p208 = scmp.eq.s32.totalorder %s19, 1
      %p209 = por %p207, %p208
      %p210 = scmp.ne.s32.totalorder %s202, %s205
      %p211 = scmp.eq.s32.totalorder %s19, 0
      %p212 = por %p210, %p211
      %p213 = scmp.ne.s32.totalorder %s202, %s205
      %p214 = scmp.eq.s32.totalorder %s24, 1
      %p215 = por %p213, %p214
      %p216 = scmp.ne.s32.totalorder %s205, %s206
      %p217 = scmp.eq.s32.totalorder %s24, 0
      %p218 = por %p216, %p217
      %p219 = scmp.ne.s32.totalorder %s205, %s206
      %p220 = scmp.eq.s32.totalorder %s25, 1
      %p221 = por %p219, %p220
      %p223 = scmp.ne.s32.totalorder %s206, %s222
      %p224 = scmp.eq.s32.totalorder %s25, 0
      %p225 = por %p223, %p224
      %p226 = scmp.le.s32.totalorder 1, %s19
      %p227 = scmp.lt.s32.totalorder %s19, 3
      %p228 = pnand %p226, %p227
      %p229 = pneg %p228
      // Predicated region
      $region9: #{tpu_custom_call.1} parent=5 // pred_check
        _
      $region10: #{tpu_custom_call.1} parent=5 // pred_check_branch
        %231 = sbr.rel (%p228) target = $region12
      $region11: #{tpu_custom_call.1} parent=5 // pred_region
        %s232 = ssub.s32 %s19, 1
        // Predicated region
        $region13: #{tpu_custom_call.1} parent=11 // pred_check
          %p233 = pneg %p66
        $region14: #{tpu_custom_call.1} parent=11 // pred_check_branch
          %235 = sbr.rel (%p233) target = $region16
        $region15: #{tpu_custom_call.1} parent=11 // pred_region
          _
        $region16: #{tpu_custom_call.1} parent=11 // pred_fallthru
          _
        // Predicated region
        $region17: #{tpu_custom_call.1} parent=11 // pred_check
          %p236 = pneg %p87
        $region18: #{tpu_custom_call.1} parent=11 // pred_check_branch
          %238 = sbr.rel (%p236) target = $region20
        $region19: #{tpu_custom_call.1} parent=11 // pred_region
          _
        $region20: #{tpu_custom_call.1} parent=11 // pred_fallthru
          _
        // Predicated region
        $region21: #{tpu_custom_call.1} parent=11 // pred_check
          %p239 = pneg %p108
        $region22: #{tpu_custom_call.1} parent=11 // pred_check_branch
          %241 = sbr.rel (%p239) target = $region24
        $region23: #{tpu_custom_call.1} parent=11 // pred_region
          _
        $region24: #{tpu_custom_call.1} parent=11 // pred_fallthru
          _
        // Predicated region
        $region25: #{tpu_custom_call.1} parent=11 // pred_check
          %p242 = pneg %p129
        $region26: #{tpu_custom_call.1} parent=11 // pred_check_branch
          %244 = sbr.rel (%p242) target = $region28
        $region27: #{tpu_custom_call.1} parent=11 // pred_region
          _
        $region28: #{tpu_custom_call.1} parent=11 // pred_fallthru
          _
        // Predicated region
        $region29: #{tpu_custom_call.1} parent=11 // pred_check
          %p245 = pneg %p150
        $region30: #{tpu_custom_call.1} parent=11 // pred_check_branch
          %247 = sbr.rel (%p245) target = $region32
        $region31: #{tpu_custom_call.1} parent=11 // pred_region
          _
        $region32: #{tpu_custom_call.1} parent=11 // pred_fallthru
          _
        // Predicated region
        $region33: #{tpu_custom_call.1} parent=11 // pred_check
          %p248 = pneg %p171
        $region34: #{tpu_custom_call.1} parent=11 // pred_check_branch
          %250 = sbr.rel (%p248) target = $region36
        $region35: #{tpu_custom_call.1} parent=11 // pred_region
          _
        $region36: #{tpu_custom_call.1} parent=11 // pred_fallthru
          _
        // Predicated region
        $region37: #{tpu_custom_call.1} parent=11 // pred_check
          %p251 = pneg %p192
        $region38: #{tpu_custom_call.1} parent=11 // pred_check_branch
          %253 = sbr.rel (%p251) target = $region40
        $region39: #{tpu_custom_call.1} parent=11 // pred_region
          _
        $region40: #{tpu_custom_call.1} parent=11 // pred_fallthru
          _
      $region12: #{tpu_custom_call.1} parent=5 // pred_fallthru
        _
      %p254 = scmp.lt.s32.totalorder %s19, 2
      // Predicated region
      $region41: #{tpu_custom_call.1} parent=5 // pred_check
        %p255 = pneg %p254
      $region42: #{tpu_custom_call.1} parent=5 // pred_check_branch
        %257 = sbr.rel (%p255) target = $region44
      $region43: #{tpu_custom_call.1} parent=5 // pred_region
        // Predicated region
        $region45: #{tpu_custom_call.1} parent=43 // pred_check
          %p258 = pneg %p39
        $region46: #{tpu_custom_call.1} parent=43 // pred_check_branch
          %260 = sbr.rel (%p258) target = $region48
        $region47: #{tpu_custom_call.1} parent=43 // pred_region
          %s261 = smul.u32 4, %s19
          %p262 = scmp.lt.s32.totalorder %s261, 7
          %s263 = scalar_select %p262, %s261, 7
          %s264 = smul.addr %s263, 2
          %s265 = scalar_lea.vmem %s0, %s264
          %s266 = smul.u32 4, %s19
        $region48: #{tpu_custom_call.1} parent=43 // pred_fallthru
          _
      $region44: #{tpu_custom_call.1} parent=5 // pred_fallthru
        _
      %p267 = scmp.le.s32.totalorder 1, %s19
      %p268 = scmp.lt.s32.totalorder %s19, 3
      %p269 = pnand %p267, %p268
      %p270 = pneg %p269
      // Predicated region
      $region49: #{tpu_custom_call.1} parent=5 // pred_check
        _
      $region50: #{tpu_custom_call.1} parent=5 // pred_check_branch
        %272 = sbr.rel (%p269) target = $region52
      $region51: #{tpu_custom_call.1} parent=5 // pred_region
        %s273 = ssub.s32 %s19, 1
        %s274 = smul.u32 4, %s24
        %p275 = scmp.lt.s32.totalorder %s274, 7
        %s276 = scalar_select %p275, %s274, 7
        %s277 = smul.addr %s276, 2
        %s278 = scalar_lea.vmem %s0, %s277
        %p279 = pneg %p45
        %p280 = pneg %p42
        %p281 = pneg %p66
        %p282 = pneg %p63
        %p283 = pneg %p87
        %p284 = pneg %p84
        %p285 = pneg %p108
        %p286 = pneg %p105
        %p287 = pneg %p129
        %p288 = pneg %p126
        %p289 = pneg %p150
        %p290 = pneg %p147
        %p291 = pneg %p171
        %p292 = pneg %p168
        %p293 = pneg %p192
        %p294 = pneg %p189
        %p295 = pneg %p218
        %p296 = pneg %p215
        %s297 = sand.u32 %s205, 1
        %s298 = scalar_lea.sflag [#allocation4], %s297
        %s299 = sand.u32 %s205, 1
        %s300 = smul.addr %s299, 4
        %s301 = scalar_lea.vmem [#allocation3], %s300
        %s302 = smul.u32 4, %s24
        %p303 = scmp.lt.s32.totalorder %s302, 7
        %s304 = scalar_select %p303, %s302, 7
        %s305 = smul.addr %s304, 2
        %s306 = scalar_lea.vmem %s0, %s305
        %s307 = smul.u32 4, %s24
        %s308 = smul.u32 4, %s24
        %v309 = vld [vmem:[%s306] sm:$0xff]
        %v310 = vld [vmem:[%s1] sm:$0xff]
        %v311 = vld [vmem:[%s1 + $0x8] sm:$0xff]
        %v312 = vld [vmem:[%s1 + $0x10] sm:$0xff]
        %v313 = vld [vmem:[%s1 + $0x18] sm:$0xff]
        %315 = vset.pattern.permute.xlu0 0
        %316 = vperm.xlu0 %315, %v310
        %v317 = vpop.permute.xlu0 %316
        %320 = vset.pattern.permute.xlu0 0
        %321 = vperm.xlu0 %320, %v311
        %v322 = vpop.permute.xlu0 %321
        %325 = vset.pattern.permute.xlu0 0
        %326 = vperm.xlu0 %325, %v312
        %v327 = vpop.permute.xlu0 %326
        %330 = vset.pattern.permute.xlu0 0
        %331 = vperm.xlu0 %330, %v313
        %v332 = vpop.permute.xlu0 %331
        %v335 = vlaneseq
        %v336 = vshrl.u32 %v335, 7
        %v337 = vsub.s32 0, %v336
        %v338 = vrot.slane %v309, %v337
        %v339 = vlaneseq
        %v340 = vshrl.u32 %v339, 7
        %v341 = vsub.s32 2, %v340
        %v342 = vrot.slane %v309, %v341
        %v343 = vlaneseq
        %v344 = vshrl.u32 %v343, 7
        %v345 = vsub.s32 4, %v344
        %v346 = vrot.slane %v309, %v345
        %v347 = vlaneseq
        %v348 = vshrl.u32 %v347, 7
        %v349 = vsub.s32 6, %v348
        %v350 = vrot.slane %v309, %v349
        %v355 = vlaneseq
        %v356 = vshrl.u32 %v355, 7
        %v357 = vsub.s32 0, %v356
        %v358 = vrot.slane %v338, %v357
        %v359 = vlaneseq
        %v360 = vshrl.u32 %v359, 7
        %v361 = vsub.s32 0, %v360
        %v362 = vrot.slane %v342, %v361
        %v363 = vlaneseq
        %v364 = vshrl.u32 %v363, 7
        %v365 = vsub.s32 0, %v364
        %v366 = vrot.slane %v346, %v365
        %v367 = vlaneseq
        %v368 = vshrl.u32 %v367, 7
        %v369 = vsub.s32 0, %v368
        %v370 = vrot.slane %v350, %v369
        %v371 = vmul.f32 %v317, %v358
        %v372 = vmul.f32 %v317, %v362
        %v373 = vmul.f32 %v317, %v366
        %v374 = vmul.f32 %v317, %v370
        %v375 = vmul.f32 %v322, %v358
        %v376 = vmul.f32 %v322, %v362
        %v377 = vmul.f32 %v322, %v366
        %v378 = vmul.f32 %v322, %v370
        %v379 = vmul.f32 %v327, %v358
        %v380 = vmul.f32 %v327, %v362
        %v381 = vmul.f32 %v327, %v366
        %v382 = vmul.f32 %v327, %v370
        %v383 = vmul.f32 %v332, %v358
        %v384 = vmul.f32 %v332, %v362
        %v385 = vmul.f32 %v332, %v366
        %v386 = vmul.f32 %v332, %v370
        %v387 = vld [vmem:[%s2] sm:$0xff]
        %v388 = vld [vmem:[%s2 + $0x8] sm:$0xff]
        %v389 = vld [vmem:[%s2 + $0x10] sm:$0xff]
        %v390 = vld [vmem:[%s2 + $0x18] sm:$0xff]
        %392 = vset.pattern.permute.xlu0 0
        %393 = vperm.xlu0 %392, %v387
        %v394 = vpop.permute.xlu0 %393
        %397 = vset.pattern.permute.xlu0 0
        %398 = vperm.xlu0 %397, %v388
        %v399 = vpop.permute.xlu0 %398
        %402 = vset.pattern.permute.xlu0 0
        %403 = vperm.xlu0 %402, %v389
        %v404 = vpop.permute.xlu0 %403
        %407 = vset.pattern.permute.xlu0 0
        %408 = vperm.xlu0 %407, %v390
        %v409 = vpop.permute.xlu0 %408
        %v411 = vlaneseq
        %v412 = vshrl.u32 %v411, 7
        %v413 = vsub.s32 1, %v412
        %v414 = vrot.slane %v309, %v413
        %v415 = vlaneseq
        %v416 = vshrl.u32 %v415, 7
        %v417 = vsub.s32 3, %v416
        %v418 = vrot.slane %v309, %v417
        %v419 = vlaneseq
        %v420 = vshrl.u32 %v419, 7
        %v421 = vsub.s32 5, %v420
        %v422 = vrot.slane %v309, %v421
        %v423 = vlaneseq
        %v424 = vshrl.u32 %v423, 7
        %v425 = vsub.s32 7, %v424
        %v426 = vrot.slane %v309, %v425
        %v431 = vlaneseq
        %v432 = vshrl.u32 %v431, 7
        %v433 = vsub.s32 1, %v432
        %v434 = vrot.slane %v414, %v433
        %v435 = vlaneseq
        %v436 = vshrl.u32 %v435, 7
        %v437 = vsub.s32 1, %v436
        %v438 = vrot.slane %v418, %v437
        %v439 = vlaneseq
        %v440 = vshrl.u32 %v439, 7
        %v441 = vsub.s32 1, %v440
        %v442 = vrot.slane %v422, %v441
        %v443 = vlaneseq
        %v444 = vshrl.u32 %v443, 7
        %v445 = vsub.s32 1, %v444
        %v446 = vrot.slane %v426, %v445
        %v447 = vmul.f32 %v394, %v434
        %v448 = vmul.f32 %v394, %v438
        %v449 = vmul.f32 %v394, %v442
        %v450 = vmul.f32 %v394, %v446
        %v451 = vmul.f32 %v399, %v434
        %v452 = vmul.f32 %v399, %v438
        %v453 = vmul.f32 %v399, %v442
        %v454 = vmul.f32 %v399, %v446
        %v455 = vmul.f32 %v404, %v434
        %v456 = vmul.f32 %v404, %v438
        %v457 = vmul.f32 %v404, %v442
        %v458 = vmul.f32 %v404, %v446
        %v459 = vmul.f32 %v409, %v434
        %v460 = vmul.f32 %v409, %v438
        %v461 = vmul.f32 %v409, %v442
        %v462 = vmul.f32 %v409, %v446
        %v463 = vadd.f32 %v371, %v447
        %v464 = vadd.f32 %v372, %v448
        %v465 = vadd.f32 %v373, %v449
        %v466 = vadd.f32 %v374, %v450
        %v467 = vadd.f32 %v375, %v451
        %v468 = vadd.f32 %v376, %v452
        %v469 = vadd.f32 %v377, %v453
        %v470 = vadd.f32 %v378, %v454
        %v471 = vadd.f32 %v379, %v455
        %v472 = vadd.f32 %v380, %v456
        %v473 = vadd.f32 %v381, %v457
        %v474 = vadd.f32 %v382, %v458
        %v475 = vadd.f32 %v383, %v459
        %v476 = vadd.f32 %v384, %v460
        %v477 = vadd.f32 %v385, %v461
        %v478 = vadd.f32 %v386, %v462
        %v479 = vld [vmem:[%s3] sm:$0xff]
        %v480 = vld [vmem:[%s3 + $0x8] sm:$0xff]
        %v481 = vld [vmem:[%s3 + $0x10] sm:$0xff]
        %v482 = vld [vmem:[%s3 + $0x18] sm:$0xff]
        %484 = vset.pattern.permute.xlu0 0
        %485 = vperm.xlu0 %484, %v479
        %v486 = vpop.permute.xlu0 %485
        %489 = vset.pattern.permute.xlu0 0
        %490 = vperm.xlu0 %489, %v480
        %v491 = vpop.permute.xlu0 %490
        %494 = vset.pattern.permute.xlu0 0
        %495 = vperm.xlu0 %494, %v481
        %v496 = vpop.permute.xlu0 %495
        %499 = vset.pattern.permute.xlu0 0
        %500 = vperm.xlu0 %499, %v482
        %v501 = vpop.permute.xlu0 %500
        %v503 = vadd.f32 %v463, %v486
        %v504 = vadd.f32 %v464, %v486
        %v505 = vadd.f32 %v465, %v486
        %v506 = vadd.f32 %v466, %v486
        %v507 = vadd.f32 %v467, %v491
        %v508 = vadd.f32 %v468, %v491
        %v509 = vadd.f32 %v469, %v491
        %v510 = vadd.f32 %v470, %v491
        %v511 = vadd.f32 %v471, %v496
        %v512 = vadd.f32 %v472, %v496
        %v513 = vadd.f32 %v473, %v496
        %v514 = vadd.f32 %v474, %v496
        %v515 = vadd.f32 %v475, %v501
        %v516 = vadd.f32 %v476, %v501
        %v517 = vadd.f32 %v477, %v501
        %v518 = vadd.f32 %v478, %v501
        %v519 = vtanh.pop %v503
        %v520 = vtanh.pop %v504
        %v521 = vtanh.pop %v505
        %v522 = vtanh.pop %v506
        %v523 = vtanh.pop %v507
        %v524 = vtanh.pop %v508
        %v525 = vtanh.pop %v509
        %v526 = vtanh.pop %v510
        %v527 = vtanh.pop %v511
        %v528 = vtanh.pop %v512
        %v529 = vtanh.pop %v513
        %v530 = vtanh.pop %v514
        %v531 = vtanh.pop %v515
        %v532 = vtanh.pop %v516
        %v533 = vtanh.pop %v517
        %v534 = vtanh.pop %v518
        %v535 = vld [vmem:[%s4] sm:$0xff]
        %v536 = vld [vmem:[%s4 + $0x8] sm:$0xff]
        %v537 = vld [vmem:[%s4 + $0x10] sm:$0xff]
        %v538 = vld [vmem:[%s4 + $0x18] sm:$0xff]
        %v539 = vld [vmem:[%s5] sm:$0xff]
        %v540 = vld [vmem:[%s5 + $0x8] sm:$0xff]
        %v541 = vld [vmem:[%s5 + $0x10] sm:$0xff]
        %v542 = vld [vmem:[%s5 + $0x18] sm:$0xff]
        %544 = vset.pattern.permute.xlu0 0
        %545 = vperm.xlu0 %544, %v539
        %v546 = vpop.permute.xlu0 %545
        %549 = vset.pattern.permute.xlu0 0
        %550 = vperm.xlu0 %549, %v540
        %v551 = vpop.permute.xlu0 %550
        %554 = vset.pattern.permute.xlu0 0
        %555 = vperm.xlu0 %554, %v541
        %v556 = vpop.permute.xlu0 %555
        %559 = vset.pattern.permute.xlu0 0
        %560 = vperm.xlu0 %559, %v542
        %v561 = vpop.permute.xlu0 %560
        %vm563 = vcmask 261120
        %v565 = vsel %vm563, %v535, 0
        %v568 = vsel %vm563, %v536, 0
        %v571 = vsel %vm563, %v537, 0
        %v574 = vsel %vm563, %v538, 0
        %576 = vmatprep.subr.mxu0 0.0
        %577 = vmatpush1.msra.mxu0 0.0
        %578 = vmatprep.subr.mxu0 0.0
        %579 = vmatpush1.msra.mxu0 0.0
        %580 = vmatprep.subr.mxu0 0.0
        %581 = vmatpush1.msra.mxu0 0.0
        %582 = vmatprep.subr.mxu0 0.0
        %583 = vmatpush1.msra.mxu0 0.0
        %584 = vmatprep.subr.mxu0 0.0
        %585 = vmatpush1.msra.mxu0 0.0
        %586 = vmatprep.subr.mxu0 0.0
        %587 = vmatpush1.msra.mxu0 0.0
        %588 = vmatprep.subr.mxu0 0.0
        %589 = vmatpush1.msra.mxu0 0.0
        %590 = vmatprep.subr.mxu0 0.0
        %591 = vmatpush1.msra.mxu0 0.0
        %592 = vmatprep.subr.mxu0 0.0
        %593 = vmatpush1.msra.mxu0 0.0
        %594 = vmatprep.subr.mxu0 0.0
        %595 = vmatpush1.msra.mxu0 0.0
        %596 = vmatprep.subr.mxu0 0.0
        %597 = vmatpush1.msra.mxu0 0.0
        %598 = vmatprep.subr.mxu0 0.0
        %599 = vmatpush1.msra.mxu0 0.0
        %v600 = vand.u32 %v532, 4294901760
        %601 = vmatprep.subr.mxu0 %v600
        %v602 = vand.u32 %v531, 4294901760
        %603 = vmatpush1.msra.mxu0 %v602
        %v604 = vand.u32 %v528, 4294901760
        %605 = vmatprep.subr.mxu0 %v604
        %v606 = vand.u32 %v527, 4294901760
        %607 = vmatpush1.msra.mxu0 %v606
        %v608 = vand.u32 %v524, 4294901760
        %609 = vmatprep.subr.mxu0 %v608
        %v610 = vand.u32 %v523, 4294901760
        %611 = vmatpush1.msra.mxu0 %v610
        %v612 = vand.u32 %v520, 4294901760
        %613 = vmatprep.subr.mxu0 %v612
        %v614 = vand.u32 %v519, 4294901760
        %615 = vmatpush1.msra.mxu0 %v614
        %616 = vmatprep.subr.mxu0 0.0
        %617 = vmatpush2.msra.mxu0 0.0
        %618 = vmatprep.subr.mxu0 0.0
        %619 = vmatpush2.msra.mxu0 0.0
        %620 = vmatprep.subr.mxu0 0.0
        %621 = vmatpush2.msra.mxu0 0.0
        %622 = vmatprep.subr.mxu0 0.0
        %623 = vmatpush2.msra.mxu0 0.0
        %624 = vmatprep.subr.mxu0 0.0
        %625 = vmatpush2.msra.mxu0 0.0
        %626 = vmatprep.subr.mxu0 0.0
        %627 = vmatpush2.msra.mxu0 0.0
        %628 = vmatprep.subr.mxu0 0.0
        %629 = vmatpush2.msra.mxu0 0.0
        %630 = vmatprep.subr.mxu0 0.0
        %631 = vmatpush2.msra.mxu0 0.0
        %632 = vmatprep.subr.mxu0 0.0
        %633 = vmatpush2.msra.mxu0 0.0
        %634 = vmatprep.subr.mxu0 0.0
        %635 = vmatpush2.msra.mxu0 0.0
        %636 = vmatprep.subr.mxu0 0.0
        %637 = vmatpush2.msra.mxu0 0.0
        %638 = vmatprep.subr.mxu0 0.0
        %639 = vmatpush2.msra.mxu0 0.0
        %640 = vmatprep.subr.mxu0 0.0
        %641 = vmatpush2.msra.mxu0 0.0
        %642 = vmatprep.subr.mxu0 0.0
        %643 = vmatpush2.msra.mxu0 0.0
        %644 = vmatprep.subr.mxu0 0.0
        %645 = vmatpush2.msra.mxu0 0.0
        %646 = vmatprep.subr.mxu0 0.0
        %647 = vmatpush2.msra.mxu0 0.0
        %648 = vmatprep.mubr.f32.mxu0 0.0
        %v649 = vand.u32 %v565, 4294901760
        %v650 = vsub.f32 %v565, %v649
        %v651 = vand.u32 %v650, 4294901760
        %v652 = vsub.f32 %v650, %v651
        %v653 = vand.u32 %v652, 4294901760
        %654 = vmatmul.mubr.f32.gmra.mxu0 %v653
        %v655 = vpop.f32.mrf.mxu0
        %v656 = vadd.f32 %v546, %v655
        %v657 = vpop.f32.mrf.mxu0
        %v658 = vadd.f32 %v546, %v657
        %659 = vmatprep.mubr.f32.mxu0 0.0
        %v660 = vand.u32 %v568, 4294901760
        %v661 = vsub.f32 %v568, %v660
        %v662 = vand.u32 %v661, 4294901760
        %v663 = vsub.f32 %v661, %v662
        %v664 = vand.u32 %v663, 4294901760
        %665 = vmatmul.mubr.f32.gmra.mxu0 %v664
        %v666 = vpop.f32.mrf.mxu0
        %v667 = vadd.f32 %v551, %v666
        %v668 = vpop.f32.mrf.mxu0
        %v669 = vadd.f32 %v551, %v668
        %670 = vmatprep.mubr.f32.mxu0 0.0
        %v671 = vand.u32 %v571, 4294901760
        %v672 = vsub.f32 %v571, %v671
        %v673 = vand.u32 %v672, 4294901760
        %v674 = vsub.f32 %v672, %v673
        %v675 = vand.u32 %v674, 4294901760
        %676 = vmatmul.mubr.f32.gmra.mxu0 %v675
        %v677 = vpop.f32.mrf.mxu0
        %v678 = vadd.f32 %v556, %v677
        %v679 = vpop.f32.mrf.mxu0
        %v680 = vadd.f32 %v556, %v679
        %681 = vmatprep.mubr.f32.mxu0 0.0
        %v682 = vand.u32 %v574, 4294901760
        %v683 = vsub.f32 %v574, %v682
        %v684 = vand.u32 %v683, 4294901760
        %v685 = vsub.f32 %v683, %v684
        %v686 = vand.u32 %v685, 4294901760
        %687 = vmatmul.mubr.f32.gmra.mxu0 %v686
        %v688 = vpop.f32.mrf.mxu0
        %v689 = vadd.f32 %v561, %v688
        %v690 = vpop.f32.mrf.mxu0
        %v691 = vadd.f32 %v561, %v690
        %692 = vdwg.mxu0
        %693 = vmatprep.subr.mxu0 0.0
        %694 = vmatpush1.msra.mxu0 0.0
        %695 = vmatprep.subr.mxu0 0.0
        %696 = vmatpush1.msra.mxu0 0.0
        %697 = vmatprep.subr.mxu0 0.0
        %698 = vmatpush1.msra.mxu0 0.0
        %699 = vmatprep.subr.mxu0 0.0
        %700 = vmatpush1.msra.mxu0 0.0
        %701 = vmatprep.subr.mxu0 0.0
        %702 = vmatpush1.msra.mxu0 0.0
        %703 = vmatprep.subr.mxu0 0.0
        %704 = vmatpush1.msra.mxu0 0.0
        %705 = vmatprep.subr.mxu0 0.0
        %706 = vmatpush1.msra.mxu0 0.0
        %707 = vmatprep.subr.mxu0 0.0
        %708 = vmatpush1.msra.mxu0 0.0
        %709 = vmatprep.subr.mxu0 0.0
        %710 = vmatpush1.msra.mxu0 0.0
        %711 = vmatprep.subr.mxu0 0.0
        %712 = vmatpush1.msra.mxu0 0.0
        %713 = vmatprep.subr.mxu0 0.0
        %714 = vmatpush1.msra.mxu0 0.0
        %715 = vmatprep.subr.mxu0 0.0
        %716 = vmatpush1.msra.mxu0 0.0
        %v717 = vand.u32 %v532, 4294901760
        %v718 = vsub.f32 %v532, %v717
        %v719 = vand.u32 %v718, 4294901760
        %v720 = vsub.f32 %v718, %v719
        %v721 = vand.u32 %v720, 4294901760
        %722 = vmatprep.subr.mxu0 %v721
        %v723 = vand.u32 %v531, 4294901760
        %v724 = vsub.f32 %v531, %v723
        %v725 = vand.u32 %v724, 4294901760
        %v726 = vsub.f32 %v724, %v725
        %v727 = vand.u32 %v726, 4294901760
        %728 = vmatpush1.msra.mxu0 %v727
        %v729 = vand.u32 %v528, 4294901760
        %v730 = vsub.f32 %v528, %v729
        %v731 = vand.u32 %v730, 4294901760
        %v732 = vsub.f32 %v730, %v731
        %v733 = vand.u32 %v732, 4294901760
        %734 = vmatprep.subr.mxu0 %v733
        %v735 = vand.u32 %v527, 4294901760
        %v736 = vsub.f32 %v527, %v735
        %v737 = vand.u32 %v736, 4294901760
        %v738 = vsub.f32 %v736, %v737
        %v739 = vand.u32 %v738, 4294901760
        %740 = vmatpush1.msra.mxu0 %v739
        %v741 = vand.u32 %v524, 4294901760
        %v742 = vsub.f32 %v524, %v741
        %v743 = vand.u32 %v742, 4294901760
        %v744 = vsub.f32 %v742, %v743
        %v745 = vand.u32 %v744, 4294901760
        %746 = vmatprep.subr.mxu0 %v745
        %v747 = vand.u32 %v523, 4294901760
        %v748 = vsub.f32 %v523, %v747
        %v749 = vand.u32 %v748, 4294901760
        %v750 = vsub.f32 %v748, %v749
        %v751 = vand.u32 %v750, 4294901760
        %752 = vmatpush1.msra.mxu0 %v751
        %v753 = vand.u32 %v520, 4294901760
        %v754 = vsub.f32 %v520, %v753
        %v755 = vand.u32 %v754, 4294901760
        %v756 = vsub.f32 %v754, %v755
        %v757 = vand.u32 %v756, 4294901760
        %758 = vmatprep.subr.mxu0 %v757
        %v759 = vand.u32 %v519, 4294901760
        %v760 = vsub.f32 %v519, %v759
        %v761 = vand.u32 %v760, 4294901760
        %v762 = vsub.f32 %v760, %v761
        %v763 = vand.u32 %v762, 4294901760
        %764 = vmatpush1.msra.mxu0 %v763
        %765 = vmatprep.subr.mxu0 0.0
        %766 = vmatpush2.msra.mxu0 0.0
        %767 = vmatprep.subr.mxu0 0.0
        %768 = vmatpush2.msra.mxu0 0.0
        %769 = vmatprep.subr.mxu0 0.0
        %770 = vmatpush2.msra.mxu0 0.0
        %771 = vmatprep.subr.mxu0 0.0
        %772 = vmatpush2.msra.mxu0 0.0
        %773 = vmatprep.subr.mxu0 0.0
        %774 = vmatpush2.msra.mxu0 0.0
        %775 = vmatprep.subr.mxu0 0.0
        %776 = vmatpush2.msra.mxu0 0.0
        %777 = vmatprep.subr.mxu0 0.0
        %778 = vmatpush2.msra.mxu0 0.0
        %779 = vmatprep.subr.mxu0 0.0
        %780 = vmatpush2.msra.mxu0 0.0
        %781 = vmatprep.subr.mxu0 0.0
        %782 = vmatpush2.msra.mxu0 0.0
        %783 = vmatprep.subr.mxu0 0.0
        %784 = vmatpush2.msra.mxu0 0.0
        %785 = vmatprep.subr.mxu0 0.0
        %786 = vmatpush2.msra.mxu0 0.0
        %787 = vmatprep.subr.mxu0 0.0
        %788 = vmatpush2.msra.mxu0 0.0
        %789 = vmatprep.subr.mxu0 0.0
        %790 = vmatpush2.msra.mxu0 0.0
        %791 = vmatprep.subr.mxu0 0.0
        %792 = vmatpush2.msra.mxu0 0.0
        %793 = vmatprep.subr.mxu0 0.0
        %794 = vmatpush2.msra.mxu0 0.0
        %795 = vmatprep.subr.mxu0 0.0
        %796 = vmatpush2.msra.mxu0 0.0
        %797 = vmatprep.mubr.f32.mxu0 0.0
        %v798 = vand.u32 %v565, 4294901760
        %799 = vmatmul.mubr.f32.gmra.mxu0 %v798
        %v800 = vpop.f32.mrf.mxu0
        %v801 = vadd.f32 %v656, %v800
        %v802 = vpop.f32.mrf.mxu0
        %v803 = vadd.f32 %v658, %v802
        %804 = vmatprep.mubr.f32.mxu0 0.0
        %v805 = vand.u32 %v568, 4294901760
        %806 = vmatmul.mubr.f32.gmra.mxu0 %v805
        %v807 = vpop.f32.mrf.mxu0
        %v808 = vadd.f32 %v667, %v807
        %v809 = vpop.f32.mrf.mxu0
        %v810 = vadd.f32 %v669, %v809
        %811 = vmatprep.mubr.f32.mxu0 0.0
        %v812 = vand.u32 %v571, 4294901760
        %813 = vmatmul.mubr.f32.gmra.mxu0 %v812
        %v814 = vpop.f32.mrf.mxu0
        %v815 = vadd.f32 %v678, %v814
        %v816 = vpop.f32.mrf.mxu0
        %v817 = vadd.f32 %v680, %v816
        %818 = vmatprep.mubr.f32.mxu0 0.0
        %v819 = vand.u32 %v574, 4294901760
        %820 = vmatmul.mubr.f32.gmra.mxu0 %v819
        %v821 = vpop.f32.mrf.mxu0
        %v822 = vadd.f32 %v689, %v821
        %v823 = vpop.f32.mrf.mxu0
        %v824 = vadd.f32 %v691, %v823
        %825 = vdwg.mxu0
        %826 = vmatprep.subr.mxu0 0.0
        %827 = vmatpush1.msra.mxu0 0.0
        %828 = vmatprep.subr.mxu0 0.0
        %829 = vmatpush1.msra.mxu0 0.0
        %830 = vmatprep.subr.mxu0 0.0
        %831 = vmatpush1.msra.mxu0 0.0
        %832 = vmatprep.subr.mxu0 0.0
        %833 = vmatpush1.msra.mxu0 0.0
        %834 = vmatprep.subr.mxu0 0.0
        %835 = vmatpush1.msra.mxu0 0.0
        %836 = vmatprep.subr.mxu0 0.0
        %837 = vmatpush1.msra.mxu0 0.0
        %838 = vmatprep.subr.mxu0 0.0
        %839 = vmatpush1.msra.mxu0 0.0
        %840 = vmatprep.subr.mxu0 0.0
        %841 = vmatpush1.msra.mxu0 0.0
        %842 = vmatprep.subr.mxu0 0.0
        %843 = vmatpush1.msra.mxu0 0.0
        %844 = vmatprep.subr.mxu0 0.0
        %845 = vmatpush1.msra.mxu0 0.0
        %846 = vmatprep.subr.mxu0 0.0
        %847 = vmatpush1.msra.mxu0 0.0
        %848 = vmatprep.subr.mxu0 0.0
        %849 = vmatpush1.msra.mxu0 0.0
        %v850 = vand.u32 %v532, 4294901760
        %v851 = vsub.f32 %v532, %v850
        %852 = vmatprep.subr.mxu0 %v851
        %v853 = vand.u32 %v531, 4294901760
        %v854 = vsub.f32 %v531, %v853
        %855 = vmatpush1.msra.mxu0 %v854
        %v856 = vand.u32 %v528, 4294901760
        %v857 = vsub.f32 %v528, %v856
        %858 = vmatprep.subr.mxu0 %v857
        %v859 = vand.u32 %v527, 4294901760
        %v860 = vsub.f32 %v527, %v859
        %861 = vmatpush1.msra.mxu0 %v860
        %v862 = vand.u32 %v524, 4294901760
        %v863 = vsub.f32 %v524, %v862
        %864 = vmatprep.subr.mxu0 %v863
        %v865 = vand.u32 %v523, 4294901760
        %v866 = vsub.f32 %v523, %v865
        %867 = vmatpush1.msra.mxu0 %v866
        %v868 = vand.u32 %v520, 4294901760
        %v869 = vsub.f32 %v520, %v868
        %870 = vmatprep.subr.mxu0 %v869
        %v871 = vand.u32 %v519, 4294901760
        %v872 = vsub.f32 %v519, %v871
        %873 = vmatpush1.msra.mxu0 %v872
        %874 = vmatprep.subr.mxu0 0.0
        %875 = vmatpush2.msra.mxu0 0.0
        %876 = vmatprep.subr.mxu0 0.0
        %877 = vmatpush2.msra.mxu0 0.0
        %878 = vmatprep.subr.mxu0 0.0
        %879 = vmatpush2.msra.mxu0 0.0
        %880 = vmatprep.subr.mxu0 0.0
        %881 = vmatpush2.msra.mxu0 0.0
        %882 = vmatprep.subr.mxu0 0.0
        %883 = vmatpush2.msra.mxu0 0.0
        %884 = vmatprep.subr.mxu0 0.0
        %885 = vmatpush2.msra.mxu0 0.0
        %886 = vmatprep.subr.mxu0 0.0
        %887 = vmatpush2.msra.mxu0 0.0
        %888 = vmatprep.subr.mxu0 0.0
        %889 = vmatpush2.msra.mxu0 0.0
        %890 = vmatprep.subr.mxu0 0.0
        %891 = vmatpush2.msra.mxu0 0.0
        %892 = vmatprep.subr.mxu0 0.0
        %893 = vmatpush2.msra.mxu0 0.0
        %894 = vmatprep.subr.mxu0 0.0
        %895 = vmatpush2.msra.mxu0 0.0
        %896 = vmatprep.subr.mxu0 0.0
        %897 = vmatpush2.msra.mxu0 0.0
        %898 = vmatprep.subr.mxu0 0.0
        %899 = vmatpush2.msra.mxu0 0.0
        %900 = vmatprep.subr.mxu0 0.0
        %901 = vmatpush2.msra.mxu0 0.0
        %902 = vmatprep.subr.mxu0 0.0
        %903 = vmatpush2.msra.mxu0 0.0
        %904 = vmatprep.subr.mxu0 0.0
        %905 = vmatpush2.msra.mxu0 0.0
        %906 = vmatprep.mubr.f32.mxu0 0.0
        %v907 = vand.u32 %v565, 4294901760
        %v908 = vsub.f32 %v565, %v907
        %909 = vmatmul.mubr.f32.gmra.mxu0 %v908
        %v910 = vpop.f32.mrf.mxu0
        %v911 = vadd.f32 %v801, %v910
        %v912 = vpop.f32.mrf.mxu0
        %v913 = vadd.f32 %v803, %v912
        %914 = vmatprep.mubr.f32.mxu0 0.0
        %v915 = vand.u32 %v568, 4294901760
        %v916 = vsub.f32 %v568, %v915
        %917 = vmatmul.mubr.f32.gmra.mxu0 %v916
        %v918 = vpop.f32.mrf.mxu0
        %v919 = vadd.f32 %v808, %v918
        %v920 = vpop.f32.mrf.mxu0
        %v921 = vadd.f32 %v810, %v920
        %922 = vmatprep.mubr.f32.mxu0 0.0
        %v923 = vand.u32 %v571, 4294901760
        %v924 = vsub.f32 %v571, %v923
        %925 = vmatmul.mubr.f32.gmra.mxu0 %v924
        %v926 = vpop.f32.mrf.mxu0
        %v927 = vadd.f32 %v815, %v926
        %v928 = vpop.f32.mrf.mxu0
        %v929 = vadd.f32 %v817, %v928
        %930 = vmatprep.mubr.f32.mxu0 0.0
        %v931 = vand.u32 %v574, 4294901760
        %v932 = vsub.f32 %v574, %v931
        %933 = vmatmul.mubr.f32.gmra.mxu0 %v932
        %v934 = vpop.f32.mrf.mxu0
        %v935 = vadd.f32 %v822, %v934
        %v936 = vpop.f32.mrf.mxu0
        %v937 = vadd.f32 %v824, %v936
        %938 = vdwg.mxu0
        %939 = vmatprep.subr.mxu0 0.0
        %940 = vmatpush1.msra.mxu0 0.0
        %941 = vmatprep.subr.mxu0 0.0
        %942 = vmatpush1.msra.mxu0 0.0
        %943 = vmatprep.subr.mxu0 0.0
        %944 = vmatpush1.msra.mxu0 0.0
        %945 = vmatprep.subr.mxu0 0.0
        %946 = vmatpush1.msra.mxu0 0.0
        %947 = vmatprep.subr.mxu0 0.0
        %948 = vmatpush1.msra.mxu0 0.0
        %949 = vmatprep.subr.mxu0 0.0
        %950 = vmatpush1.msra.mxu0 0.0
        %951 = vmatprep.subr.mxu0 0.0
        %952 = vmatpush1.msra.mxu0 0.0
        %953 = vmatprep.subr.mxu0 0.0
        %954 = vmatpush1.msra.mxu0 0.0
        %955 = vmatprep.subr.mxu0 0.0
        %956 = vmatpush1.msra.mxu0 0.0
        %957 = vmatprep.subr.mxu0 0.0
        %958 = vmatpush1.msra.mxu0 0.0
        %959 = vmatprep.subr.mxu0 0.0
        %960 = vmatpush1.msra.mxu0 0.0
        %961 = vmatprep.subr.mxu0 0.0
        %962 = vmatpush1.msra.mxu0 0.0
        %v963 = vand.u32 %v532, 4294901760
        %964 = vmatprep.subr.mxu0 %v963
        %v965 = vand.u32 %v531, 4294901760
        %966 = vmatpush1.msra.mxu0 %v965
        %v967 = vand.u32 %v528, 4294901760
        %968 = vmatprep.subr.mxu0 %v967
        %v969 = vand.u32 %v527, 4294901760
        %970 = vmatpush1.msra.mxu0 %v969
        %v971 = vand.u32 %v524, 4294901760
        %972 = vmatprep.subr.mxu0 %v971
        %v973 = vand.u32 %v523, 4294901760
        %974 = vmatpush1.msra.mxu0 %v973
        %v975 = vand.u32 %v520, 4294901760
        %976 = vmatprep.subr.mxu0 %v975
        %v977 = vand.u32 %v519, 4294901760
        %978 = vmatpush1.msra.mxu0 %v977
        %979 = vmatprep.subr.mxu0 0.0
        %980 = vmatpush2.msra.mxu0 0.0
        %981 = vmatprep.subr.mxu0 0.0
        %982 = vmatpush2.msra.mxu0 0.0
        %983 = vmatprep.subr.mxu0 0.0
        %984 = vmatpush2.msra.mxu0 0.0
        %985 = vmatprep.subr.mxu0 0.0
        %986 = vmatpush2.msra.mxu0 0.0
        %987 = vmatprep.subr.mxu0 0.0
        %988 = vmatpush2.msra.mxu0 0.0
        %989 = vmatprep.subr.mxu0 0.0
        %990 = vmatpush2.msra.mxu0 0.0
        %991 = vmatprep.subr.mxu0 0.0
        %992 = vmatpush2.msra.mxu0 0.0
        %993 = vmatprep.subr.mxu0 0.0
        %994 = vmatpush2.msra.mxu0 0.0
        %995 = vmatprep.subr.mxu0 0.0
        %996 = vmatpush2.msra.mxu0 0.0
        %997 = vmatprep.subr.mxu0 0.0
        %998 = vmatpush2.msra.mxu0 0.0
        %999 = vmatprep.subr.mxu0 0.0
        %1000 = vmatpush2.msra.mxu0 0.0
        %1001 = vmatprep.subr.mxu0 0.0
        %1002 = vmatpush2.msra.mxu0 0.0
        %1003 = vmatprep.subr.mxu0 0.0
        %1004 = vmatpush2.msra.mxu0 0.0
        %1005 = vmatprep.subr.mxu0 0.0
        %1006 = vmatpush2.msra.mxu0 0.0
        %1007 = vmatprep.subr.mxu0 0.0
        %1008 = vmatpush2.msra.mxu0 0.0
        %1009 = vmatprep.subr.mxu0 0.0
        %1010 = vmatpush2.msra.mxu0 0.0
        %1011 = vmatprep.mubr.f32.mxu0 0.0
        %v1012 = vand.u32 %v565, 4294901760
        %v1013 = vsub.f32 %v565, %v1012
        %v1014 = vand.u32 %v1013, 4294901760
        %1015 = vmatmul.mubr.f32.gmra.mxu0 %v1014
        %v1016 = vpop.f32.mrf.mxu0
        %v1017 = vadd.f32 %v911, %v1016
        %v1018 = vpop.f32.mrf.mxu0
        %v1019 = vadd.f32 %v913, %v1018
        %1020 = vmatprep.mubr.f32.mxu0 0.0
        %v1021 = vand.u32 %v568, 4294901760
        %v1022 = vsub.f32 %v568, %v1021
        %v1023 = vand.u32 %v1022, 4294901760
        %1024 = vmatmul.mubr.f32.gmra.mxu0 %v1023
        %v1025 = vpop.f32.mrf.mxu0
        %v1026 = vadd.f32 %v919, %v1025
        %v1027 = vpop.f32.mrf.mxu0
        %v1028 = vadd.f32 %v921, %v1027
        %1029 = vmatprep.mubr.f32.mxu0 0.0
        %v1030 = vand.u32 %v571, 4294901760
        %v1031 = vsub.f32 %v571, %v1030
        %v1032 = vand.u32 %v1031, 4294901760
        %1033 = vmatmul.mubr.f32.gmra.mxu0 %v1032
        %v1034 = vpop.f32.mrf.mxu0
        %v1035 = vadd.f32 %v927, %v1034
        %v1036 = vpop.f32.mrf.mxu0
        %v1037 = vadd.f32 %v929, %v1036
        %1038 = vmatprep.mubr.f32.mxu0 0.0
        %v1039 = vand.u32 %v574, 4294901760
        %v1040 = vsub.f32 %v574, %v1039
        %v1041 = vand.u32 %v1040, 4294901760
        %1042 = vmatmul.mubr.f32.gmra.mxu0 %v1041
        %v1043 = vpop.f32.mrf.mxu0
        %v1044 = vadd.f32 %v935, %v1043
        %v1045 = vpop.f32.mrf.mxu0
        %v1046 = vadd.f32 %v937, %v1045
        %1047 = vdwg.mxu0
        %1048 = vmatprep.subr.mxu0 0.0
        %1049 = vmatpush1.msra.mxu0 0.0
        %1050 = vmatprep.subr.mxu0 0.0
        %1051 = vmatpush1.msra.mxu0 0.0
        %1052 = vmatprep.subr.mxu0 0.0
        %1053 = vmatpush1.msra.mxu0 0.0
        %1054 = vmatprep.subr.mxu0 0.0
        %1055 = vmatpush1.msra.mxu0 0.0
        %1056 = vmatprep.subr.mxu0 0.0
        %1057 = vmatpush1.msra.mxu0 0.0
        %1058 = vmatprep.subr.mxu0 0.0
        %1059 = vmatpush1.msra.mxu0 0.0
        %1060 = vmatprep.subr.mxu0 0.0
        %1061 = vmatpush1.msra.mxu0 0.0
        %1062 = vmatprep.subr.mxu0 0.0
        %1063 = vmatpush1.msra.mxu0 0.0
        %1064 = vmatprep.subr.mxu0 0.0
        %1065 = vmatpush1.msra.mxu0 0.0
        %1066 = vmatprep.subr.mxu0 0.0
        %1067 = vmatpush1.msra.mxu0 0.0
        %1068 = vmatprep.subr.mxu0 0.0
        %1069 = vmatpush1.msra.mxu0 0.0
        %1070 = vmatprep.subr.mxu0 0.0
        %1071 = vmatpush1.msra.mxu0 0.0
        %v1072 = vand.u32 %v532, 4294901760
        %v1073 = vsub.f32 %v532, %v1072
        %v1074 = vand.u32 %v1073, 4294901760
        %1075 = vmatprep.subr.mxu0 %v1074
        %v1076 = vand.u32 %v531, 4294901760
        %v1077 = vsub.f32 %v531, %v1076
        %v1078 = vand.u32 %v1077, 4294901760
        %1079 = vmatpush1.msra.mxu0 %v1078
        %v1080 = vand.u32 %v528, 4294901760
        %v1081 = vsub.f32 %v528, %v1080
        %v1082 = vand.u32 %v1081, 4294901760
        %1083 = vmatprep.subr.mxu0 %v1082
        %v1084 = vand.u32 %v527, 4294901760
        %v1085 = vsub.f32 %v527, %v1084
        %v1086 = vand.u32 %v1085, 4294901760
        %1087 = vmatpush1.msra.mxu0 %v1086
        %v1088 = vand.u32 %v524, 4294901760
        %v1089 = vsub.f32 %v524, %v1088
        %v1090 = vand.u32 %v1089, 4294901760
        %1091 = vmatprep.subr.mxu0 %v1090
        %v1092 = vand.u32 %v523, 4294901760
        %v1093 = vsub.f32 %v523, %v1092
        %v1094 = vand.u32 %v1093, 4294901760
        %1095 = vmatpush1.msra.mxu0 %v1094
        %v1096 = vand.u32 %v520, 4294901760
        %v1097 = vsub.f32 %v520, %v1096
        %v1098 = vand.u32 %v1097, 4294901760
        %1099 = vmatprep.subr.mxu0 %v1098
        %v1100 = vand.u32 %v519, 4294901760
        %v1101 = vsub.f32 %v519, %v1100
        %v1102 = vand.u32 %v1101, 4294901760
        %1103 = vmatpush1.msra.mxu0 %v1102
        %1104 = vmatprep.subr.mxu0 0.0
        %1105 = vmatpush2.msra.mxu0 0.0
        %1106 = vmatprep.subr.mxu0 0.0
        %1107 = vmatpush2.msra.mxu0 0.0
        %1108 = vmatprep.subr.mxu0 0.0
        %1109 = vmatpush2.msra.mxu0 0.0
        %1110 = vmatprep.subr.mxu0 0.0
        %1111 = vmatpush2.msra.mxu0 0.0
        %1112 = vmatprep.subr.mxu0 0.0
        %1113 = vmatpush2.msra.mxu0 0.0
        %1114 = vmatprep.subr.mxu0 0.0
        %1115 = vmatpush2.msra.mxu0 0.0
        %1116 = vmatprep.subr.mxu0 0.0
        %1117 = vmatpush2.msra.mxu0 0.0
        %1118 = vmatprep.subr.mxu0 0.0
        %1119 = vmatpush2.msra.mxu0 0.0
        %1120 = vmatprep.subr.mxu0 0.0
        %1121 = vmatpush2.msra.mxu0 0.0
        %1122 = vmatprep.subr.mxu0 0.0
        %1123 = vmatpush2.msra.mxu0 0.0
        %1124 = vmatprep.subr.mxu0 0.0
        %1125 = vmatpush2.msra.mxu0 0.0
        %1126 = vmatprep.subr.mxu0 0.0
        %1127 = vmatpush2.msra.mxu0 0.0
        %1128 = vmatprep.subr.mxu0 0.0
        %1129 = vmatpush2.msra.mxu0 0.0
        %1130 = vmatprep.subr.mxu0 0.0
        %1131 = vmatpush2.msra.mxu0 0.0
        %1132 = vmatprep.subr.mxu0 0.0
        %1133 = vmatpush2.msra.mxu0 0.0
        %1134 = vmatprep.subr.mxu0 0.0
        %1135 = vmatpush2.msra.mxu0 0.0
        %1136 = vmatprep.mubr.f32.mxu0 0.0
        %v1137 = vand.u32 %v565, 4294901760
        %1138 = vmatmul.mubr.f32.gmra.mxu0 %v1137
        %v1139 = vpop.f32.mrf.mxu0
        %v1140 = vadd.f32 %v1017, %v1139
        %v1141 = vpop.f32.mrf.mxu0
        %v1142 = vadd.f32 %v1019, %v1141
        %1143 = vmatprep.mubr.f32.mxu0 0.0
        %v1144 = vand.u32 %v568, 4294901760
        %1145 = vmatmul.mubr.f32.gmra.mxu0 %v1144
        %v1146 = vpop.f32.mrf.mxu0
        %v1147 = vadd.f32 %v1026, %v1146
        %v1148 = vpop.f32.mrf.mxu0
        %v1149 = vadd.f32 %v1028, %v1148
        %1150 = vmatprep.mubr.f32.mxu0 0.0
        %v1151 = vand.u32 %v571, 4294901760
        %1152 = vmatmul.mubr.f32.gmra.mxu0 %v1151
        %v1153 = vpop.f32.mrf.mxu0
        %v1154 = vadd.f32 %v1035, %v1153
        %v1155 = vpop.f32.mrf.mxu0
        %v1156 = vadd.f32 %v1037, %v1155
        %1157 = vmatprep.mubr.f32.mxu0 0.0
        %v1158 = vand.u32 %v574, 4294901760
        %1159 = vmatmul.mubr.f32.gmra.mxu0 %v1158
        %v1160 = vpop.f32.mrf.mxu0
        %v1161 = vadd.f32 %v1044, %v1160
        %v1162 = vpop.f32.mrf.mxu0
        %v1163 = vadd.f32 %v1046, %v1162
        %1164 = vdwg.mxu0
        %1165 = vmatprep.subr.mxu0 0.0
        %1166 = vmatpush1.msra.mxu0 0.0
        %1167 = vmatprep.subr.mxu0 0.0
        %1168 = vmatpush1.msra.mxu0 0.0
        %1169 = vmatprep.subr.mxu0 0.0
        %1170 = vmatpush1.msra.mxu0 0.0
        %1171 = vmatprep.subr.mxu0 0.0
        %1172 = vmatpush1.msra.mxu0 0.0
        %1173 = vmatprep.subr.mxu0 0.0
        %1174 = vmatpush1.msra.mxu0 0.0
        %1175 = vmatprep.subr.mxu0 0.0
        %1176 = vmatpush1.msra.mxu0 0.0
        %1177 = vmatprep.subr.mxu0 0.0
        %1178 = vmatpush1.msra.mxu0 0.0
        %1179 = vmatprep.subr.mxu0 0.0
        %1180 = vmatpush1.msra.mxu0 0.0
        %1181 = vmatprep.subr.mxu0 0.0
        %1182 = vmatpush1.msra.mxu0 0.0
        %1183 = vmatprep.subr.mxu0 0.0
        %1184 = vmatpush1.msra.mxu0 0.0
        %1185 = vmatprep.subr.mxu0 0.0
        %1186 = vmatpush1.msra.mxu0 0.0
        %1187 = vmatprep.subr.mxu0 0.0
        %1188 = vmatpush1.msra.mxu0 0.0
        %v1189 = vand.u32 %v532, 4294901760
        %1190 = vmatprep.subr.mxu0 %v1189
        %v1191 = vand.u32 %v531, 4294901760
        %1192 = vmatpush1.msra.mxu0 %v1191
        %v1193 = vand.u32 %v528, 4294901760
        %1194 = vmatprep.subr.mxu0 %v1193
        %v1195 = vand.u32 %v527, 4294901760
        %1196 = vmatpush1.msra.mxu0 %v1195
        %v1197 = vand.u32 %v524, 4294901760
        %1198 = vmatprep.subr.mxu0 %v1197
        %v1199 = vand.u32 %v523, 4294901760
        %1200 = vmatpush1.msra.mxu0 %v1199
        %v1201 = vand.u32 %v520, 4294901760
        %1202 = vmatprep.subr.mxu0 %v1201
        %v1203 = vand.u32 %v519, 4294901760
        %1204 = vmatpush1.msra.mxu0 %v1203
        %1205 = vmatprep.subr.mxu0 0.0
        %1206 = vmatpush2.msra.mxu0 0.0
        %1207 = vmatprep.subr.mxu0 0.0
        %1208 = vmatpush2.msra.mxu0 0.0
        %1209 = vmatprep.subr.mxu0 0.0
        %1210 = vmatpush2.msra.mxu0 0.0
        %1211 = vmatprep.subr.mxu0 0.0
        %1212 = vmatpush2.msra.mxu0 0.0
        %1213 = vmatprep.subr.mxu0 0.0
        %1214 = vmatpush2.msra.mxu0 0.0
        %1215 = vmatprep.subr.mxu0 0.0
        %1216 = vmatpush2.msra.mxu0 0.0
        %1217 = vmatprep.subr.mxu0 0.0
        %1218 = vmatpush2.msra.mxu0 0.0
        %1219 = vmatprep.subr.mxu0 0.0
        %1220 = vmatpush2.msra.mxu0 0.0
        %1221 = vmatprep.subr.mxu0 0.0
        %1222 = vmatpush2.msra.mxu0 0.0
        %1223 = vmatprep.subr.mxu0 0.0
        %1224 = vmatpush2.msra.mxu0 0.0
        %1225 = vmatprep.subr.mxu0 0.0
        %1226 = vmatpush2.msra.mxu0 0.0
        %1227 = vmatprep.subr.mxu0 0.0
        %1228 = vmatpush2.msra.mxu0 0.0
        %1229 = vmatprep.subr.mxu0 0.0
        %1230 = vmatpush2.msra.mxu0 0.0
        %1231 = vmatprep.subr.mxu0 0.0
        %1232 = vmatpush2.msra.mxu0 0.0
        %1233 = vmatprep.subr.mxu0 0.0
        %1234 = vmatpush2.msra.mxu0 0.0
        %1235 = vmatprep.subr.mxu0 0.0
        %1236 = vmatpush2.msra.mxu0 0.0
        %1237 = vmatprep.mubr.f32.mxu0 0.0
        %v1238 = vand.u32 %v565, 4294901760
        %1239 = vmatmul.mubr.f32.gmra.mxu0 %v1238
        %v1240 = vpop.f32.mrf.mxu0
        %v1241 = vadd.f32 %v1140, %v1240
        %v1242 = vpop.f32.mrf.mxu0
        %v1243 = vadd.f32 %v1142, %v1242
        %1244 = vmatprep.mubr.f32.mxu0 0.0
        %v1245 = vand.u32 %v568, 4294901760
        %1246 = vmatmul.mubr.f32.gmra.mxu0 %v1245
        %v1247 = vpop.f32.mrf.mxu0
        %v1248 = vadd.f32 %v1147, %v1247
        %v1249 = vpop.f32.mrf.mxu0
        %v1250 = vadd.f32 %v1149, %v1249
        %1251 = vmatprep.mubr.f32.mxu0 0.0
        %v1252 = vand.u32 %v571, 4294901760
        %1253 = vmatmul.mubr.f32.gmra.mxu0 %v1252
        %v1254 = vpop.f32.mrf.mxu0
        %v1255 = vadd.f32 %v1154, %v1254
        %v1256 = vpop.f32.mrf.mxu0
        %v1257 = vadd.f32 %v1156, %v1256
        %1258 = vmatprep.mubr.f32.mxu0 0.0
        %v1259 = vand.u32 %v574, 4294901760
        %1260 = vmatmul.mubr.f32.gmra.mxu0 %v1259
        %v1261 = vpop.f32.mrf.mxu0
        %v1262 = vadd.f32 %v1161, %v1261
        %v1263 = vpop.f32.mrf.mxu0
        %v1264 = vadd.f32 %v1163, %v1263
        %1265 = vdwg.mxu0
        %1266 = vmatprep.subr.mxu0 0.0
        %1267 = vmatpush1.msra.mxu0 0.0
        %1268 = vmatprep.subr.mxu0 0.0
        %1269 = vmatpush1.msra.mxu0 0.0
        %1270 = vmatprep.subr.mxu0 0.0
        %1271 = vmatpush1.msra.mxu0 0.0
        %1272 = vmatprep.subr.mxu0 0.0
        %1273 = vmatpush1.msra.mxu0 0.0
        %1274 = vmatprep.subr.mxu0 0.0
        %1275 = vmatpush1.msra.mxu0 0.0
        %1276 = vmatprep.subr.mxu0 0.0
        %1277 = vmatpush1.msra.mxu0 0.0
        %1278 = vmatprep.subr.mxu0 0.0
        %1279 = vmatpush1.msra.mxu0 0.0
        %1280 = vmatprep.subr.mxu0 0.0
        %1281 = vmatpush1.msra.mxu0 0.0
        %1282 = vmatprep.subr.mxu0 0.0
        %1283 = vmatpush1.msra.mxu0 0.0
        %1284 = vmatprep.subr.mxu0 0.0
        %1285 = vmatpush1.msra.mxu0 0.0
        %1286 = vmatprep.subr.mxu0 0.0
        %1287 = vmatpush1.msra.mxu0 0.0
        %1288 = vmatprep.subr.mxu0 0.0
        %1289 = vmatpush1.msra.mxu0 0.0
        %v1290 = vand.u32 %v534, 4294901760
        %1291 = vmatprep.subr.mxu0 %v1290
        %v1292 = vand.u32 %v533, 4294901760
        %1293 = vmatpush1.msra.mxu0 %v1292
        %v1294 = vand.u32 %v530, 4294901760
        %1295 = vmatprep.subr.mxu0 %v1294
        %v1296 = vand.u32 %v529, 4294901760
        %1297 = vmatpush1.msra.mxu0 %v1296
        %v1298 = vand.u32 %v526, 4294901760
        %1299 = vmatprep.subr.mxu0 %v1298
        %v1300 = vand.u32 %v525, 4294901760
        %1301 = vmatpush1.msra.mxu0 %v1300
        %v1302 = vand.u32 %v522, 4294901760
        %1303 = vmatprep.subr.mxu0 %v1302
        %v1304 = vand.u32 %v521, 4294901760
        %1305 = vmatpush1.msra.mxu0 %v1304
        %1306 = vmatprep.subr.mxu0 0.0
        %1307 = vmatpush2.msra.mxu0 0.0
        %1308 = vmatprep.subr.mxu0 0.0
        %1309 = vmatpush2.msra.mxu0 0.0
        %1310 = vmatprep.subr.mxu0 0.0
        %1311 = vmatpush2.msra.mxu0 0.0
        %1312 = vmatprep.subr.mxu0 0.0
        %1313 = vmatpush2.msra.mxu0 0.0
        %1314 = vmatprep.subr.mxu0 0.0
        %1315 = vmatpush2.msra.mxu0 0.0
        %1316 = vmatprep.subr.mxu0 0.0
        %1317 = vmatpush2.msra.mxu0 0.0
        %1318 = vmatprep.subr.mxu0 0.0
        %1319 = vmatpush2.msra.mxu0 0.0
        %1320 = vmatprep.subr.mxu0 0.0
        %1321 = vmatpush2.msra.mxu0 0.0
        %1322 = vmatprep.subr.mxu0 0.0
        %1323 = vmatpush2.msra.mxu0 0.0
        %1324 = vmatprep.subr.mxu0 0.0
        %1325 = vmatpush2.msra.mxu0 0.0
        %1326 = vmatprep.subr.mxu0 0.0
        %1327 = vmatpush2.msra.mxu0 0.0
        %1328 = vmatprep.subr.mxu0 0.0
        %1329 = vmatpush2.msra.mxu0 0.0
        %1330 = vmatprep.subr.mxu0 0.0
        %1331 = vmatpush2.msra.mxu0 0.0
        %1332 = vmatprep.subr.mxu0 0.0
        %1333 = vmatpush2.msra.mxu0 0.0
        %1334 = vmatprep.subr.mxu0 0.0
        %1335 = vmatpush2.msra.mxu0 0.0
        %1336 = vmatprep.subr.mxu0 0.0
        %1337 = vmatpush2.msra.mxu0 0.0
        %1338 = vmatprep.mubr.f32.mxu0 0.0
        %v1339 = vand.u32 %v565, 4294901760
        %v1340 = vsub.f32 %v565, %v1339
        %v1341 = vand.u32 %v1340, 4294901760
        %v1342 = vsub.f32 %v1340, %v1341
        %v1343 = vand.u32 %v1342, 4294901760
        %1344 = vmatmul.mubr.f32.gmra.mxu0 %v1343
        %v1345 = vpop.f32.mrf.mxu0
        %v1346 = vadd.f32 %v546, %v1345
        %v1347 = vpop.f32.mrf.mxu0
        %v1348 = vadd.f32 %v546, %v1347
        %1349 = vmatprep.mubr.f32.mxu0 0.0
        %v1350 = vand.u32 %v568, 4294901760
        %v1351 = vsub.f32 %v568, %v1350
        %v1352 = vand.u32 %v1351, 4294901760
        %v1353 = vsub.f32 %v1351, %v1352
        %v1354 = vand.u32 %v1353, 4294901760
        %1355 = vmatmul.mubr.f32.gmra.mxu0 %v1354
        %v1356 = vpop.f32.mrf.mxu0
        %v1357 = vadd.f32 %v551, %v1356
        %v1358 = vpop.f32.mrf.mxu0
        %v1359 = vadd.f32 %v551, %v1358
        %1360 = vmatprep.mubr.f32.mxu0 0.0
        %v1361 = vand.u32 %v571, 4294901760
        %v1362 = vsub.f32 %v571, %v1361
        %v1363 = vand.u32 %v1362, 4294901760
        %v1364 = vsub.f32 %v1362, %v1363
        %v1365 = vand.u32 %v1364, 4294901760
        %1366 = vmatmul.mubr.f32.gmra.mxu0 %v1365
        %v1367 = vpop.f32.mrf.mxu0
        %v1368 = vadd.f32 %v556, %v1367
        %v1369 = vpop.f32.mrf.mxu0
        %v1370 = vadd.f32 %v556, %v1369
        %1371 = vmatprep.mubr.f32.mxu0 0.0
        %v1372 = vand.u32 %v574, 4294901760
        %v1373 = vsub.f32 %v574, %v1372
        %v1374 = vand.u32 %v1373, 4294901760
        %v1375 = vsub.f32 %v1373, %v1374
        %v1376 = vand.u32 %v1375, 4294901760
        %1377 = vmatmul.mubr.f32.gmra.mxu0 %v1376
        %v1378 = vpop.f32.mrf.mxu0
        %v1379 = vadd.f32 %v561, %v1378
        %v1380 = vpop.f32.mrf.mxu0
        %v1381 = vadd.f32 %v561, %v1380
        %1382 = vdwg.mxu0
        %1383 = vmatprep.subr.mxu0 0.0
        %1384 = vmatpush1.msra.mxu0 0.0
        %1385 = vmatprep.subr.mxu0 0.0
        %1386 = vmatpush1.msra.mxu0 0.0
        %1387 = vmatprep.subr.mxu0 0.0
        %1388 = vmatpush1.msra.mxu0 0.0
        %1389 = vmatprep.subr.mxu0 0.0
        %1390 = vmatpush1.msra.mxu0 0.0
        %1391 = vmatprep.subr.mxu0 0.0
        %1392 = vmatpush1.msra.mxu0 0.0
        %1393 = vmatprep.subr.mxu0 0.0
        %1394 = vmatpush1.msra.mxu0 0.0
        %1395 = vmatprep.subr.mxu0 0.0
        %1396 = vmatpush1.msra.mxu0 0.0
        %1397 = vmatprep.subr.mxu0 0.0
        %1398 = vmatpush1.msra.mxu0 0.0
        %1399 = vmatprep.subr.mxu0 0.0
        %1400 = vmatpush1.msra.mxu0 0.0
        %1401 = vmatprep.subr.mxu0 0.0
        %1402 = vmatpush1.msra.mxu0 0.0
        %1403 = vmatprep.subr.mxu0 0.0
        %1404 = vmatpush1.msra.mxu0 0.0
        %1405 = vmatprep.subr.mxu0 0.0
        %1406 = vmatpush1.msra.mxu0 0.0
        %v1407 = vand.u32 %v534, 4294901760
        %v1408 = vsub.f32 %v534, %v1407
        %v1409 = vand.u32 %v1408, 4294901760
        %v1410 = vsub.f32 %v1408, %v1409
        %v1411 = vand.u32 %v1410, 4294901760
        %1412 = vmatprep.subr.mxu0 %v1411
        %v1413 = vand.u32 %v533, 4294901760
        %v1414 = vsub.f32 %v533, %v1413
        %v1415 = vand.u32 %v1414, 4294901760
        %v1416 = vsub.f32 %v1414, %v1415
        %v1417 = vand.u32 %v1416, 4294901760
        %1418 = vmatpush1.msra.mxu0 %v1417
        %v1419 = vand.u32 %v530, 4294901760
        %v1420 = vsub.f32 %v530, %v1419
        %v1421 = vand.u32 %v1420, 4294901760
        %v1422 = vsub.f32 %v1420, %v1421
        %v1423 = vand.u32 %v1422, 4294901760
        %1424 = vmatprep.subr.mxu0 %v1423
        %v1425 = vand.u32 %v529, 4294901760
        %v1426 = vsub.f32 %v529, %v1425
        %v1427 = vand.u32 %v1426, 4294901760
        %v1428 = vsub.f32 %v1426, %v1427
        %v1429 = vand.u32 %v1428, 4294901760
        %1430 = vmatpush1.msra.mxu0 %v1429
        %v1431 = vand.u32 %v526, 4294901760
        %v1432 = vsub.f32 %v526, %v1431
        %v1433 = vand.u32 %v1432, 4294901760
        %v1434 = vsub.f32 %v1432, %v1433
        %v1435 = vand.u32 %v1434, 4294901760
        %1436 = vmatprep.subr.mxu0 %v1435
        %v1437 = vand.u32 %v525, 4294901760
        %v1438 = vsub.f32 %v525, %v1437
        %v1439 = vand.u32 %v1438, 4294901760
        %v1440 = vsub.f32 %v1438, %v1439
        %v1441 = vand.u32 %v1440, 4294901760
        %1442 = vmatpush1.msra.mxu0 %v1441
        %v1443 = vand.u32 %v522, 4294901760
        %v1444 = vsub.f32 %v522, %v1443
        %v1445 = vand.u32 %v1444, 4294901760
        %v1446 = vsub.f32 %v1444, %v1445
        %v1447 = vand.u32 %v1446, 4294901760
        %1448 = vmatprep.subr.mxu0 %v1447
        %v1449 = vand.u32 %v521, 4294901760
        %v1450 = vsub.f32 %v521, %v1449
        %v1451 = vand.u32 %v1450, 4294901760
        %v1452 = vsub.f32 %v1450, %v1451
        %v1453 = vand.u32 %v1452, 4294901760
        %1454 = vmatpush1.msra.mxu0 %v1453
        %1455 = vmatprep.subr.mxu0 0.0
        %1456 = vmatpush2.msra.mxu0 0.0
        %1457 = vmatprep.subr.mxu0 0.0
        %1458 = vmatpush2.msra.mxu0 0.0
        %1459 = vmatprep.subr.mxu0 0.0
        %1460 = vmatpush2.msra.mxu0 0.0
        %1461 = vmatprep.subr.mxu0 0.0
        %1462 = vmatpush2.msra.mxu0 0.0
        %1463 = vmatprep.subr.mxu0 0.0
        %1464 = vmatpush2.msra.mxu0 0.0
        %1465 = vmatprep.subr.mxu0 0.0
        %1466 = vmatpush2.msra.mxu0 0.0
        %1467 = vmatprep.subr.mxu0 0.0
        %1468 = vmatpush2.msra.mxu0 0.0
        %1469 = vmatprep.subr.mxu0 0.0
        %1470 = vmatpush2.msra.mxu0 0.0
        %1471 = vmatprep.subr.mxu0 0.0
        %1472 = vmatpush2.msra.mxu0 0.0
        %1473 = vmatprep.subr.mxu0 0.0
        %1474 = vmatpush2.msra.mxu0 0.0
        %1475 = vmatprep.subr.mxu0 0.0
        %1476 = vmatpush2.msra.mxu0 0.0
        %1477 = vmatprep.subr.mxu0 0.0
        %1478 = vmatpush2.msra.mxu0 0.0
        %1479 = vmatprep.subr.mxu0 0.0
        %1480 = vmatpush2.msra.mxu0 0.0
        %1481 = vmatprep.subr.mxu0 0.0
        %1482 = vmatpush2.msra.mxu0 0.0
        %1483 = vmatprep.subr.mxu0 0.0
        %1484 = vmatpush2.msra.mxu0 0.0
        %1485 = vmatprep.subr.mxu0 0.0
        %1486 = vmatpush2.msra.mxu0 0.0
        %1487 = vmatprep.mubr.f32.mxu0 0.0
        %v1488 = vand.u32 %v565, 4294901760
        %1489 = vmatmul.mubr.f32.gmra.mxu0 %v1488
        %v1490 = vpop.f32.mrf.mxu0
        %v1491 = vadd.f32 %v1346, %v1490
        %v1492 = vpop.f32.mrf.mxu0
        %v1493 = vadd.f32 %v1348, %v1492
        %1494 = vmatprep.mubr.f32.mxu0 0.0
        %v1495 = vand.u32 %v568, 4294901760
        %1496 = vmatmul.mubr.f32.gmra.mxu0 %v1495
        %v1497 = vpop.f32.mrf.mxu0
        %v1498 = vadd.f32 %v1357, %v1497
        %v1499 = vpop.f32.mrf.mxu0
        %v1500 = vadd.f32 %v1359, %v1499
        %1501 = vmatprep.mubr.f32.mxu0 0.0
        %v1502 = vand.u32 %v571, 4294901760
        %1503 = vmatmul.mubr.f32.gmra.mxu0 %v1502
        %v1504 = vpop.f32.mrf.mxu0
        %v1505 = vadd.f32 %v1368, %v1504
        %v1506 = vpop.f32.mrf.mxu0
        %v1507 = vadd.f32 %v1370, %v1506
        %1508 = vmatprep.mubr.f32.mxu0 0.0
        %v1509 = vand.u32 %v574, 4294901760
        %1510 = vmatmul.mubr.f32.gmra.mxu0 %v1509
        %v1511 = vpop.f32.mrf.mxu0
        %v1512 = vadd.f32 %v1379, %v1511
        %v1513 = vpop.f32.mrf.mxu0
        %v1514 = vadd.f32 %v1381, %v1513
        %1515 = vdwg.mxu0
        %1516 = vmatprep.subr.mxu0 0.0
        %1517 = vmatpush1.msra.mxu0 0.0
        %1518 = vmatprep.subr.mxu0 0.0
        %1519 = vmatpush1.msra.mxu0 0.0
        %1520 = vmatprep.subr.mxu0 0.0
        %1521 = vmatpush1.msra.mxu0 0.0
        %1522 = vmatprep.subr.mxu0 0.0
        %1523 = vmatpush1.msra.mxu0 0.0
        %1524 = vmatprep.subr.mxu0 0.0
        %1525 = vmatpush1.msra.mxu0 0.0
        %1526 = vmatprep.subr.mxu0 0.0
        %1527 = vmatpush1.msra.mxu0 0.0
        %1528 = vmatprep.subr.mxu0 0.0
        %1529 = vmatpush1.msra.mxu0 0.0
        %1530 = vmatprep.subr.mxu0 0.0
        %1531 = vmatpush1.msra.mxu0 0.0
        %1532 = vmatprep.subr.mxu0 0.0
        %1533 = vmatpush1.msra.mxu0 0.0
        %1534 = vmatprep.subr.mxu0 0.0
        %1535 = vmatpush1.msra.mxu0 0.0
        %1536 = vmatprep.subr.mxu0 0.0
        %1537 = vmatpush1.msra.mxu0 0.0
        %1538 = vmatprep.subr.mxu0 0.0
        %1539 = vmatpush1.msra.mxu0 0.0
        %v1540 = vand.u32 %v534, 4294901760
        %v1541 = vsub.f32 %v534, %v1540
        %1542 = vmatprep.subr.mxu0 %v1541
        %v1543 = vand.u32 %v533, 4294901760
        %v1544 = vsub.f32 %v533, %v1543
        %1545 = vmatpush1.msra.mxu0 %v1544
        %v1546 = vand.u32 %v530, 4294901760
        %v1547 = vsub.f32 %v530, %v1546
        %1548 = vmatprep.subr.mxu0 %v1547
        %v1549 = vand.u32 %v529, 4294901760
        %v1550 = vsub.f32 %v529, %v1549
        %1551 = vmatpush1.msra.mxu0 %v1550
        %v1552 = vand.u32 %v526, 4294901760
        %v1553 = vsub.f32 %v526, %v1552
        %1554 = vmatprep.subr.mxu0 %v1553
        %v1555 = vand.u32 %v525, 4294901760
        %v1556 = vsub.f32 %v525, %v1555
        %1557 = vmatpush1.msra.mxu0 %v1556
        %v1558 = vand.u32 %v522, 4294901760
        %v1559 = vsub.f32 %v522, %v1558
        %1560 = vmatprep.subr.mxu0 %v1559
        %v1561 = vand.u32 %v521, 4294901760
        %v1562 = vsub.f32 %v521, %v1561
        %1563 = vmatpush1.msra.mxu0 %v1562
        %1564 = vmatprep.subr.mxu0 0.0
        %1565 = vmatpush2.msra.mxu0 0.0
        %1566 = vmatprep.subr.mxu0 0.0
        %1567 = vmatpush2.msra.mxu0 0.0
        %1568 = vmatprep.subr.mxu0 0.0
        %1569 = vmatpush2.msra.mxu0 0.0
        %1570 = vmatprep.subr.mxu0 0.0
        %1571 = vmatpush2.msra.mxu0 0.0
        %1572 = vmatprep.subr.mxu0 0.0
        %1573 = vmatpush2.msra.mxu0 0.0
        %1574 = vmatprep.subr.mxu0 0.0
        %1575 = vmatpush2.msra.mxu0 0.0
        %1576 = vmatprep.subr.mxu0 0.0
        %1577 = vmatpush2.msra.mxu0 0.0
        %1578 = vmatprep.subr.mxu0 0.0
        %1579 = vmatpush2.msra.mxu0 0.0
        %1580 = vmatprep.subr.mxu0 0.0
        %1581 = vmatpush2.msra.mxu0 0.0
        %1582 = vmatprep.subr.mxu0 0.0
        %1583 = vmatpush2.msra.mxu0 0.0
        %1584 = vmatprep.subr.mxu0 0.0
        %1585 = vmatpush2.msra.mxu0 0.0
        %1586 = vmatprep.subr.mxu0 0.0
        %1587 = vmatpush2.msra.mxu0 0.0
        %1588 = vmatprep.subr.mxu0 0.0
        %1589 = vmatpush2.msra.mxu0 0.0
        %1590 = vmatprep.subr.mxu0 0.0
        %1591 = vmatpush2.msra.mxu0 0.0
        %1592 = vmatprep.subr.mxu0 0.0
        %1593 = vmatpush2.msra.mxu0 0.0
        %1594 = vmatprep.subr.mxu0 0.0
        %1595 = vmatpush2.msra.mxu0 0.0
        %1596 = vmatprep.mubr.f32.mxu0 0.0
        %v1597 = vand.u32 %v565, 4294901760
        %v1598 = vsub.f32 %v565, %v1597
        %1599 = vmatmul.mubr.f32.gmra.mxu0 %v1598
        %v1600 = vpop.f32.mrf.mxu0
        %v1601 = vadd.f32 %v1491, %v1600
        %v1602 = vpop.f32.mrf.mxu0
        %v1603 = vadd.f32 %v1493, %v1602
        %1604 = vmatprep.mubr.f32.mxu0 0.0
        %v1605 = vand.u32 %v568, 4294901760
        %v1606 = vsub.f32 %v568, %v1605
        %1607 = vmatmul.mubr.f32.gmra.mxu0 %v1606
        %v1608 = vpop.f32.mrf.mxu0
        %v1609 = vadd.f32 %v1498, %v1608
        %v1610 = vpop.f32.mrf.mxu0
        %v1611 = vadd.f32 %v1500, %v1610
        %1612 = vmatprep.mubr.f32.mxu0 0.0
        %v1613 = vand.u32 %v571, 4294901760
        %v1614 = vsub.f32 %v571, %v1613
        %1615 = vmatmul.mubr.f32.gmra.mxu0 %v1614
        %v1616 = vpop.f32.mrf.mxu0
        %v1617 = vadd.f32 %v1505, %v1616
        %v1618 = vpop.f32.mrf.mxu0
        %v1619 = vadd.f32 %v1507, %v1618
        %1620 = vmatprep.mubr.f32.mxu0 0.0
        %v1621 = vand.u32 %v574, 4294901760
        %v1622 = vsub.f32 %v574, %v1621
        %1623 = vmatmul.mubr.f32.gmra.mxu0 %v1622
        %v1624 = vpop.f32.mrf.mxu0
        %v1625 = vadd.f32 %v1512, %v1624
        %v1626 = vpop.f32.mrf.mxu0
        %v1627 = vadd.f32 %v1514, %v1626
        %1628 = vdwg.mxu0
        %1629 = vmatprep.subr.mxu0 0.0
        %1630 = vmatpush1.msra.mxu0 0.0
        %1631 = vmatprep.subr.mxu0 0.0
        %1632 = vmatpush1.msra.mxu0 0.0
        %1633 = vmatprep.subr.mxu0 0.0
        %1634 = vmatpush1.msra.mxu0 0.0
        %1635 = vmatprep.subr.mxu0 0.0
        %1636 = vmatpush1.msra.mxu0 0.0
        %1637 = vmatprep.subr.mxu0 0.0
        %1638 = vmatpush1.msra.mxu0 0.0
        %1639 = vmatprep.subr.mxu0 0.0
        %1640 = vmatpush1.msra.mxu0 0.0
        %1641 = vmatprep.subr.mxu0 0.0
        %1642 = vmatpush1.msra.mxu0 0.0
        %1643 = vmatprep.subr.mxu0 0.0
        %1644 = vmatpush1.msra.mxu0 0.0
        %1645 = vmatprep.subr.mxu0 0.0
        %1646 = vmatpush1.msra.mxu0 0.0
        %1647 = vmatprep.subr.mxu0 0.0
        %1648 = vmatpush1.msra.mxu0 0.0
        %1649 = vmatprep.subr.mxu0 0.0
        %1650 = vmatpush1.msra.mxu0 0.0
        %1651 = vmatprep.subr.mxu0 0.0
        %1652 = vmatpush1.msra.mxu0 0.0
        %v1653 = vand.u32 %v534, 4294901760
        %1654 = vmatprep.subr.mxu0 %v1653
        %v1655 = vand.u32 %v533, 4294901760
        %1656 = vmatpush1.msra.mxu0 %v1655
        %v1657 = vand.u32 %v530, 4294901760
        %1658 = vmatprep.subr.mxu0 %v1657
        %v1659 = vand.u32 %v529, 4294901760
        %1660 = vmatpush1.msra.mxu0 %v1659
        %v1661 = vand.u32 %v526, 4294901760
        %1662 = vmatprep.subr.mxu0 %v1661
        %v1663 = vand.u32 %v525, 4294901760
        %1664 = vmatpush1.msra.mxu0 %v1663
        %v1665 = vand.u32 %v522, 4294901760
        %1666 = vmatprep.subr.mxu0 %v1665
        %v1667 = vand.u32 %v521, 4294901760
        %1668 = vmatpush1.msra.mxu0 %v1667
        %1669 = vmatprep.subr.mxu0 0.0
        %1670 = vmatpush2.msra.mxu0 0.0
        %1671 = vmatprep.subr.mxu0 0.0
        %1672 = vmatpush2.msra.mxu0 0.0
        %1673 = vmatprep.subr.mxu0 0.0
        %1674 = vmatpush2.msra.mxu0 0.0
        %1675 = vmatprep.subr.mxu0 0.0
        %1676 = vmatpush2.msra.mxu0 0.0
        %1677 = vmatprep.subr.mxu0 0.0
        %1678 = vmatpush2.msra.mxu0 0.0
        %1679 = vmatprep.subr.mxu0 0.0
        %1680 = vmatpush2.msra.mxu0 0.0
        %1681 = vmatprep.subr.mxu0 0.0
        %1682 = vmatpush2.msra.mxu0 0.0
        %1683 = vmatprep.subr.mxu0 0.0
        %1684 = vmatpush2.msra.mxu0 0.0
        %1685 = vmatprep.subr.mxu0 0.0
        %1686 = vmatpush2.msra.mxu0 0.0
        %1687 = vmatprep.subr.mxu0 0.0
        %1688 = vmatpush2.msra.mxu0 0.0
        %1689 = vmatprep.subr.mxu0 0.0
        %1690 = vmatpush2.msra.mxu0 0.0
        %1691 = vmatprep.subr.mxu0 0.0
        %1692 = vmatpush2.msra.mxu0 0.0
        %1693 = vmatprep.subr.mxu0 0.0
        %1694 = vmatpush2.msra.mxu0 0.0
        %1695 = vmatprep.subr.mxu0 0.0
        %1696 = vmatpush2.msra.mxu0 0.0
        %1697 = vmatprep.subr.mxu0 0.0
        %1698 = vmatpush2.msra.mxu0 0.0
        %1699 = vmatprep.subr.mxu0 0.0
        %1700 = vmatpush2.msra.mxu0 0.0
        %1701 = vmatprep.mubr.f32.mxu0 0.0
        %v1702 = vand.u32 %v565, 4294901760
        %v1703 = vsub.f32 %v565, %v1702
        %v1704 = vand.u32 %v1703, 4294901760
        %1705 = vmatmul.mubr.f32.gmra.mxu0 %v1704
        %v1706 = vpop.f32.mrf.mxu0
        %v1707 = vadd.f32 %v1601, %v1706
        %v1708 = vpop.f32.mrf.mxu0
        %v1709 = vadd.f32 %v1603, %v1708
        %1710 = vmatprep.mubr.f32.mxu0 0.0
        %v1711 = vand.u32 %v568, 4294901760
        %v1712 = vsub.f32 %v568, %v1711
        %v1713 = vand.u32 %v1712, 4294901760
        %1714 = vmatmul.mubr.f32.gmra.mxu0 %v1713
        %v1715 = vpop.f32.mrf.mxu0
        %v1716 = vadd.f32 %v1609, %v1715
        %v1717 = vpop.f32.mrf.mxu0
        %v1718 = vadd.f32 %v1611, %v1717
        %1719 = vmatprep.mubr.f32.mxu0 0.0
        %v1720 = vand.u32 %v571, 4294901760
        %v1721 = vsub.f32 %v571, %v1720
        %v1722 = vand.u32 %v1721, 4294901760
        %1723 = vmatmul.mubr.f32.gmra.mxu0 %v1722
        %v1724 = vpop.f32.mrf.mxu0
        %v1725 = vadd.f32 %v1617, %v1724
        %v1726 = vpop.f32.mrf.mxu0
        %v1727 = vadd.f32 %v1619, %v1726
        %1728 = vmatprep.mubr.f32.mxu0 0.0
        %v1729 = vand.u32 %v574, 4294901760
        %v1730 = vsub.f32 %v574, %v1729
        %v1731 = vand.u32 %v1730, 4294901760
        %1732 = vmatmul.mubr.f32.gmra.mxu0 %v1731
        %v1733 = vpop.f32.mrf.mxu0
        %v1734 = vadd.f32 %v1625, %v1733
        %v1735 = vpop.f32.mrf.mxu0
        %v1736 = vadd.f32 %v1627, %v1735
        %1737 = vdwg.mxu0
        %1738 = vmatprep.subr.mxu0 0.0
        %1739 = vmatpush1.msra.mxu0 0.0
        %1740 = vmatprep.subr.mxu0 0.0
        %1741 = vmatpush1.msra.mxu0 0.0
        %1742 = vmatprep.subr.mxu0 0.0
        %1743 = vmatpush1.msra.mxu0 0.0
        %1744 = vmatprep.subr.mxu0 0.0
        %1745 = vmatpush1.msra.mxu0 0.0
        %1746 = vmatprep.subr.mxu0 0.0
        %1747 = vmatpush1.msra.mxu0 0.0
        %1748 = vmatprep.subr.mxu0 0.0
        %1749 = vmatpush1.msra.mxu0 0.0
        %1750 = vmatprep.subr.mxu0 0.0
        %1751 = vmatpush1.msra.mxu0 0.0
        %1752 = vmatprep.subr.mxu0 0.0
        %1753 = vmatpush1.msra.mxu0 0.0
        %1754 = vmatprep.subr.mxu0 0.0
        %1755 = vmatpush1.msra.mxu0 0.0
        %1756 = vmatprep.subr.mxu0 0.0
        %1757 = vmatpush1.msra.mxu0 0.0
        %1758 = vmatprep.subr.mxu0 0.0
        %1759 = vmatpush1.msra.mxu0 0.0
        %1760 = vmatprep.subr.mxu0 0.0
        %1761 = vmatpush1.msra.mxu0 0.0
        %v1762 = vand.u32 %v534, 4294901760
        %v1763 = vsub.f32 %v534, %v1762
        %v1764 = vand.u32 %v1763, 4294901760
        %1765 = vmatprep.subr.mxu0 %v1764
        %v1766 = vand.u32 %v533, 4294901760
        %v1767 = vsub.f32 %v533, %v1766
        %v1768 = vand.u32 %v1767, 4294901760
        %1769 = vmatpush1.msra.mxu0 %v1768
        %v1770 = vand.u32 %v530, 4294901760
        %v1771 = vsub.f32 %v530, %v1770
        %v1772 = vand.u32 %v1771, 4294901760
        %1773 = vmatprep.subr.mxu0 %v1772
        %v1774 = vand.u32 %v529, 4294901760
        %v1775 = vsub.f32 %v529, %v1774
        %v1776 = vand.u32 %v1775, 4294901760
        %1777 = vmatpush1.msra.mxu0 %v1776
        %v1778 = vand.u32 %v526, 4294901760
        %v1779 = vsub.f32 %v526, %v1778
        %v1780 = vand.u32 %v1779, 4294901760
        %1781 = vmatprep.subr.mxu0 %v1780
        %v1782 = vand.u32 %v525, 4294901760
        %v1783 = vsub.f32 %v525, %v1782
        %v1784 = vand.u32 %v1783, 4294901760
        %1785 = vmatpush1.msra.mxu0 %v1784
        %v1786 = vand.u32 %v522, 4294901760
        %v1787 = vsub.f32 %v522, %v1786
        %v1788 = vand.u32 %v1787, 4294901760
        %1789 = vmatprep.subr.mxu0 %v1788
        %v1790 = vand.u32 %v521, 4294901760
        %v1791 = vsub.f32 %v521, %v1790
        %v1792 = vand.u32 %v1791, 4294901760
        %1793 = vmatpush1.msra.mxu0 %v1792
        %1794 = vmatprep.subr.mxu0 0.0
        %1795 = vmatpush2.msra.mxu0 0.0
        %1796 = vmatprep.subr.mxu0 0.0
        %1797 = vmatpush2.msra.mxu0 0.0
        %1798 = vmatprep.subr.mxu0 0.0
        %1799 = vmatpush2.msra.mxu0 0.0
        %1800 = vmatprep.subr.mxu0 0.0
        %1801 = vmatpush2.msra.mxu0 0.0
        %1802 = vmatprep.subr.mxu0 0.0
        %1803 = vmatpush2.msra.mxu0 0.0
        %1804 = vmatprep.subr.mxu0 0.0
        %1805 = vmatpush2.msra.mxu0 0.0
        %1806 = vmatprep.subr.mxu0 0.0
        %1807 = vmatpush2.msra.mxu0 0.0
        %1808 = vmatprep.subr.mxu0 0.0
        %1809 = vmatpush2.msra.mxu0 0.0
        %1810 = vmatprep.subr.mxu0 0.0
        %1811 = vmatpush2.msra.mxu0 0.0
        %1812 = vmatprep.subr.mxu0 0.0
        %1813 = vmatpush2.msra.mxu0 0.0
        %1814 = vmatprep.subr.mxu0 0.0
        %1815 = vmatpush2.msra.mxu0 0.0
        %1816 = vmatprep.subr.mxu0 0.0
        %1817 = vmatpush2.msra.mxu0 0.0
        %1818 = vmatprep.subr.mxu0 0.0
        %1819 = vmatpush2.msra.mxu0 0.0
        %1820 = vmatprep.subr.mxu0 0.0
        %1821 = vmatpush2.msra.mxu0 0.0
        %1822 = vmatprep.subr.mxu0 0.0
        %1823 = vmatpush2.msra.mxu0 0.0
        %1824 = vmatprep.subr.mxu0 0.0
        %1825 = vmatpush2.msra.mxu0 0.0
        %1826 = vmatprep.mubr.f32.mxu0 0.0
        %v1827 = vand.u32 %v565, 4294901760
        %1828 = vmatmul.mubr.f32.gmra.mxu0 %v1827
        %v1829 = vpop.f32.mrf.mxu0
        %v1830 = vadd.f32 %v1707, %v1829
        %v1831 = vpop.f32.mrf.mxu0
        %v1832 = vadd.f32 %v1709, %v1831
        %1833 = vmatprep.mubr.f32.mxu0 0.0
        %v1834 = vand.u32 %v568, 4294901760
        %1835 = vmatmul.mubr.f32.gmra.mxu0 %v1834
        %v1836 = vpop.f32.mrf.mxu0
        %v1837 = vadd.f32 %v1716, %v1836
        %v1838 = vpop.f32.mrf.mxu0
        %v1839 = vadd.f32 %v1718, %v1838
        %1840 = vmatprep.mubr.f32.mxu0 0.0
        %v1841 = vand.u32 %v571, 4294901760
        %1842 = vmatmul.mubr.f32.gmra.mxu0 %v1841
        %v1843 = vpop.f32.mrf.mxu0
        %v1844 = vadd.f32 %v1725, %v1843
        %v1845 = vpop.f32.mrf.mxu0
        %v1846 = vadd.f32 %v1727, %v1845
        %1847 = vmatprep.mubr.f32.mxu0 0.0
        %v1848 = vand.u32 %v574, 4294901760
        %1849 = vmatmul.mubr.f32.gmra.mxu0 %v1848
        %v1850 = vpop.f32.mrf.mxu0
        %v1851 = vadd.f32 %v1734, %v1850
        %v1852 = vpop.f32.mrf.mxu0
        %v1853 = vadd.f32 %v1736, %v1852
        %1854 = vdwg.mxu0
        %1855 = vmatprep.subr.mxu0 0.0
        %1856 = vmatpush1.msra.mxu0 0.0
        %1857 = vmatprep.subr.mxu0 0.0
        %1858 = vmatpush1.msra.mxu0 0.0
        %1859 = vmatprep.subr.mxu0 0.0
        %1860 = vmatpush1.msra.mxu0 0.0
        %1861 = vmatprep.subr.mxu0 0.0
        %1862 = vmatpush1.msra.mxu0 0.0
        %1863 = vmatprep.subr.mxu0 0.0
        %1864 = vmatpush1.msra.mxu0 0.0
        %1865 = vmatprep.subr.mxu0 0.0
        %1866 = vmatpush1.msra.mxu0 0.0
        %1867 = vmatprep.subr.mxu0 0.0
        %1868 = vmatpush1.msra.mxu0 0.0
        %1869 = vmatprep.subr.mxu0 0.0
        %1870 = vmatpush1.msra.mxu0 0.0
        %1871 = vmatprep.subr.mxu0 0.0
        %1872 = vmatpush1.msra.mxu0 0.0
        %1873 = vmatprep.subr.mxu0 0.0
        %1874 = vmatpush1.msra.mxu0 0.0
        %1875 = vmatprep.subr.mxu0 0.0
        %1876 = vmatpush1.msra.mxu0 0.0
        %1877 = vmatprep.subr.mxu0 0.0
        %1878 = vmatpush1.msra.mxu0 0.0
        %v1879 = vand.u32 %v534, 4294901760
        %1880 = vmatprep.subr.mxu0 %v1879
        %v1881 = vand.u32 %v533, 4294901760
        %1882 = vmatpush1.msra.mxu0 %v1881
        %v1883 = vand.u32 %v530, 4294901760
        %1884 = vmatprep.subr.mxu0 %v1883
        %v1885 = vand.u32 %v529, 4294901760
        %1886 = vmatpush1.msra.mxu0 %v1885
        %v1887 = vand.u32 %v526, 4294901760
        %1888 = vmatprep.subr.mxu0 %v1887
        %v1889 = vand.u32 %v525, 4294901760
        %1890 = vmatpush1.msra.mxu0 %v1889
        %v1891 = vand.u32 %v522, 4294901760
        %1892 = vmatprep.subr.mxu0 %v1891
        %v1893 = vand.u32 %v521, 4294901760
        %1894 = vmatpush1.msra.mxu0 %v1893
        %1895 = vmatprep.subr.mxu0 0.0
        %1896 = vmatpush2.msra.mxu0 0.0
        %1897 = vmatprep.subr.mxu0 0.0
        %1898 = vmatpush2.msra.mxu0 0.0
        %1899 = vmatprep.subr.mxu0 0.0
        %1900 = vmatpush2.msra.mxu0 0.0
        %1901 = vmatprep.subr.mxu0 0.0
        %1902 = vmatpush2.msra.mxu0 0.0
        %1903 = vmatprep.subr.mxu0 0.0
        %1904 = vmatpush2.msra.mxu0 0.0
        %1905 = vmatprep.subr.mxu0 0.0
        %1906 = vmatpush2.msra.mxu0 0.0
        %1907 = vmatprep.subr.mxu0 0.0
        %1908 = vmatpush2.msra.mxu0 0.0
        %1909 = vmatprep.subr.mxu0 0.0
        %1910 = vmatpush2.msra.mxu0 0.0
        %1911 = vmatprep.subr.mxu0 0.0
        %1912 = vmatpush2.msra.mxu0 0.0
        %1913 = vmatprep.subr.mxu0 0.0
        %1914 = vmatpush2.msra.mxu0 0.0
        %1915 = vmatprep.subr.mxu0 0.0
        %1916 = vmatpush2.msra.mxu0 0.0
        %1917 = vmatprep.subr.mxu0 0.0
        %1918 = vmatpush2.msra.mxu0 0.0
        %1919 = vmatprep.subr.mxu0 0.0
        %1920 = vmatpush2.msra.mxu0 0.0
        %1921 = vmatprep.subr.mxu0 0.0
        %1922 = vmatpush2.msra.mxu0 0.0
        %1923 = vmatprep.subr.mxu0 0.0
        %1924 = vmatpush2.msra.mxu0 0.0
        %1925 = vmatprep.subr.mxu0 0.0
        %1926 = vmatpush2.msra.mxu0 0.0
        %1927 = vmatprep.mubr.f32.mxu0 0.0
        %v1928 = vand.u32 %v565, 4294901760
        %1929 = vmatmul.mubr.f32.gmra.mxu0 %v1928
        %v1930 = vpop.f32.mrf.mxu0
        %v1931 = vadd.f32 %v1830, %v1930
        %v1932 = vpop.f32.mrf.mxu0
        %v1933 = vadd.f32 %v1832, %v1932
        %1934 = vmatprep.mubr.f32.mxu0 0.0
        %v1935 = vand.u32 %v568, 4294901760
        %1936 = vmatmul.mubr.f32.gmra.mxu0 %v1935
        %v1937 = vpop.f32.mrf.mxu0
        %v1938 = vadd.f32 %v1837, %v1937
        %v1939 = vpop.f32.mrf.mxu0
        %v1940 = vadd.f32 %v1839, %v1939
        %1941 = vmatprep.mubr.f32.mxu0 0.0
        %v1942 = vand.u32 %v571, 4294901760
        %1943 = vmatmul.mubr.f32.gmra.mxu0 %v1942
        %v1944 = vpop.f32.mrf.mxu0
        %v1945 = vadd.f32 %v1844, %v1944
        %v1946 = vpop.f32.mrf.mxu0
        %v1947 = vadd.f32 %v1846, %v1946
        %1948 = vmatprep.mubr.f32.mxu0 0.0
        %v1949 = vand.u32 %v574, 4294901760
        %1950 = vmatmul.mubr.f32.gmra.mxu0 %v1949
        %v1951 = vpop.f32.mrf.mxu0
        %v1952 = vadd.f32 %v1851, %v1951
        %v1953 = vpop.f32.mrf.mxu0
        %v1954 = vadd.f32 %v1853, %v1953
        %1955 = vdwg.mxu0
        %v1956 = vtanh.pop %v1241
        %v1957 = vtanh.pop %v1243
        %v1958 = vtanh.pop %v1931
        %v1959 = vtanh.pop %v1933
        %v1960 = vtanh.pop %v1248
        %v1961 = vtanh.pop %v1250
        %v1962 = vtanh.pop %v1938
        %v1963 = vtanh.pop %v1940
        %v1964 = vtanh.pop %v1255
        %v1965 = vtanh.pop %v1257
        %v1966 = vtanh.pop %v1945
        %v1967 = vtanh.pop %v1947
        %v1968 = vtanh.pop %v1262
        %v1969 = vtanh.pop %v1264
        %v1970 = vtanh.pop %v1952
        %v1971 = vtanh.pop %v1954
        %s1972 = scalar_lea.vmem %s4, 32
        %v1973 = vld [vmem:[%s1972] sm:$0xff]
        %v1974 = vld [vmem:[%s1972 + $0x8] sm:$0xff]
        %v1975 = vld [vmem:[%s1972 + $0x10] sm:$0xff]
        %v1976 = vld [vmem:[%s1972 + $0x18] sm:$0xff]
        %s1977 = scalar_lea.vmem %s5, 32
        %v1978 = vld [vmem:[%s1977] sm:$0xff]
        %v1979 = vld [vmem:[%s1977 + $0x8] sm:$0xff]
        %v1980 = vld [vmem:[%s1977 + $0x10] sm:$0xff]
        %v1981 = vld [vmem:[%s1977 + $0x18] sm:$0xff]
        %1983 = vset.pattern.permute.xlu0 0
        %1984 = vperm.xlu0 %1983, %v1978
        %v1985 = vpop.permute.xlu0 %1984
        %1988 = vset.pattern.permute.xlu0 0
        %1989 = vperm.xlu0 %1988, %v1979
        %v1990 = vpop.permute.xlu0 %1989
        %1993 = vset.pattern.permute.xlu0 0
        %1994 = vperm.xlu0 %1993, %v1980
        %v1995 = vpop.permute.xlu0 %1994
        %1998 = vset.pattern.permute.xlu0 0
        %1999 = vperm.xlu0 %1998, %v1981
        %v2000 = vpop.permute.xlu0 %1999
        %v2003 = vsel %vm563, %v1973, 0
        %v2006 = vsel %vm563, %v1974, 0
        %v2009 = vsel %vm563, %v1975, 0
        %v2012 = vsel %vm563, %v1976, 0
        %2014 = vmatprep.subr.mxu0 0.0
        %2015 = vmatpush1.msra.mxu0 0.0
        %2016 = vmatprep.subr.mxu0 0.0
        %2017 = vmatpush1.msra.mxu0 0.0
        %2018 = vmatprep.subr.mxu0 0.0
        %2019 = vmatpush1.msra.mxu0 0.0
        %2020 = vmatprep.subr.mxu0 0.0
        %2021 = vmatpush1.msra.mxu0 0.0
        %2022 = vmatprep.subr.mxu0 0.0
        %2023 = vmatpush1.msra.mxu0 0.0
        %2024 = vmatprep.subr.mxu0 0.0
        %2025 = vmatpush1.msra.mxu0 0.0
        %2026 = vmatprep.subr.mxu0 0.0
        %2027 = vmatpush1.msra.mxu0 0.0
        %2028 = vmatprep.subr.mxu0 0.0
        %2029 = vmatpush1.msra.mxu0 0.0
        %2030 = vmatprep.subr.mxu0 0.0
        %2031 = vmatpush1.msra.mxu0 0.0
        %2032 = vmatprep.subr.mxu0 0.0
        %2033 = vmatpush1.msra.mxu0 0.0
        %2034 = vmatprep.subr.mxu0 0.0
        %2035 = vmatpush1.msra.mxu0 0.0
        %2036 = vmatprep.subr.mxu0 0.0
        %2037 = vmatpush1.msra.mxu0 0.0
        %v2038 = vand.u32 %v1969, 4294901760
        %2039 = vmatprep.subr.mxu0 %v2038
        %v2040 = vand.u32 %v1968, 4294901760
        %2041 = vmatpush1.msra.mxu0 %v2040
        %v2042 = vand.u32 %v1965, 4294901760
        %2043 = vmatprep.subr.mxu0 %v2042
        %v2044 = vand.u32 %v1964, 4294901760
        %2045 = vmatpush1.msra.mxu0 %v2044
        %v2046 = vand.u32 %v1961, 4294901760
        %2047 = vmatprep.subr.mxu0 %v2046
        %v2048 = vand.u32 %v1960, 4294901760
        %2049 = vmatpush1.msra.mxu0 %v2048
        %v2050 = vand.u32 %v1957, 4294901760
        %2051 = vmatprep.subr.mxu0 %v2050
        %v2052 = vand.u32 %v1956, 4294901760
        %2053 = vmatpush1.msra.mxu0 %v2052
        %2054 = vmatprep.subr.mxu0 0.0
        %2055 = vmatpush2.msra.mxu0 0.0
        %2056 = vmatprep.subr.mxu0 0.0
        %2057 = vmatpush2.msra.mxu0 0.0
        %2058 = vmatprep.subr.mxu0 0.0
        %2059 = vmatpush2.msra.mxu0 0.0
        %2060 = vmatprep.subr.mxu0 0.0
        %2061 = vmatpush2.msra.mxu0 0.0
        %2062 = vmatprep.subr.mxu0 0.0
        %2063 = vmatpush2.msra.mxu0 0.0
        %2064 = vmatprep.subr.mxu0 0.0
        %2065 = vmatpush2.msra.mxu0 0.0
        %2066 = vmatprep.subr.mxu0 0.0
        %2067 = vmatpush2.msra.mxu0 0.0
        %2068 = vmatprep.subr.mxu0 0.0
        %2069 = vmatpush2.msra.mxu0 0.0
        %2070 = vmatprep.subr.mxu0 0.0
        %2071 = vmatpush2.msra.mxu0 0.0
        %2072 = vmatprep.subr.mxu0 0.0
        %2073 = vmatpush2.msra.mxu0 0.0
        %2074 = vmatprep.subr.mxu0 0.0
        %2075 = vmatpush2.msra.mxu0 0.0
        %2076 = vmatprep.subr.mxu0 0.0
        %2077 = vmatpush2.msra.mxu0 0.0
        %2078 = vmatprep.subr.mxu0 0.0
        %2079 = vmatpush2.msra.mxu0 0.0
        %2080 = vmatprep.subr.mxu0 0.0
        %2081 = vmatpush2.msra.mxu0 0.0
        %2082 = vmatprep.subr.mxu0 0.0
        %2083 = vmatpush2.msra.mxu0 0.0
        %2084 = vmatprep.subr.mxu0 0.0
        %2085 = vmatpush2.msra.mxu0 0.0
        %2086 = vmatprep.mubr.f32.mxu0 0.0
        %v2087 = vand.u32 %v2003, 4294901760
        %v2088 = vsub.f32 %v2003, %v2087
        %v2089 = vand.u32 %v2088, 4294901760
        %v2090 = vsub.f32 %v2088, %v2089
        %v2091 = vand.u32 %v2090, 4294901760
        %2092 = vmatmul.mubr.f32.gmra.mxu0 %v2091
        %v2093 = vpop.f32.mrf.mxu0
        %v2094 = vadd.f32 %v1985, %v2093
        %v2095 = vpop.f32.mrf.mxu0
        %v2096 = vadd.f32 %v1985, %v2095
        %2097 = vmatprep.mubr.f32.mxu0 0.0
        %v2098 = vand.u32 %v2006, 4294901760
        %v2099 = vsub.f32 %v2006, %v2098
        %v2100 = vand.u32 %v2099, 4294901760
        %v2101 = vsub.f32 %v2099, %v2100
        %v2102 = vand.u32 %v2101, 4294901760
        %2103 = vmatmul.mubr.f32.gmra.mxu0 %v2102
        %v2104 = vpop.f32.mrf.mxu0
        %v2105 = vadd.f32 %v1990, %v2104
        %v2106 = vpop.f32.mrf.mxu0
        %v2107 = vadd.f32 %v1990, %v2106
        %2108 = vmatprep.mubr.f32.mxu0 0.0
        %v2109 = vand.u32 %v2009, 4294901760
        %v2110 = vsub.f32 %v2009, %v2109
        %v2111 = vand.u32 %v2110, 4294901760
        %v2112 = vsub.f32 %v2110, %v2111
        %v2113 = vand.u32 %v2112, 4294901760
        %2114 = vmatmul.mubr.f32.gmra.mxu0 %v2113
        %v2115 = vpop.f32.mrf.mxu0
        %v2116 = vadd.f32 %v1995, %v2115
        %v2117 = vpop.f32.mrf.mxu0
        %v2118 = vadd.f32 %v1995, %v2117
        %2119 = vmatprep.mubr.f32.mxu0 0.0
        %v2120 = vand.u32 %v2012, 4294901760
        %v2121 = vsub.f32 %v2012, %v2120
        %v2122 = vand.u32 %v2121, 4294901760
        %v2123 = vsub.f32 %v2121, %v2122
        %v2124 = vand.u32 %v2123, 4294901760
        %2125 = vmatmul.mubr.f32.gmra.mxu0 %v2124
        %v2126 = vpop.f32.mrf.mxu0
        %v2127 = vadd.f32 %v2000, %v2126
        %v2128 = vpop.f32.mrf.mxu0
        %v2129 = vadd.f32 %v2000, %v2128
        %2130 = vdwg.mxu0
        %2131 = vmatprep.subr.mxu0 0.0
        %2132 = vmatpush1.msra.mxu0 0.0
        %2133 = vmatprep.subr.mxu0 0.0
        %2134 = vmatpush1.msra.mxu0 0.0
        %2135 = vmatprep.subr.mxu0 0.0
        %2136 = vmatpush1.msra.mxu0 0.0
        %2137 = vmatprep.subr.mxu0 0.0
        %2138 = vmatpush1.msra.mxu0 0.0
        %2139 = vmatprep.subr.mxu0 0.0
        %2140 = vmatpush1.msra.mxu0 0.0
        %2141 = vmatprep.subr.mxu0 0.0
        %2142 = vmatpush1.msra.mxu0 0.0
        %2143 = vmatprep.subr.mxu0 0.0
        %2144 = vmatpush1.msra.mxu0 0.0
        %2145 = vmatprep.subr.mxu0 0.0
        %2146 = vmatpush1.msra.mxu0 0.0
        %2147 = vmatprep.subr.mxu0 0.0
        %2148 = vmatpush1.msra.mxu0 0.0
        %2149 = vmatprep.subr.mxu0 0.0
        %2150 = vmatpush1.msra.mxu0 0.0
        %2151 = vmatprep.subr.mxu0 0.0
        %2152 = vmatpush1.msra.mxu0 0.0
        %2153 = vmatprep.subr.mxu0 0.0
        %2154 = vmatpush1.msra.mxu0 0.0
        %v2155 = vand.u32 %v1969, 4294901760
        %v2156 = vsub.f32 %v1969, %v2155
        %v2157 = vand.u32 %v2156, 4294901760
        %v2158 = vsub.f32 %v2156, %v2157
        %v2159 = vand.u32 %v2158, 4294901760
        %2160 = vmatprep.subr.mxu0 %v2159
        %v2161 = vand.u32 %v1968, 4294901760
        %v2162 = vsub.f32 %v1968, %v2161
        %v2163 = vand.u32 %v2162, 4294901760
        %v2164 = vsub.f32 %v2162, %v2163
        %v2165 = vand.u32 %v2164, 4294901760
        %2166 = vmatpush1.msra.mxu0 %v2165
        %v2167 = vand.u32 %v1965, 4294901760
        %v2168 = vsub.f32 %v1965, %v2167
        %v2169 = vand.u32 %v2168, 4294901760
        %v2170 = vsub.f32 %v2168, %v2169
        %v2171 = vand.u32 %v2170, 4294901760
        %2172 = vmatprep.subr.mxu0 %v2171
        %v2173 = vand.u32 %v1964, 4294901760
        %v2174 = vsub.f32 %v1964, %v2173
        %v2175 = vand.u32 %v2174, 4294901760
        %v2176 = vsub.f32 %v2174, %v2175
        %v2177 = vand.u32 %v2176, 4294901760
        %2178 = vmatpush1.msra.mxu0 %v2177
        %v2179 = vand.u32 %v1961, 4294901760
        %v2180 = vsub.f32 %v1961, %v2179
        %v2181 = vand.u32 %v2180, 4294901760
        %v2182 = vsub.f32 %v2180, %v2181
        %v2183 = vand.u32 %v2182, 4294901760
        %2184 = vmatprep.subr.mxu0 %v2183
        %v2185 = vand.u32 %v1960, 4294901760
        %v2186 = vsub.f32 %v1960, %v2185
        %v2187 = vand.u32 %v2186, 4294901760
        %v2188 = vsub.f32 %v2186, %v2187
        %v2189 = vand.u32 %v2188, 4294901760
        %2190 = vmatpush1.msra.mxu0 %v2189
        %v2191 = vand.u32 %v1957, 4294901760
        %v2192 = vsub.f32 %v1957, %v2191
        %v2193 = vand.u32 %v2192, 4294901760
        %v2194 = vsub.f32 %v2192, %v2193
        %v2195 = vand.u32 %v2194, 4294901760
        %2196 = vmatprep.subr.mxu0 %v2195
        %v2197 = vand.u32 %v1956, 4294901760
        %v2198 = vsub.f32 %v1956, %v2197
        %v2199 = vand.u32 %v2198, 4294901760
        %v2200 = vsub.f32 %v2198, %v2199
        %v2201 = vand.u32 %v2200, 4294901760
        %2202 = vmatpush1.msra.mxu0 %v2201
        %2203 = vmatprep.subr.mxu0 0.0
        %2204 = vmatpush2.msra.mxu0 0.0
        %2205 = vmatprep.subr.mxu0 0.0
        %2206 = vmatpush2.msra.mxu0 0.0
        %2207 = vmatprep.subr.mxu0 0.0
        %2208 = vmatpush2.msra.mxu0 0.0
        %2209 = vmatprep.subr.mxu0 0.0
        %2210 = vmatpush2.msra.mxu0 0.0
        %2211 = vmatprep.subr.mxu0 0.0
        %2212 = vmatpush2.msra.mxu0 0.0
        %2213 = vmatprep.subr.mxu0 0.0
        %2214 = vmatpush2.msra.mxu0 0.0
        %2215 = vmatprep.subr.mxu0 0.0
        %2216 = vmatpush2.msra.mxu0 0.0
        %2217 = vmatprep.subr.mxu0 0.0
        %2218 = vmatpush2.msra.mxu0 0.0
        %2219 = vmatprep.subr.mxu0 0.0
        %2220 = vmatpush2.msra.mxu0 0.0
        %2221 = vmatprep.subr.mxu0 0.0
        %2222 = vmatpush2.msra.mxu0 0.0
        %2223 = vmatprep.subr.mxu0 0.0
        %2224 = vmatpush2.msra.mxu0 0.0
        %2225 = vmatprep.subr.mxu0 0.0
        %2226 = vmatpush2.msra.mxu0 0.0
        %2227 = vmatprep.subr.mxu0 0.0
        %2228 = vmatpush2.msra.mxu0 0.0
        %2229 = vmatprep.subr.mxu0 0.0
        %2230 = vmatpush2.msra.mxu0 0.0
        %2231 = vmatprep.subr.mxu0 0.0
        %2232 = vmatpush2.msra.mxu0 0.0
        %2233 = vmatprep.subr.mxu0 0.0
        %2234 = vmatpush2.msra.mxu0 0.0
        %2235 = vmatprep.mubr.f32.mxu0 0.0
        %v2236 = vand.u32 %v2003, 4294901760
        %2237 = vmatmul.mubr.f32.gmra.mxu0 %v2236
        %v2238 = vpop.f32.mrf.mxu0
        %v2239 = vadd.f32 %v2094, %v2238
        %v2240 = vpop.f32.mrf.mxu0
        %v2241 = vadd.f32 %v2096, %v2240
        %2242 = vmatprep.mubr.f32.mxu0 0.0
        %v2243 = vand.u32 %v2006, 4294901760
        %2244 = vmatmul.mubr.f32.gmra.mxu0 %v2243
        %v2245 = vpop.f32.mrf.mxu0
        %v2246 = vadd.f32 %v2105, %v2245
        %v2247 = vpop.f32.mrf.mxu0
        %v2248 = vadd.f32 %v2107, %v2247
        %2249 = vmatprep.mubr.f32.mxu0 0.0
        %v2250 = vand.u32 %v2009, 4294901760
        %2251 = vmatmul.mubr.f32.gmra.mxu0 %v2250
        %v2252 = vpop.f32.mrf.mxu0
        %v2253 = vadd.f32 %v2116, %v2252
        %v2254 = vpop.f32.mrf.mxu0
        %v2255 = vadd.f32 %v2118, %v2254
        %2256 = vmatprep.mubr.f32.mxu0 0.0
        %v2257 = vand.u32 %v2012, 4294901760
        %2258 = vmatmul.mubr.f32.gmra.mxu0 %v2257
        %v2259 = vpop.f32.mrf.mxu0
        %v2260 = vadd.f32 %v2127, %v2259
        %v2261 = vpop.f32.mrf.mxu0
        %v2262 = vadd.f32 %v2129, %v2261
        %2263 = vdwg.mxu0
        %2264 = vmatprep.subr.mxu0 0.0
        %2265 = vmatpush1.msra.mxu0 0.0
        %2266 = vmatprep.subr.mxu0 0.0
        %2267 = vmatpush1.msra.mxu0 0.0
        %2268 = vmatprep.subr.mxu0 0.0
        %2269 = vmatpush1.msra.mxu0 0.0
        %2270 = vmatprep.subr.mxu0 0.0
        %2271 = vmatpush1.msra.mxu0 0.0
        %2272 = vmatprep.subr.mxu0 0.0
        %2273 = vmatpush1.msra.mxu0 0.0
        %2274 = vmatprep.subr.mxu0 0.0
        %2275 = vmatpush1.msra.mxu0 0.0
        %2276 = vmatprep.subr.mxu0 0.0
        %2277 = vmatpush1.msra.mxu0 0.0
        %2278 = vmatprep.subr.mxu0 0.0
        %2279 = vmatpush1.msra.mxu0 0.0
        %2280 = vmatprep.subr.mxu0 0.0
        %2281 = vmatpush1.msra.mxu0 0.0
        %2282 = vmatprep.subr.mxu0 0.0
        %2283 = vmatpush1.msra.mxu0 0.0
        %2284 = vmatprep.subr.mxu0 0.0
        %2285 = vmatpush1.msra.mxu0 0.0
        %2286 = vmatprep.subr.mxu0 0.0
        %2287 = vmatpush1.msra.mxu0 0.0
        %v2288 = vand.u32 %v1969, 4294901760
        %v2289 = vsub.f32 %v1969, %v2288
        %2290 = vmatprep.subr.mxu0 %v2289
        %v2291 = vand.u32 %v1968, 4294901760
        %v2292 = vsub.f32 %v1968, %v2291
        %2293 = vmatpush1.msra.mxu0 %v2292
        %v2294 = vand.u32 %v1965, 4294901760
        %v2295 = vsub.f32 %v1965, %v2294
        %2296 = vmatprep.subr.mxu0 %v2295
        %v2297 = vand.u32 %v1964, 4294901760
        %v2298 = vsub.f32 %v1964, %v2297
        %2299 = vmatpush1.msra.mxu0 %v2298
        %v2300 = vand.u32 %v1961, 4294901760
        %v2301 = vsub.f32 %v1961, %v2300
        %2302 = vmatprep.subr.mxu0 %v2301
        %v2303 = vand.u32 %v1960, 4294901760
        %v2304 = vsub.f32 %v1960, %v2303
        %2305 = vmatpush1.msra.mxu0 %v2304
        %v2306 = vand.u32 %v1957, 4294901760
        %v2307 = vsub.f32 %v1957, %v2306
        %2308 = vmatprep.subr.mxu0 %v2307
        %v2309 = vand.u32 %v1956, 4294901760
        %v2310 = vsub.f32 %v1956, %v2309
        %2311 = vmatpush1.msra.mxu0 %v2310
        %2312 = vmatprep.subr.mxu0 0.0
        %2313 = vmatpush2.msra.mxu0 0.0
        %2314 = vmatprep.subr.mxu0 0.0
        %2315 = vmatpush2.msra.mxu0 0.0
        %2316 = vmatprep.subr.mxu0 0.0
        %2317 = vmatpush2.msra.mxu0 0.0
        %2318 = vmatprep.subr.mxu0 0.0
        %2319 = vmatpush2.msra.mxu0 0.0
        %2320 = vmatprep.subr.mxu0 0.0
        %2321 = vmatpush2.msra.mxu0 0.0
        %2322 = vmatprep.subr.mxu0 0.0
        %2323 = vmatpush2.msra.mxu0 0.0
        %2324 = vmatprep.subr.mxu0 0.0
        %2325 = vmatpush2.msra.mxu0 0.0
        %2326 = vmatprep.subr.mxu0 0.0
        %2327 = vmatpush2.msra.mxu0 0.0
        %2328 = vmatprep.subr.mxu0 0.0
        %2329 = vmatpush2.msra.mxu0 0.0
        %2330 = vmatprep.subr.mxu0 0.0
        %2331 = vmatpush2.msra.mxu0 0.0
        %2332 = vmatprep.subr.mxu0 0.0
        %2333 = vmatpush2.msra.mxu0 0.0
        %2334 = vmatprep.subr.mxu0 0.0
        %2335 = vmatpush2.msra.mxu0 0.0
        %2336 = vmatprep.subr.mxu0 0.0
        %2337 = vmatpush2.msra.mxu0 0.0
        %2338 = vmatprep.subr.mxu0 0.0
        %2339 = vmatpush2.msra.mxu0 0.0
        %2340 = vmatprep.subr.mxu0 0.0
        %2341 = vmatpush2.msra.mxu0 0.0
        %2342 = vmatprep.subr.mxu0 0.0
        %2343 = vmatpush2.msra.mxu0 0.0
        %2344 = vmatprep.mubr.f32.mxu0 0.0
        %v2345 = vand.u32 %v2003, 4294901760
        %v2346 = vsub.f32 %v2003, %v2345
        %2347 = vmatmul.mubr.f32.gmra.mxu0 %v2346
        %v2348 = vpop.f32.mrf.mxu0
        %v2349 = vadd.f32 %v2239, %v2348
        %v2350 = vpop.f32.mrf.mxu0
        %v2351 = vadd.f32 %v2241, %v2350
        %2352 = vmatprep.mubr.f32.mxu0 0.0
        %v2353 = vand.u32 %v2006, 4294901760
        %v2354 = vsub.f32 %v2006, %v2353
        %2355 = vmatmul.mubr.f32.gmra.mxu0 %v2354
        %v2356 = vpop.f32.mrf.mxu0
        %v2357 = vadd.f32 %v2246, %v2356
        %v2358 = vpop.f32.mrf.mxu0
        %v2359 = vadd.f32 %v2248, %v2358
        %2360 = vmatprep.mubr.f32.mxu0 0.0
        %v2361 = vand.u32 %v2009, 4294901760
        %v2362 = vsub.f32 %v2009, %v2361
        %2363 = vmatmul.mubr.f32.gmra.mxu0 %v2362
        %v2364 = vpop.f32.mrf.mxu0
        %v2365 = vadd.f32 %v2253, %v2364
        %v2366 = vpop.f32.mrf.mxu0
        %v2367 = vadd.f32 %v2255, %v2366
        %2368 = vmatprep.mubr.f32.mxu0 0.0
        %v2369 = vand.u32 %v2012, 4294901760
        %v2370 = vsub.f32 %v2012, %v2369
        %2371 = vmatmul.mubr.f32.gmra.mxu0 %v2370
        %v2372 = vpop.f32.mrf.mxu0
        %v2373 = vadd.f32 %v2260, %v2372
        %v2374 = vpop.f32.mrf.mxu0
        %v2375 = vadd.f32 %v2262, %v2374
        %2376 = vdwg.mxu0
        %2377 = vmatprep.subr.mxu0 0.0
        %2378 = vmatpush1.msra.mxu0 0.0
        %2379 = vmatprep.subr.mxu0 0.0
        %2380 = vmatpush1.msra.mxu0 0.0
        %2381 = vmatprep.subr.mxu0 0.0
        %2382 = vmatpush1.msra.mxu0 0.0
        %2383 = vmatprep.subr.mxu0 0.0
        %2384 = vmatpush1.msra.mxu0 0.0
        %2385 = vmatprep.subr.mxu0 0.0
        %2386 = vmatpush1.msra.mxu0 0.0
        %2387 = vmatprep.subr.mxu0 0.0
        %2388 = vmatpush1.msra.mxu0 0.0
        %2389 = vmatprep.subr.mxu0 0.0
        %2390 = vmatpush1.msra.mxu0 0.0
        %2391 = vmatprep.subr.mxu0 0.0
        %2392 = vmatpush1.msra.mxu0 0.0
        %2393 = vmatprep.subr.mxu0 0.0
        %2394 = vmatpush1.msra.mxu0 0.0
        %2395 = vmatprep.subr.mxu0 0.0
        %2396 = vmatpush1.msra.mxu0 0.0
        %2397 = vmatprep.subr.mxu0 0.0
        %2398 = vmatpush1.msra.mxu0 0.0
        %2399 = vmatprep.subr.mxu0 0.0
        %2400 = vmatpush1.msra.mxu0 0.0
        %v2401 = vand.u32 %v1969, 4294901760
        %2402 = vmatprep.subr.mxu0 %v2401
        %v2403 = vand.u32 %v1968, 4294901760
        %2404 = vmatpush1.msra.mxu0 %v2403
        %v2405 = vand.u32 %v1965, 4294901760
        %2406 = vmatprep.subr.mxu0 %v2405
        %v2407 = vand.u32 %v1964, 4294901760
        %2408 = vmatpush1.msra.mxu0 %v2407
        %v2409 = vand.u32 %v1961, 4294901760
        %2410 = vmatprep.subr.mxu0 %v2409
        %v2411 = vand.u32 %v1960, 4294901760
        %2412 = vmatpush1.msra.mxu0 %v2411
        %v2413 = vand.u32 %v1957, 4294901760
        %2414 = vmatprep.subr.mxu0 %v2413
        %v2415 = vand.u32 %v1956, 4294901760
        %2416 = vmatpush1.msra.mxu0 %v2415
        %2417 = vmatprep.subr.mxu0 0.0
        %2418 = vmatpush2.msra.mxu0 0.0
        %2419 = vmatprep.subr.mxu0 0.0
        %2420 = vmatpush2.msra.mxu0 0.0
        %2421 = vmatprep.subr.mxu0 0.0
        %2422 = vmatpush2.msra.mxu0 0.0
        %2423 = vmatprep.subr.mxu0 0.0
        %2424 = vmatpush2.msra.mxu0 0.0
        %2425 = vmatprep.subr.mxu0 0.0
        %2426 = vmatpush2.msra.mxu0 0.0
        %2427 = vmatprep.subr.mxu0 0.0
        %2428 = vmatpush2.msra.mxu0 0.0
        %2429 = vmatprep.subr.mxu0 0.0
        %2430 = vmatpush2.msra.mxu0 0.0
        %2431 = vmatprep.subr.mxu0 0.0
        %2432 = vmatpush2.msra.mxu0 0.0
        %2433 = vmatprep.subr.mxu0 0.0
        %2434 = vmatpush2.msra.mxu0 0.0
        %2435 = vmatprep.subr.mxu0 0.0
        %2436 = vmatpush2.msra.mxu0 0.0
        %2437 = vmatprep.subr.mxu0 0.0
        %2438 = vmatpush2.msra.mxu0 0.0
        %2439 = vmatprep.subr.mxu0 0.0
        %2440 = vmatpush2.msra.mxu0 0.0
        %2441 = vmatprep.subr.mxu0 0.0
        %2442 = vmatpush2.msra.mxu0 0.0
        %2443 = vmatprep.subr.mxu0 0.0
        %2444 = vmatpush2.msra.mxu0 0.0
        %2445 = vmatprep.subr.mxu0 0.0
        %2446 = vmatpush2.msra.mxu0 0.0
        %2447 = vmatprep.subr.mxu0 0.0
        %2448 = vmatpush2.msra.mxu0 0.0
        %2449 = vmatprep.mubr.f32.mxu0 0.0
        %v2450 = vand.u32 %v2003, 4294901760
        %v2451 = vsub.f32 %v2003, %v2450
        %v2452 = vand.u32 %v2451, 4294901760
        %2453 = vmatmul.mubr.f32.gmra.mxu0 %v2452
        %v2454 = vpop.f32.mrf.mxu0
        %v2455 = vadd.f32 %v2349, %v2454
        %v2456 = vpop.f32.mrf.mxu0
        %v2457 = vadd.f32 %v2351, %v2456
        %2458 = vmatprep.mubr.f32.mxu0 0.0
        %v2459 = vand.u32 %v2006, 4294901760
        %v2460 = vsub.f32 %v2006, %v2459
        %v2461 = vand.u32 %v2460, 4294901760
        %2462 = vmatmul.mubr.f32.gmra.mxu0 %v2461
        %v2463 = vpop.f32.mrf.mxu0
        %v2464 = vadd.f32 %v2357, %v2463
        %v2465 = vpop.f32.mrf.mxu0
        %v2466 = vadd.f32 %v2359, %v2465
        %2467 = vmatprep.mubr.f32.mxu0 0.0
        %v2468 = vand.u32 %v2009, 4294901760
        %v2469 = vsub.f32 %v2009, %v2468
        %v2470 = vand.u32 %v2469, 4294901760
        %2471 = vmatmul.mubr.f32.gmra.mxu0 %v2470
        %v2472 = vpop.f32.mrf.mxu0
        %v2473 = vadd.f32 %v2365, %v2472
        %v2474 = vpop.f32.mrf.mxu0
        %v2475 = vadd.f32 %v2367, %v2474
        %2476 = vmatprep.mubr.f32.mxu0 0.0
        %v2477 = vand.u32 %v2012, 4294901760
        %v2478 = vsub.f32 %v2012, %v2477
        %v2479 = vand.u32 %v2478, 4294901760
        %2480 = vmatmul.mubr.f32.gmra.mxu0 %v2479
        %v2481 = vpop.f32.mrf.mxu0
        %v2482 = vadd.f32 %v2373, %v2481
        %v2483 = vpop.f32.mrf.mxu0
        %v2484 = vadd.f32 %v2375, %v2483
        %2485 = vdwg.mxu0
        %2486 = vmatprep.subr.mxu0 0.0
        %2487 = vmatpush1.msra.mxu0 0.0
        %2488 = vmatprep.subr.mxu0 0.0
        %2489 = vmatpush1.msra.mxu0 0.0
        %2490 = vmatprep.subr.mxu0 0.0
        %2491 = vmatpush1.msra.mxu0 0.0
        %2492 = vmatprep.subr.mxu0 0.0
        %2493 = vmatpush1.msra.mxu0 0.0
        %2494 = vmatprep.subr.mxu0 0.0
        %2495 = vmatpush1.msra.mxu0 0.0
        %2496 = vmatprep.subr.mxu0 0.0
        %2497 = vmatpush1.msra.mxu0 0.0
        %2498 = vmatprep.subr.mxu0 0.0
        %2499 = vmatpush1.msra.mxu0 0.0
        %2500 = vmatprep.subr.mxu0 0.0
        %2501 = vmatpush1.msra.mxu0 0.0
        %2502 = vmatprep.subr.mxu0 0.0
        %2503 = vmatpush1.msra.mxu0 0.0
        %2504 = vmatprep.subr.mxu0 0.0
        %2505 = vmatpush1.msra.mxu0 0.0
        %2506 = vmatprep.subr.mxu0 0.0
        %2507 = vmatpush1.msra.mxu0 0.0
        %2508 = vmatprep.subr.mxu0 0.0
        %2509 = vmatpush1.msra.mxu0 0.0
        %v2510 = vand.u32 %v1969, 4294901760
        %v2511 = vsub.f32 %v1969, %v2510
        %v2512 = vand.u32 %v2511, 4294901760
        %2513 = vmatprep.subr.mxu0 %v2512
        %v2514 = vand.u32 %v1968, 4294901760
        %v2515 = vsub.f32 %v1968, %v2514
        %v2516 = vand.u32 %v2515, 4294901760
        %2517 = vmatpush1.msra.mxu0 %v2516
        %v2518 = vand.u32 %v1965, 4294901760
        %v2519 = vsub.f32 %v1965, %v2518
        %v2520 = vand.u32 %v2519, 4294901760
        %2521 = vmatprep.subr.mxu0 %v2520
        %v2522 = vand.u32 %v1964, 4294901760
        %v2523 = vsub.f32 %v1964, %v2522
        %v2524 = vand.u32 %v2523, 4294901760
        %2525 = vmatpush1.msra.mxu0 %v2524
        %v2526 = vand.u32 %v1961, 4294901760
        %v2527 = vsub.f32 %v1961, %v2526
        %v2528 = vand.u32 %v2527, 4294901760
        %2529 = vmatprep.subr.mxu0 %v2528
        %v2530 = vand.u32 %v1960, 4294901760
        %v2531 = vsub.f32 %v1960, %v2530
        %v2532 = vand.u32 %v2531, 4294901760
        %2533 = vmatpush1.msra.mxu0 %v2532
        %v2534 = vand.u32 %v1957, 4294901760
        %v2535 = vsub.f32 %v1957, %v2534
        %v2536 = vand.u32 %v2535, 4294901760
        %2537 = vmatprep.subr.mxu0 %v2536
        %v2538 = vand.u32 %v1956, 4294901760
        %v2539 = vsub.f32 %v1956, %v2538
        %v2540 = vand.u32 %v2539, 4294901760
        %2541 = vmatpush1.msra.mxu0 %v2540
        %2542 = vmatprep.subr.mxu0 0.0
        %2543 = vmatpush2.msra.mxu0 0.0
        %2544 = vmatprep.subr.mxu0 0.0
        %2545 = vmatpush2.msra.mxu0 0.0
        %2546 = vmatprep.subr.mxu0 0.0
        %2547 = vmatpush2.msra.mxu0 0.0
        %2548 = vmatprep.subr.mxu0 0.0
        %2549 = vmatpush2.msra.mxu0 0.0
        %2550 = vmatprep.subr.mxu0 0.0
        %2551 = vmatpush2.msra.mxu0 0.0
        %2552 = vmatprep.subr.mxu0 0.0
        %2553 = vmatpush2.msra.mxu0 0.0
        %2554 = vmatprep.subr.mxu0 0.0
        %2555 = vmatpush2.msra.mxu0 0.0
        %2556 = vmatprep.subr.mxu0 0.0
        %2557 = vmatpush2.msra.mxu0 0.0
        %2558 = vmatprep.subr.mxu0 0.0
        %2559 = vmatpush2.msra.mxu0 0.0
        %2560 = vmatprep.subr.mxu0 0.0
        %2561 = vmatpush2.msra.mxu0 0.0
        %2562 = vmatprep.subr.mxu0 0.0
        %2563 = vmatpush2.msra.mxu0 0.0
        %2564 = vmatprep.subr.mxu0 0.0
        %2565 = vmatpush2.msra.mxu0 0.0
        %2566 = vmatprep.subr.mxu0 0.0
        %2567 = vmatpush2.msra.mxu0 0.0
        %2568 = vmatprep.subr.mxu0 0.0
        %2569 = vmatpush2.msra.mxu0 0.0
        %2570 = vmatprep.subr.mxu0 0.0
        %2571 = vmatpush2.msra.mxu0 0.0
        %2572 = vmatprep.subr.mxu0 0.0
        %2573 = vmatpush2.msra.mxu0 0.0
        %2574 = vmatprep.mubr.f32.mxu0 0.0
        %v2575 = vand.u32 %v2003, 4294901760
        %2576 = vmatmul.mubr.f32.gmra.mxu0 %v2575
        %v2577 = vpop.f32.mrf.mxu0
        %v2578 = vadd.f32 %v2455, %v2577
        %v2579 = vpop.f32.mrf.mxu0
        %v2580 = vadd.f32 %v2457, %v2579
        %2581 = vmatprep.mubr.f32.mxu0 0.0
        %v2582 = vand.u32 %v2006, 4294901760
        %2583 = vmatmul.mubr.f32.gmra.mxu0 %v2582
        %v2584 = vpop.f32.mrf.mxu0
        %v2585 = vadd.f32 %v2464, %v2584
        %v2586 = vpop.f32.mrf.mxu0
        %v2587 = vadd.f32 %v2466, %v2586
        %2588 = vmatprep.mubr.f32.mxu0 0.0
        %v2589 = vand.u32 %v2009, 4294901760
        %2590 = vmatmul.mubr.f32.gmra.mxu0 %v2589
        %v2591 = vpop.f32.mrf.mxu0
        %v2592 = vadd.f32 %v2473, %v2591
        %v2593 = vpop.f32.mrf.mxu0
        %v2594 = vadd.f32 %v2475, %v2593
        %2595 = vmatprep.mubr.f32.mxu0 0.0
        %v2596 = vand.u32 %v2012, 4294901760
        %2597 = vmatmul.mubr.f32.gmra.mxu0 %v2596
        %v2598 = vpop.f32.mrf.mxu0
        %v2599 = vadd.f32 %v2482, %v2598
        %v2600 = vpop.f32.mrf.mxu0
        %v2601 = vadd.f32 %v2484, %v2600
        %2602 = vdwg.mxu0
        %2603 = vmatprep.subr.mxu0 0.0
        %2604 = vmatpush1.msra.mxu0 0.0
        %2605 = vmatprep.subr.mxu0 0.0
        %2606 = vmatpush1.msra.mxu0 0.0
        %2607 = vmatprep.subr.mxu0 0.0
        %2608 = vmatpush1.msra.mxu0 0.0
        %2609 = vmatprep.subr.mxu0 0.0
        %2610 = vmatpush1.msra.mxu0 0.0
        %2611 = vmatprep.subr.mxu0 0.0
        %2612 = vmatpush1.msra.mxu0 0.0
        %2613 = vmatprep.subr.mxu0 0.0
        %2614 = vmatpush1.msra.mxu0 0.0
        %2615 = vmatprep.subr.mxu0 0.0
        %2616 = vmatpush1.msra.mxu0 0.0
        %2617 = vmatprep.subr.mxu0 0.0
        %2618 = vmatpush1.msra.mxu0 0.0
        %2619 = vmatprep.subr.mxu0 0.0
        %2620 = vmatpush1.msra.mxu0 0.0
        %2621 = vmatprep.subr.mxu0 0.0
        %2622 = vmatpush1.msra.mxu0 0.0
        %2623 = vmatprep.subr.mxu0 0.0
        %2624 = vmatpush1.msra.mxu0 0.0
        %2625 = vmatprep.subr.mxu0 0.0
        %2626 = vmatpush1.msra.mxu0 0.0
        %v2627 = vand.u32 %v1969, 4294901760
        %2628 = vmatprep.subr.mxu0 %v2627
        %v2629 = vand.u32 %v1968, 4294901760
        %2630 = vmatpush1.msra.mxu0 %v2629
        %v2631 = vand.u32 %v1965, 4294901760
        %2632 = vmatprep.subr.mxu0 %v2631
        %v2633 = vand.u32 %v1964, 4294901760
        %2634 = vmatpush1.msra.mxu0 %v2633
        %v2635 = vand.u32 %v1961, 4294901760
        %2636 = vmatprep.subr.mxu0 %v2635
        %v2637 = vand.u32 %v1960, 4294901760
        %2638 = vmatpush1.msra.mxu0 %v2637
        %v2639 = vand.u32 %v1957, 4294901760
        %2640 = vmatprep.subr.mxu0 %v2639
        %v2641 = vand.u32 %v1956, 4294901760
        %2642 = vmatpush1.msra.mxu0 %v2641
        %2643 = vmatprep.subr.mxu0 0.0
        %2644 = vmatpush2.msra.mxu0 0.0
        %2645 = vmatprep.subr.mxu0 0.0
        %2646 = vmatpush2.msra.mxu0 0.0
        %2647 = vmatprep.subr.mxu0 0.0
        %2648 = vmatpush2.msra.mxu0 0.0
        %2649 = vmatprep.subr.mxu0 0.0
        %2650 = vmatpush2.msra.mxu0 0.0
        %2651 = vmatprep.subr.mxu0 0.0
        %2652 = vmatpush2.msra.mxu0 0.0
        %2653 = vmatprep.subr.mxu0 0.0
        %2654 = vmatpush2.msra.mxu0 0.0
        %2655 = vmatprep.subr.mxu0 0.0
        %2656 = vmatpush2.msra.mxu0 0.0
        %2657 = vmatprep.subr.mxu0 0.0
        %2658 = vmatpush2.msra.mxu0 0.0
        %2659 = vmatprep.subr.mxu0 0.0
        %2660 = vmatpush2.msra.mxu0 0.0
        %2661 = vmatprep.subr.mxu0 0.0
        %2662 = vmatpush2.msra.mxu0 0.0
        %2663 = vmatprep.subr.mxu0 0.0
        %2664 = vmatpush2.msra.mxu0 0.0
        %2665 = vmatprep.subr.mxu0 0.0
        %2666 = vmatpush2.msra.mxu0 0.0
        %2667 = vmatprep.subr.mxu0 0.0
        %2668 = vmatpush2.msra.mxu0 0.0
        %2669 = vmatprep.subr.mxu0 0.0
        %2670 = vmatpush2.msra.mxu0 0.0
        %2671 = vmatprep.subr.mxu0 0.0
        %2672 = vmatpush2.msra.mxu0 0.0
        %2673 = vmatprep.subr.mxu0 0.0
        %2674 = vmatpush2.msra.mxu0 0.0
        %2675 = vmatprep.mubr.f32.mxu0 0.0
        %v2676 = vand.u32 %v2003, 4294901760
        %2677 = vmatmul.mubr.f32.gmra.mxu0 %v2676
        %v2678 = vpop.f32.mrf.mxu0
        %v2679 = vadd.f32 %v2578, %v2678
        %v2680 = vpop.f32.mrf.mxu0
        %v2681 = vadd.f32 %v2580, %v2680
        %2682 = vmatprep.mubr.f32.mxu0 0.0
        %v2683 = vand.u32 %v2006, 4294901760
        %2684 = vmatmul.mubr.f32.gmra.mxu0 %v2683
        %v2685 = vpop.f32.mrf.mxu0
        %v2686 = vadd.f32 %v2585, %v2685
        %v2687 = vpop.f32.mrf.mxu0
        %v2688 = vadd.f32 %v2587, %v2687
        %2689 = vmatprep.mubr.f32.mxu0 0.0
        %v2690 = vand.u32 %v2009, 4294901760
        %2691 = vmatmul.mubr.f32.gmra.mxu0 %v2690
        %v2692 = vpop.f32.mrf.mxu0
        %v2693 = vadd.f32 %v2592, %v2692
        %v2694 = vpop.f32.mrf.mxu0
        %v2695 = vadd.f32 %v2594, %v2694
        %2696 = vmatprep.mubr.f32.mxu0 0.0
        %v2697 = vand.u32 %v2012, 4294901760
        %2698 = vmatmul.mubr.f32.gmra.mxu0 %v2697
        %v2699 = vpop.f32.mrf.mxu0
        %v2700 = vadd.f32 %v2599, %v2699
        %v2701 = vpop.f32.mrf.mxu0
        %v2702 = vadd.f32 %v2601, %v2701
        %2703 = vdwg.mxu0
        %2704 = vmatprep.subr.mxu0 0.0
        %2705 = vmatpush1.msra.mxu0 0.0
        %2706 = vmatprep.subr.mxu0 0.0
        %2707 = vmatpush1.msra.mxu0 0.0
        %2708 = vmatprep.subr.mxu0 0.0
        %2709 = vmatpush1.msra.mxu0 0.0
        %2710 = vmatprep.subr.mxu0 0.0
        %2711 = vmatpush1.msra.mxu0 0.0
        %2712 = vmatprep.subr.mxu0 0.0
        %2713 = vmatpush1.msra.mxu0 0.0
        %2714 = vmatprep.subr.mxu0 0.0
        %2715 = vmatpush1.msra.mxu0 0.0
        %2716 = vmatprep.subr.mxu0 0.0
        %2717 = vmatpush1.msra.mxu0 0.0
        %2718 = vmatprep.subr.mxu0 0.0
        %2719 = vmatpush1.msra.mxu0 0.0
        %2720 = vmatprep.subr.mxu0 0.0
        %2721 = vmatpush1.msra.mxu0 0.0
        %2722 = vmatprep.subr.mxu0 0.0
        %2723 = vmatpush1.msra.mxu0 0.0
        %2724 = vmatprep.subr.mxu0 0.0
        %2725 = vmatpush1.msra.mxu0 0.0
        %2726 = vmatprep.subr.mxu0 0.0
        %2727 = vmatpush1.msra.mxu0 0.0
        %v2728 = vand.u32 %v1971, 4294901760
        %2729 = vmatprep.subr.mxu0 %v2728
        %v2730 = vand.u32 %v1970, 4294901760
        %2731 = vmatpush1.msra.mxu0 %v2730
        %v2732 = vand.u32 %v1967, 4294901760
        %2733 = vmatprep.subr.mxu0 %v2732
        %v2734 = vand.u32 %v1966, 4294901760
        %2735 = vmatpush1.msra.mxu0 %v2734
        %v2736 = vand.u32 %v1963, 4294901760
        %2737 = vmatprep.subr.mxu0 %v2736
        %v2738 = vand.u32 %v1962, 4294901760
        %2739 = vmatpush1.msra.mxu0 %v2738
        %v2740 = vand.u32 %v1959, 4294901760
        %2741 = vmatprep.subr.mxu0 %v2740
        %v2742 = vand.u32 %v1958, 4294901760
        %2743 = vmatpush1.msra.mxu0 %v2742
        %2744 = vmatprep.subr.mxu0 0.0
        %2745 = vmatpush2.msra.mxu0 0.0
        %2746 = vmatprep.subr.mxu0 0.0
        %2747 = vmatpush2.msra.mxu0 0.0
        %2748 = vmatprep.subr.mxu0 0.0
        %2749 = vmatpush2.msra.mxu0 0.0
        %2750 = vmatprep.subr.mxu0 0.0
        %2751 = vmatpush2.msra.mxu0 0.0
        %2752 = vmatprep.subr.mxu0 0.0
        %2753 = vmatpush2.msra.mxu0 0.0
        %2754 = vmatprep.subr.mxu0 0.0
        %2755 = vmatpush2.msra.mxu0 0.0
        %2756 = vmatprep.subr.mxu0 0.0
        %2757 = vmatpush2.msra.mxu0 0.0
        %2758 = vmatprep.subr.mxu0 0.0
        %2759 = vmatpush2.msra.mxu0 0.0
        %2760 = vmatprep.subr.mxu0 0.0
        %2761 = vmatpush2.msra.mxu0 0.0
        %2762 = vmatprep.subr.mxu0 0.0
        %2763 = vmatpush2.msra.mxu0 0.0
        %2764 = vmatprep.subr.mxu0 0.0
        %2765 = vmatpush2.msra.mxu0 0.0
        %2766 = vmatprep.subr.mxu0 0.0
        %2767 = vmatpush2.msra.mxu0 0.0
        %2768 = vmatprep.subr.mxu0 0.0
        %2769 = vmatpush2.msra.mxu0 0.0
        %2770 = vmatprep.subr.mxu0 0.0
        %2771 = vmatpush2.msra.mxu0 0.0
        %2772 = vmatprep.subr.mxu0 0.0
        %2773 = vmatpush2.msra.mxu0 0.0
        %2774 = vmatprep.subr.mxu0 0.0
        %2775 = vmatpush2.msra.mxu0 0.0
        %2776 = vmatprep.mubr.f32.mxu0 0.0
        %v2777 = vand.u32 %v2003, 4294901760
        %v2778 = vsub.f32 %v2003, %v2777
        %v2779 = vand.u32 %v2778, 4294901760
        %v2780 = vsub.f32 %v2778, %v2779
        %v2781 = vand.u32 %v2780, 4294901760
        %2782 = vmatmul.mubr.f32.gmra.mxu0 %v2781
        %v2783 = vpop.f32.mrf.mxu0
        %v2784 = vadd.f32 %v1985, %v2783
        %v2785 = vpop.f32.mrf.mxu0
        %v2786 = vadd.f32 %v1985, %v2785
        %2787 = vmatprep.mubr.f32.mxu0 0.0
        %v2788 = vand.u32 %v2006, 4294901760
        %v2789 = vsub.f32 %v2006, %v2788
        %v2790 = vand.u32 %v2789, 4294901760
        %v2791 = vsub.f32 %v2789, %v2790
        %v2792 = vand.u32 %v2791, 4294901760
        %2793 = vmatmul.mubr.f32.gmra.mxu0 %v2792
        %v2794 = vpop.f32.mrf.mxu0
        %v2795 = vadd.f32 %v1990, %v2794
        %v2796 = vpop.f32.mrf.mxu0
        %v2797 = vadd.f32 %v1990, %v2796
        %2798 = vmatprep.mubr.f32.mxu0 0.0
        %v2799 = vand.u32 %v2009, 4294901760
        %v2800 = vsub.f32 %v2009, %v2799
        %v2801 = vand.u32 %v2800, 4294901760
        %v2802 = vsub.f32 %v2800, %v2801
        %v2803 = vand.u32 %v2802, 4294901760
        %2804 = vmatmul.mubr.f32.gmra.mxu0 %v2803
        %v2805 = vpop.f32.mrf.mxu0
        %v2806 = vadd.f32 %v1995, %v2805
        %v2807 = vpop.f32.mrf.mxu0
        %v2808 = vadd.f32 %v1995, %v2807
        %2809 = vmatprep.mubr.f32.mxu0 0.0
        %v2810 = vand.u32 %v2012, 4294901760
        %v2811 = vsub.f32 %v2012, %v2810
        %v2812 = vand.u32 %v2811, 4294901760
        %v2813 = vsub.f32 %v2811, %v2812
        %v2814 = vand.u32 %v2813, 4294901760
        %2815 = vmatmul.mubr.f32.gmra.mxu0 %v2814
        %v2816 = vpop.f32.mrf.mxu0
        %v2817 = vadd.f32 %v2000, %v2816
        %v2818 = vpop.f32.mrf.mxu0
        %v2819 = vadd.f32 %v2000, %v2818
        %2820 = vdwg.mxu0
        %2821 = vmatprep.subr.mxu0 0.0
        %2822 = vmatpush1.msra.mxu0 0.0
        %2823 = vmatprep.subr.mxu0 0.0
        %2824 = vmatpush1.msra.mxu0 0.0
        %2825 = vmatprep.subr.mxu0 0.0
        %2826 = vmatpush1.msra.mxu0 0.0
        %2827 = vmatprep.subr.mxu0 0.0
        %2828 = vmatpush1.msra.mxu0 0.0
        %2829 = vmatprep.subr.mxu0 0.0
        %2830 = vmatpush1.msra.mxu0 0.0
        %2831 = vmatprep.subr.mxu0 0.0
        %2832 = vmatpush1.msra.mxu0 0.0
        %2833 = vmatprep.subr.mxu0 0.0
        %2834 = vmatpush1.msra.mxu0 0.0
        %2835 = vmatprep.subr.mxu0 0.0
        %2836 = vmatpush1.msra.mxu0 0.0
        %2837 = vmatprep.subr.mxu0 0.0
        %2838 = vmatpush1.msra.mxu0 0.0
        %2839 = vmatprep.subr.mxu0 0.0
        %2840 = vmatpush1.msra.mxu0 0.0
        %2841 = vmatprep.subr.mxu0 0.0
        %2842 = vmatpush1.msra.mxu0 0.0
        %2843 = vmatprep.subr.mxu0 0.0
        %2844 = vmatpush1.msra.mxu0 0.0
        %v2845 = vand.u32 %v1971, 4294901760
        %v2846 = vsub.f32 %v1971, %v2845
        %v2847 = vand.u32 %v2846, 4294901760
        %v2848 = vsub.f32 %v2846, %v2847
        %v2849 = vand.u32 %v2848, 4294901760
        %2850 = vmatprep.subr.mxu0 %v2849
        %v2851 = vand.u32 %v1970, 4294901760
        %v2852 = vsub.f32 %v1970, %v2851
        %v2853 = vand.u32 %v2852, 4294901760
        %v2854 = vsub.f32 %v2852, %v2853
        %v2855 = vand.u32 %v2854, 4294901760
        %2856 = vmatpush1.msra.mxu0 %v2855
        %v2857 = vand.u32 %v1967, 4294901760
        %v2858 = vsub.f32 %v1967, %v2857
        %v2859 = vand.u32 %v2858, 4294901760
        %v2860 = vsub.f32 %v2858, %v2859
        %v2861 = vand.u32 %v2860, 4294901760
        %2862 = vmatprep.subr.mxu0 %v2861
        %v2863 = vand.u32 %v1966, 4294901760
        %v2864 = vsub.f32 %v1966, %v2863
        %v2865 = vand.u32 %v2864, 4294901760
        %v2866 = vsub.f32 %v2864, %v2865
        %v2867 = vand.u32 %v2866, 4294901760
        %2868 = vmatpush1.msra.mxu0 %v2867
        %v2869 = vand.u32 %v1963, 4294901760
        %v2870 = vsub.f32 %v1963, %v2869
        %v2871 = vand.u32 %v2870, 4294901760
        %v2872 = vsub.f32 %v2870, %v2871
        %v2873 = vand.u32 %v2872, 4294901760
        %2874 = vmatprep.subr.mxu0 %v2873
        %v2875 = vand.u32 %v1962, 4294901760
        %v2876 = vsub.f32 %v1962, %v2875
        %v2877 = vand.u32 %v2876, 4294901760
        %v2878 = vsub.f32 %v2876, %v2877
        %v2879 = vand.u32 %v2878, 4294901760
        %2880 = vmatpush1.msra.mxu0 %v2879
        %v2881 = vand.u32 %v1959, 4294901760
        %v2882 = vsub.f32 %v1959, %v2881
        %v2883 = vand.u32 %v2882, 4294901760
        %v2884 = vsub.f32 %v2882, %v2883
        %v2885 = vand.u32 %v2884, 4294901760
        %2886 = vmatprep.subr.mxu0 %v2885
        %v2887 = vand.u32 %v1958, 4294901760
        %v2888 = vsub.f32 %v1958, %v2887
        %v2889 = vand.u32 %v2888, 4294901760
        %v2890 = vsub.f32 %v2888, %v2889
        %v2891 = vand.u32 %v2890, 4294901760
        %2892 = vmatpush1.msra.mxu0 %v2891
        %2893 = vmatprep.subr.mxu0 0.0
        %2894 = vmatpush2.msra.mxu0 0.0
        %2895 = vmatprep.subr.mxu0 0.0
        %2896 = vmatpush2.msra.mxu0 0.0
        %2897 = vmatprep.subr.mxu0 0.0
        %2898 = vmatpush2.msra.mxu0 0.0
        %2899 = vmatprep.subr.mxu0 0.0
        %2900 = vmatpush2.msra.mxu0 0.0
        %2901 = vmatprep.subr.mxu0 0.0
        %2902 = vmatpush2.msra.mxu0 0.0
        %2903 = vmatprep.subr.mxu0 0.0
        %2904 = vmatpush2.msra.mxu0 0.0
        %2905 = vmatprep.subr.mxu0 0.0
        %2906 = vmatpush2.msra.mxu0 0.0
        %2907 = vmatprep.subr.mxu0 0.0
        %2908 = vmatpush2.msra.mxu0 0.0
        %2909 = vmatprep.subr.mxu0 0.0
        %2910 = vmatpush2.msra.mxu0 0.0
        %2911 = vmatprep.subr.mxu0 0.0
        %2912 = vmatpush2.msra.mxu0 0.0
        %2913 = vmatprep.subr.mxu0 0.0
        %2914 = vmatpush2.msra.mxu0 0.0
        %2915 = vmatprep.subr.mxu0 0.0
        %2916 = vmatpush2.msra.mxu0 0.0
        %2917 = vmatprep.subr.mxu0 0.0
        %2918 = vmatpush2.msra.mxu0 0.0
        %2919 = vmatprep.subr.mxu0 0.0
        %2920 = vmatpush2.msra.mxu0 0.0
        %2921 = vmatprep.subr.mxu0 0.0
        %2922 = vmatpush2.msra.mxu0 0.0
        %2923 = vmatprep.subr.mxu0 0.0
        %2924 = vmatpush2.msra.mxu0 0.0
        %2925 = vmatprep.mubr.f32.mxu0 0.0
        %v2926 = vand.u32 %v2003, 4294901760
        %2927 = vmatmul.mubr.f32.gmra.mxu0 %v2926
        %v2928 = vpop.f32.mrf.mxu0
        %v2929 = vadd.f32 %v2784, %v2928
        %v2930 = vpop.f32.mrf.mxu0
        %v2931 = vadd.f32 %v2786, %v2930
        %2932 = vmatprep.mubr.f32.mxu0 0.0
        %v2933 = vand.u32 %v2006, 4294901760
        %2934 = vmatmul.mubr.f32.gmra.mxu0 %v2933
        %v2935 = vpop.f32.mrf.mxu0
        %v2936 = vadd.f32 %v2795, %v2935
        %v2937 = vpop.f32.mrf.mxu0
        %v2938 = vadd.f32 %v2797, %v2937
        %2939 = vmatprep.mubr.f32.mxu0 0.0
        %v2940 = vand.u32 %v2009, 4294901760
        %2941 = vmatmul.mubr.f32.gmra.mxu0 %v2940
        %v2942 = vpop.f32.mrf.mxu0
        %v2943 = vadd.f32 %v2806, %v2942
        %v2944 = vpop.f32.mrf.mxu0
        %v2945 = vadd.f32 %v2808, %v2944
        %2946 = vmatprep.mubr.f32.mxu0 0.0
        %v2947 = vand.u32 %v2012, 4294901760
        %2948 = vmatmul.mubr.f32.gmra.mxu0 %v2947
        %v2949 = vpop.f32.mrf.mxu0
        %v2950 = vadd.f32 %v2817, %v2949
        %v2951 = vpop.f32.mrf.mxu0
        %v2952 = vadd.f32 %v2819, %v2951
        %2953 = vdwg.mxu0
        %2954 = vmatprep.subr.mxu0 0.0
        %2955 = vmatpush1.msra.mxu0 0.0
        %2956 = vmatprep.subr.mxu0 0.0
        %2957 = vmatpush1.msra.mxu0 0.0
        %2958 = vmatprep.subr.mxu0 0.0
        %2959 = vmatpush1.msra.mxu0 0.0
        %2960 = vmatprep.subr.mxu0 0.0
        %2961 = vmatpush1.msra.mxu0 0.0
        %2962 = vmatprep.subr.mxu0 0.0
        %2963 = vmatpush1.msra.mxu0 0.0
        %2964 = vmatprep.subr.mxu0 0.0
        %2965 = vmatpush1.msra.mxu0 0.0
        %2966 = vmatprep.subr.mxu0 0.0
        %2967 = vmatpush1.msra.mxu0 0.0
        %2968 = vmatprep.subr.mxu0 0.0
        %2969 = vmatpush1.msra.mxu0 0.0
        %2970 = vmatprep.subr.mxu0 0.0
        %2971 = vmatpush1.msra.mxu0 0.0
        %2972 = vmatprep.subr.mxu0 0.0
        %2973 = vmatpush1.msra.mxu0 0.0
        %2974 = vmatprep.subr.mxu0 0.0
        %2975 = vmatpush1.msra.mxu0 0.0
        %2976 = vmatprep.subr.mxu0 0.0
        %2977 = vmatpush1.msra.mxu0 0.0
        %v2978 = vand.u32 %v1971, 4294901760
        %v2979 = vsub.f32 %v1971, %v2978
        %2980 = vmatprep.subr.mxu0 %v2979
        %v2981 = vand.u32 %v1970, 4294901760
        %v2982 = vsub.f32 %v1970, %v2981
        %2983 = vmatpush1.msra.mxu0 %v2982
        %v2984 = vand.u32 %v1967, 4294901760
        %v2985 = vsub.f32 %v1967, %v2984
        %2986 = vmatprep.subr.mxu0 %v2985
        %v2987 = vand.u32 %v1966, 4294901760
        %v2988 = vsub.f32 %v1966, %v2987
        %2989 = vmatpush1.msra.mxu0 %v2988
        %v2990 = vand.u32 %v1963, 4294901760
        %v2991 = vsub.f32 %v1963, %v2990
        %2992 = vmatprep.subr.mxu0 %v2991
        %v2993 = vand.u32 %v1962, 4294901760
        %v2994 = vsub.f32 %v1962, %v2993
        %2995 = vmatpush1.msra.mxu0 %v2994
        %v2996 = vand.u32 %v1959, 4294901760
        %v2997 = vsub.f32 %v1959, %v2996
        %2998 = vmatprep.subr.mxu0 %v2997
        %v2999 = vand.u32 %v1958, 4294901760
        %v3000 = vsub.f32 %v1958, %v2999
        %3001 = vmatpush1.msra.mxu0 %v3000
        %3002 = vmatprep.subr.mxu0 0.0
        %3003 = vmatpush2.msra.mxu0 0.0
        %3004 = vmatprep.subr.mxu0 0.0
        %3005 = vmatpush2.msra.mxu0 0.0
        %3006 = vmatprep.subr.mxu0 0.0
        %3007 = vmatpush2.msra.mxu0 0.0
        %3008 = vmatprep.subr.mxu0 0.0
        %3009 = vmatpush2.msra.mxu0 0.0
        %3010 = vmatprep.subr.mxu0 0.0
        %3011 = vmatpush2.msra.mxu0 0.0
        %3012 = vmatprep.subr.mxu0 0.0
        %3013 = vmatpush2.msra.mxu0 0.0
        %3014 = vmatprep.subr.mxu0 0.0
        %3015 = vmatpush2.msra.mxu0 0.0
        %3016 = vmatprep.subr.mxu0 0.0
        %3017 = vmatpush2.msra.mxu0 0.0
        %3018 = vmatprep.subr.mxu0 0.0
        %3019 = vmatpush2.msra.mxu0 0.0
        %3020 = vmatprep.subr.mxu0 0.0
        %3021 = vmatpush2.msra.mxu0 0.0
        %3022 = vmatprep.subr.mxu0 0.0
        %3023 = vmatpush2.msra.mxu0 0.0
        %3024 = vmatprep.subr.mxu0 0.0
        %3025 = vmatpush2.msra.mxu0 0.0
        %3026 = vmatprep.subr.mxu0 0.0
        %3027 = vmatpush2.msra.mxu0 0.0
        %3028 = vmatprep.subr.mxu0 0.0
        %3029 = vmatpush2.msra.mxu0 0.0
        %3030 = vmatprep.subr.mxu0 0.0
        %3031 = vmatpush2.msra.mxu0 0.0
        %3032 = vmatprep.subr.mxu0 0.0
        %3033 = vmatpush2.msra.mxu0 0.0
        %3034 = vmatprep.mubr.f32.mxu0 0.0
        %v3035 = vand.u32 %v2003, 4294901760
        %v3036 = vsub.f32 %v2003, %v3035
        %3037 = vmatmul.mubr.f32.gmra.mxu0 %v3036
        %v3038 = vpop.f32.mrf.mxu0
        %v3039 = vadd.f32 %v2929, %v3038
        %v3040 = vpop.f32.mrf.mxu0
        %v3041 = vadd.f32 %v2931, %v3040
        %3042 = vmatprep.mubr.f32.mxu0 0.0
        %v3043 = vand.u32 %v2006, 4294901760
        %v3044 = vsub.f32 %v2006, %v3043
        %3045 = vmatmul.mubr.f32.gmra.mxu0 %v3044
        %v3046 = vpop.f32.mrf.mxu0
        %v3047 = vadd.f32 %v2936, %v3046
        %v3048 = vpop.f32.mrf.mxu0
        %v3049 = vadd.f32 %v2938, %v3048
        %3050 = vmatprep.mubr.f32.mxu0 0.0
        %v3051 = vand.u32 %v2009, 4294901760
        %v3052 = vsub.f32 %v2009, %v3051
        %3053 = vmatmul.mubr.f32.gmra.mxu0 %v3052
        %v3054 = vpop.f32.mrf.mxu0
        %v3055 = vadd.f32 %v2943, %v3054
        %v3056 = vpop.f32.mrf.mxu0
        %v3057 = vadd.f32 %v2945, %v3056
        %3058 = vmatprep.mubr.f32.mxu0 0.0
        %v3059 = vand.u32 %v2012, 4294901760
        %v3060 = vsub.f32 %v2012, %v3059
        %3061 = vmatmul.mubr.f32.gmra.mxu0 %v3060
        %v3062 = vpop.f32.mrf.mxu0
        %v3063 = vadd.f32 %v2950, %v3062
        %v3064 = vpop.f32.mrf.mxu0
        %v3065 = vadd.f32 %v2952, %v3064
        %3066 = vdwg.mxu0
        %3067 = vmatprep.subr.mxu0 0.0
        %3068 = vmatpush1.msra.mxu0 0.0
        %3069 = vmatprep.subr.mxu0 0.0
        %3070 = vmatpush1.msra.mxu0 0.0
        %3071 = vmatprep.subr.mxu0 0.0
        %3072 = vmatpush1.msra.mxu0 0.0
        %3073 = vmatprep.subr.mxu0 0.0
        %3074 = vmatpush1.msra.mxu0 0.0
        %3075 = vmatprep.subr.mxu0 0.0
        %3076 = vmatpush1.msra.mxu0 0.0
        %3077 = vmatprep.subr.mxu0 0.0
        %3078 = vmatpush1.msra.mxu0 0.0
        %3079 = vmatprep.subr.mxu0 0.0
        %3080 = vmatpush1.msra.mxu0 0.0
        %3081 = vmatprep.subr.mxu0 0.0
        %3082 = vmatpush1.msra.mxu0 0.0
        %3083 = vmatprep.subr.mxu0 0.0
        %3084 = vmatpush1.msra.mxu0 0.0
        %3085 = vmatprep.subr.mxu0 0.0
        %3086 = vmatpush1.msra.mxu0 0.0
        %3087 = vmatprep.subr.mxu0 0.0
        %3088 = vmatpush1.msra.mxu0 0.0
        %3089 = vmatprep.subr.mxu0 0.0
        %3090 = vmatpush1.msra.mxu0 0.0
        %v3091 = vand.u32 %v1971, 4294901760
        %3092 = vmatprep.subr.mxu0 %v3091
        %v3093 = vand.u32 %v1970, 4294901760
        %3094 = vmatpush1.msra.mxu0 %v3093
        %v3095 = vand.u32 %v1967, 4294901760
        %3096 = vmatprep.subr.mxu0 %v3095
        %v3097 = vand.u32 %v1966, 4294901760
        %3098 = vmatpush1.msra.mxu0 %v3097
        %v3099 = vand.u32 %v1963, 4294901760
        %3100 = vmatprep.subr.mxu0 %v3099
        %v3101 = vand.u32 %v1962, 4294901760
        %3102 = vmatpush1.msra.mxu0 %v3101
        %v3103 = vand.u32 %v1959, 4294901760
        %3104 = vmatprep.subr.mxu0 %v3103
        %v3105 = vand.u32 %v1958, 4294901760
        %3106 = vmatpush1.msra.mxu0 %v3105
        %3107 = vmatprep.subr.mxu0 0.0
        %3108 = vmatpush2.msra.mxu0 0.0
        %3109 = vmatprep.subr.mxu0 0.0
        %3110 = vmatpush2.msra.mxu0 0.0
        %3111 = vmatprep.subr.mxu0 0.0
        %3112 = vmatpush2.msra.mxu0 0.0
        %3113 = vmatprep.subr.mxu0 0.0
        %3114 = vmatpush2.msra.mxu0 0.0
        %3115 = vmatprep.subr.mxu0 0.0
        %3116 = vmatpush2.msra.mxu0 0.0
        %3117 = vmatprep.subr.mxu0 0.0
        %3118 = vmatpush2.msra.mxu0 0.0
        %3119 = vmatprep.subr.mxu0 0.0
        %3120 = vmatpush2.msra.mxu0 0.0
        %3121 = vmatprep.subr.mxu0 0.0
        %3122 = vmatpush2.msra.mxu0 0.0
        %3123 = vmatprep.subr.mxu0 0.0
        %3124 = vmatpush2.msra.mxu0 0.0
        %3125 = vmatprep.subr.mxu0 0.0
        %3126 = vmatpush2.msra.mxu0 0.0
        %3127 = vmatprep.subr.mxu0 0.0
        %3128 = vmatpush2.msra.mxu0 0.0
        %3129 = vmatprep.subr.mxu0 0.0
        %3130 = vmatpush2.msra.mxu0 0.0
        %3131 = vmatprep.subr.mxu0 0.0
        %3132 = vmatpush2.msra.mxu0 0.0
        %3133 = vmatprep.subr.mxu0 0.0
        %3134 = vmatpush2.msra.mxu0 0.0
        %3135 = vmatprep.subr.mxu0 0.0
        %3136 = vmatpush2.msra.mxu0 0.0
        %3137 = vmatprep.subr.mxu0 0.0
        %3138 = vmatpush2.msra.mxu0 0.0
        %3139 = vmatprep.mubr.f32.mxu0 0.0
        %v3140 = vand.u32 %v2003, 4294901760
        %v3141 = vsub.f32 %v2003, %v3140
        %v3142 = vand.u32 %v3141, 4294901760
        %3143 = vmatmul.mubr.f32.gmra.mxu0 %v3142
        %v3144 = vpop.f32.mrf.mxu0
        %v3145 = vadd.f32 %v3039, %v3144
        %v3146 = vpop.f32.mrf.mxu0
        %v3147 = vadd.f32 %v3041, %v3146
        %3148 = vmatprep.mubr.f32.mxu0 0.0
        %v3149 = vand.u32 %v2006, 4294901760
        %v3150 = vsub.f32 %v2006, %v3149
        %v3151 = vand.u32 %v3150, 4294901760
        %3152 = vmatmul.mubr.f32.gmra.mxu0 %v3151
        %v3153 = vpop.f32.mrf.mxu0
        %v3154 = vadd.f32 %v3047, %v3153
        %v3155 = vpop.f32.mrf.mxu0
        %v3156 = vadd.f32 %v3049, %v3155
        %3157 = vmatprep.mubr.f32.mxu0 0.0
        %v3158 = vand.u32 %v2009, 4294901760
        %v3159 = vsub.f32 %v2009, %v3158
        %v3160 = vand.u32 %v3159, 4294901760
        %3161 = vmatmul.mubr.f32.gmra.mxu0 %v3160
        %v3162 = vpop.f32.mrf.mxu0
        %v3163 = vadd.f32 %v3055, %v3162
        %v3164 = vpop.f32.mrf.mxu0
        %v3165 = vadd.f32 %v3057, %v3164
        %3166 = vmatprep.mubr.f32.mxu0 0.0
        %v3167 = vand.u32 %v2012, 4294901760
        %v3168 = vsub.f32 %v2012, %v3167
        %v3169 = vand.u32 %v3168, 4294901760
        %3170 = vmatmul.mubr.f32.gmra.mxu0 %v3169
        %v3171 = vpop.f32.mrf.mxu0
        %v3172 = vadd.f32 %v3063, %v3171
        %v3173 = vpop.f32.mrf.mxu0
        %v3174 = vadd.f32 %v3065, %v3173
        %3175 = vdwg.mxu0
        %3176 = vmatprep.subr.mxu0 0.0
        %3177 = vmatpush1.msra.mxu0 0.0
        %3178 = vmatprep.subr.mxu0 0.0
        %3179 = vmatpush1.msra.mxu0 0.0
        %3180 = vmatprep.subr.mxu0 0.0
        %3181 = vmatpush1.msra.mxu0 0.0
        %3182 = vmatprep.subr.mxu0 0.0
        %3183 = vmatpush1.msra.mxu0 0.0
        %3184 = vmatprep.subr.mxu0 0.0
        %3185 = vmatpush1.msra.mxu0 0.0
        %3186 = vmatprep.subr.mxu0 0.0
        %3187 = vmatpush1.msra.mxu0 0.0
        %3188 = vmatprep.subr.mxu0 0.0
        %3189 = vmatpush1.msra.mxu0 0.0
        %3190 = vmatprep.subr.mxu0 0.0
        %3191 = vmatpush1.msra.mxu0 0.0
        %3192 = vmatprep.subr.mxu0 0.0
        %3193 = vmatpush1.msra.mxu0 0.0
        %3194 = vmatprep.subr.mxu0 0.0
        %3195 = vmatpush1.msra.mxu0 0.0
        %3196 = vmatprep.subr.mxu0 0.0
        %3197 = vmatpush1.msra.mxu0 0.0
        %3198 = vmatprep.subr.mxu0 0.0
        %3199 = vmatpush1.msra.mxu0 0.0
        %v3200 = vand.u32 %v1971, 4294901760
        %v3201 = vsub.f32 %v1971, %v3200
        %v3202 = vand.u32 %v3201, 4294901760
        %3203 = vmatprep.subr.mxu0 %v3202
        %v3204 = vand.u32 %v1970, 4294901760
        %v3205 = vsub.f32 %v1970, %v3204
        %v3206 = vand.u32 %v3205, 4294901760
        %3207 = vmatpush1.msra.mxu0 %v3206
        %v3208 = vand.u32 %v1967, 4294901760
        %v3209 = vsub.f32 %v1967, %v3208
        %v3210 = vand.u32 %v3209, 4294901760
        %3211 = vmatprep.subr.mxu0 %v3210
        %v3212 = vand.u32 %v1966, 4294901760
        %v3213 = vsub.f32 %v1966, %v3212
        %v3214 = vand.u32 %v3213, 4294901760
        %3215 = vmatpush1.msra.mxu0 %v3214
        %v3216 = vand.u32 %v1963, 4294901760
        %v3217 = vsub.f32 %v1963, %v3216
        %v3218 = vand.u32 %v3217, 4294901760
        %3219 = vmatprep.subr.mxu0 %v3218
        %v3220 = vand.u32 %v1962, 4294901760
        %v3221 = vsub.f32 %v1962, %v3220
        %v3222 = vand.u32 %v3221, 4294901760
        %3223 = vmatpush1.msra.mxu0 %v3222
        %v3224 = vand.u32 %v1959, 4294901760
        %v3225 = vsub.f32 %v1959, %v3224
        %v3226 = vand.u32 %v3225, 4294901760
        %3227 = vmatprep.subr.mxu0 %v3226
        %v3228 = vand.u32 %v1958, 4294901760
        %v3229 = vsub.f32 %v1958, %v3228
        %v3230 = vand.u32 %v3229, 4294901760
        %3231 = vmatpush1.msra.mxu0 %v3230
        %3232 = vmatprep.subr.mxu0 0.0
        %3233 = vmatpush2.msra.mxu0 0.0
        %3234 = vmatprep.subr.mxu0 0.0
        %3235 = vmatpush2.msra.mxu0 0.0
        %3236 = vmatprep.subr.mxu0 0.0
        %3237 = vmatpush2.msra.mxu0 0.0
        %3238 = vmatprep.subr.mxu0 0.0
        %3239 = vmatpush2.msra.mxu0 0.0
        %3240 = vmatprep.subr.mxu0 0.0
        %3241 = vmatpush2.msra.mxu0 0.0
        %3242 = vmatprep.subr.mxu0 0.0
        %3243 = vmatpush2.msra.mxu0 0.0
        %3244 = vmatprep.subr.mxu0 0.0
        %3245 = vmatpush2.msra.mxu0 0.0
        %3246 = vmatprep.subr.mxu0 0.0
        %3247 = vmatpush2.msra.mxu0 0.0
        %3248 = vmatprep.subr.mxu0 0.0
        %3249 = vmatpush2.msra.mxu0 0.0
        %3250 = vmatprep.subr.mxu0 0.0
        %3251 = vmatpush2.msra.mxu0 0.0
        %3252 = vmatprep.subr.mxu0 0.0
        %3253 = vmatpush2.msra.mxu0 0.0
        %3254 = vmatprep.subr.mxu0 0.0
        %3255 = vmatpush2.msra.mxu0 0.0
        %3256 = vmatprep.subr.mxu0 0.0
        %3257 = vmatpush2.msra.mxu0 0.0
        %3258 = vmatprep.subr.mxu0 0.0
        %3259 = vmatpush2.msra.mxu0 0.0
        %3260 = vmatprep.subr.mxu0 0.0
        %3261 = vmatpush2.msra.mxu0 0.0
        %3262 = vmatprep.subr.mxu0 0.0
        %3263 = vmatpush2.msra.mxu0 0.0
        %3264 = vmatprep.mubr.f32.mxu0 0.0
        %v3265 = vand.u32 %v2003, 4294901760
        %3266 = vmatmul.mubr.f32.gmra.mxu0 %v3265
        %v3267 = vpop.f32.mrf.mxu0
        %v3268 = vadd.f32 %v3145, %v3267
        %v3269 = vpop.f32.mrf.mxu0
        %v3270 = vadd.f32 %v3147, %v3269
        %3271 = vmatprep.mubr.f32.mxu0 0.0
        %v3272 = vand.u32 %v2006, 4294901760
        %3273 = vmatmul.mubr.f32.gmra.mxu0 %v3272
        %v3274 = vpop.f32.mrf.mxu0
        %v3275 = vadd.f32 %v3154, %v3274
        %v3276 = vpop.f32.mrf.mxu0
        %v3277 = vadd.f32 %v3156, %v3276
        %3278 = vmatprep.mubr.f32.mxu0 0.0
        %v3279 = vand.u32 %v2009, 4294901760
        %3280 = vmatmul.mubr.f32.gmra.mxu0 %v3279
        %v3281 = vpop.f32.mrf.mxu0
        %v3282 = vadd.f32 %v3163, %v3281
        %v3283 = vpop.f32.mrf.mxu0
        %v3284 = vadd.f32 %v3165, %v3283
        %3285 = vmatprep.mubr.f32.mxu0 0.0
        %v3286 = vand.u32 %v2012, 4294901760
        %3287 = vmatmul.mubr.f32.gmra.mxu0 %v3286
        %v3288 = vpop.f32.mrf.mxu0
        %v3289 = vadd.f32 %v3172, %v3288
        %v3290 = vpop.f32.mrf.mxu0
        %v3291 = vadd.f32 %v3174, %v3290
        %3292 = vdwg.mxu0
        %3293 = vmatprep.subr.mxu0 0.0
        %3294 = vmatpush1.msra.mxu0 0.0
        %3295 = vmatprep.subr.mxu0 0.0
        %3296 = vmatpush1.msra.mxu0 0.0
        %3297 = vmatprep.subr.mxu0 0.0
        %3298 = vmatpush1.msra.mxu0 0.0
        %3299 = vmatprep.subr.mxu0 0.0
        %3300 = vmatpush1.msra.mxu0 0.0
        %3301 = vmatprep.subr.mxu0 0.0
        %3302 = vmatpush1.msra.mxu0 0.0
        %3303 = vmatprep.subr.mxu0 0.0
        %3304 = vmatpush1.msra.mxu0 0.0
        %3305 = vmatprep.subr.mxu0 0.0
        %3306 = vmatpush1.msra.mxu0 0.0
        %3307 = vmatprep.subr.mxu0 0.0
        %3308 = vmatpush1.msra.mxu0 0.0
        %3309 = vmatprep.subr.mxu0 0.0
        %3310 = vmatpush1.msra.mxu0 0.0
        %3311 = vmatprep.subr.mxu0 0.0
        %3312 = vmatpush1.msra.mxu0 0.0
        %3313 = vmatprep.subr.mxu0 0.0
        %3314 = vmatpush1.msra.mxu0 0.0
        %3315 = vmatprep.subr.mxu0 0.0
        %3316 = vmatpush1.msra.mxu0 0.0
        %v3317 = vand.u32 %v1971, 4294901760
        %3318 = vmatprep.subr.mxu0 %v3317
        %v3319 = vand.u32 %v1970, 4294901760
        %3320 = vmatpush1.msra.mxu0 %v3319
        %v3321 = vand.u32 %v1967, 4294901760
        %3322 = vmatprep.subr.mxu0 %v3321
        %v3323 = vand.u32 %v1966, 4294901760
        %3324 = vmatpush1.msra.mxu0 %v3323
        %v3325 = vand.u32 %v1963, 4294901760
        %3326 = vmatprep.subr.mxu0 %v3325
        %v3327 = vand.u32 %v1962, 4294901760
        %3328 = vmatpush1.msra.mxu0 %v3327
        %v3329 = vand.u32 %v1959, 4294901760
        %3330 = vmatprep.subr.mxu0 %v3329
        %v3331 = vand.u32 %v1958, 4294901760
        %3332 = vmatpush1.msra.mxu0 %v3331
        %3333 = vmatprep.subr.mxu0 0.0
        %3334 = vmatpush2.msra.mxu0 0.0
        %3335 = vmatprep.subr.mxu0 0.0
        %3336 = vmatpush2.msra.mxu0 0.0
        %3337 = vmatprep.subr.mxu0 0.0
        %3338 = vmatpush2.msra.mxu0 0.0
        %3339 = vmatprep.subr.mxu0 0.0
        %3340 = vmatpush2.msra.mxu0 0.0
        %3341 = vmatprep.subr.mxu0 0.0
        %3342 = vmatpush2.msra.mxu0 0.0
        %3343 = vmatprep.subr.mxu0 0.0
        %3344 = vmatpush2.msra.mxu0 0.0
        %3345 = vmatprep.subr.mxu0 0.0
        %3346 = vmatpush2.msra.mxu0 0.0
        %3347 = vmatprep.subr.mxu0 0.0
        %3348 = vmatpush2.msra.mxu0 0.0
        %3349 = vmatprep.subr.mxu0 0.0
        %3350 = vmatpush2.msra.mxu0 0.0
        %3351 = vmatprep.subr.mxu0 0.0
        %3352 = vmatpush2.msra.mxu0 0.0
        %3353 = vmatprep.subr.mxu0 0.0
        %3354 = vmatpush2.msra.mxu0 0.0
        %3355 = vmatprep.subr.mxu0 0.0
        %3356 = vmatpush2.msra.mxu0 0.0
        %3357 = vmatprep.subr.mxu0 0.0
        %3358 = vmatpush2.msra.mxu0 0.0
        %3359 = vmatprep.subr.mxu0 0.0
        %3360 = vmatpush2.msra.mxu0 0.0
        %3361 = vmatprep.subr.mxu0 0.0
        %3362 = vmatpush2.msra.mxu0 0.0
        %3363 = vmatprep.subr.mxu0 0.0
        %3364 = vmatpush2.msra.mxu0 0.0
        %3365 = vmatprep.mubr.f32.mxu0 0.0
        %v3366 = vand.u32 %v2003, 4294901760
        %3367 = vmatmul.mubr.f32.gmra.mxu0 %v3366
        %v3368 = vpop.f32.mrf.mxu0
        %v3369 = vadd.f32 %v3268, %v3368
        %v3370 = vpop.f32.mrf.mxu0
        %v3371 = vadd.f32 %v3270, %v3370
        %3372 = vmatprep.mubr.f32.mxu0 0.0
        %v3373 = vand.u32 %v2006, 4294901760
        %3374 = vmatmul.mubr.f32.gmra.mxu0 %v3373
        %v3375 = vpop.f32.mrf.mxu0
        %v3376 = vadd.f32 %v3275, %v3375
        %v3377 = vpop.f32.mrf.mxu0
        %v3378 = vadd.f32 %v3277, %v3377
        %3379 = vmatprep.mubr.f32.mxu0 0.0
        %v3380 = vand.u32 %v2009, 4294901760
        %3381 = vmatmul.mubr.f32.gmra.mxu0 %v3380
        %v3382 = vpop.f32.mrf.mxu0
        %v3383 = vadd.f32 %v3282, %v3382
        %v3384 = vpop.f32.mrf.mxu0
        %v3385 = vadd.f32 %v3284, %v3384
        %3386 = vmatprep.mubr.f32.mxu0 0.0
        %v3387 = vand.u32 %v2012, 4294901760
        %3388 = vmatmul.mubr.f32.gmra.mxu0 %v3387
        %v3389 = vpop.f32.mrf.mxu0
        %v3390 = vadd.f32 %v3289, %v3389
        %v3391 = vpop.f32.mrf.mxu0
        %v3392 = vadd.f32 %v3291, %v3391
        %3393 = vdwg.mxu0
        %v3394 = vtanh.pop %v2679
        %v3395 = vtanh.pop %v2681
        %v3396 = vtanh.pop %v3369
        %v3397 = vtanh.pop %v3371
        %v3398 = vtanh.pop %v2686
        %v3399 = vtanh.pop %v2688
        %v3400 = vtanh.pop %v3376
        %v3401 = vtanh.pop %v3378
        %v3402 = vtanh.pop %v2693
        %v3403 = vtanh.pop %v2695
        %v3404 = vtanh.pop %v3383
        %v3405 = vtanh.pop %v3385
        %v3406 = vtanh.pop %v2700
        %v3407 = vtanh.pop %v2702
        %v3408 = vtanh.pop %v3390
        %v3409 = vtanh.pop %v3392
        %s3410 = scalar_lea.vmem %s4, 64
        %v3411 = vld [vmem:[%s3410] sm:$0xff]
        %v3412 = vld [vmem:[%s3410 + $0x8] sm:$0xff]
        %v3413 = vld [vmem:[%s3410 + $0x10] sm:$0xff]
        %v3414 = vld [vmem:[%s3410 + $0x18] sm:$0xff]
        %s3415 = scalar_lea.vmem %s5, 64
        %v3416 = vld [vmem:[%s3415] sm:$0xff]
        %v3417 = vld [vmem:[%s3415 + $0x8] sm:$0xff]
        %v3418 = vld [vmem:[%s3415 + $0x10] sm:$0xff]
        %v3419 = vld [vmem:[%s3415 + $0x18] sm:$0xff]
        %3421 = vset.pattern.permute.xlu0 0
        %3422 = vperm.xlu0 %3421, %v3416
        %v3423 = vpop.permute.xlu0 %3422
        %3426 = vset.pattern.permute.xlu0 0
        %3427 = vperm.xlu0 %3426, %v3417
        %v3428 = vpop.permute.xlu0 %3427
        %3431 = vset.pattern.permute.xlu0 0
        %3432 = vperm.xlu0 %3431, %v3418
        %v3433 = vpop.permute.xlu0 %3432
        %3436 = vset.pattern.permute.xlu0 0
        %3437 = vperm.xlu0 %3436, %v3419
        %v3438 = vpop.permute.xlu0 %3437
        %v3441 = vsel %vm563, %v3411, 0
        %v3444 = vsel %vm563, %v3412, 0
        %v3447 = vsel %vm563, %v3413, 0
        %v3450 = vsel %vm563, %v3414, 0
        %3452 = vmatprep.subr.mxu0 0.0
        %3453 = vmatpush1.msra.mxu0 0.0
        %3454 = vmatprep.subr.mxu0 0.0
        %3455 = vmatpush1.msra.mxu0 0.0
        %3456 = vmatprep.subr.mxu0 0.0
        %3457 = vmatpush1.msra.mxu0 0.0
        %3458 = vmatprep.subr.mxu0 0.0
        %3459 = vmatpush1.msra.mxu0 0.0
        %3460 = vmatprep.subr.mxu0 0.0
        %3461 = vmatpush1.msra.mxu0 0.0
        %3462 = vmatprep.subr.mxu0 0.0
        %3463 = vmatpush1.msra.mxu0 0.0
        %3464 = vmatprep.subr.mxu0 0.0
        %3465 = vmatpush1.msra.mxu0 0.0
        %3466 = vmatprep.subr.mxu0 0.0
        %3467 = vmatpush1.msra.mxu0 0.0
        %3468 = vmatprep.subr.mxu0 0.0
        %3469 = vmatpush1.msra.mxu0 0.0
        %3470 = vmatprep.subr.mxu0 0.0
        %3471 = vmatpush1.msra.mxu0 0.0
        %3472 = vmatprep.subr.mxu0 0.0
        %3473 = vmatpush1.msra.mxu0 0.0
        %3474 = vmatprep.subr.mxu0 0.0
        %3475 = vmatpush1.msra.mxu0 0.0
        %v3476 = vand.u32 %v3407, 4294901760
        %3477 = vmatprep.subr.mxu0 %v3476
        %v3478 = vand.u32 %v3406, 4294901760
        %3479 = vmatpush1.msra.mxu0 %v3478
        %v3480 = vand.u32 %v3403, 4294901760
        %3481 = vmatprep.subr.mxu0 %v3480
        %v3482 = vand.u32 %v3402, 4294901760
        %3483 = vmatpush1.msra.mxu0 %v3482
        %v3484 = vand.u32 %v3399, 4294901760
        %3485 = vmatprep.subr.mxu0 %v3484
        %v3486 = vand.u32 %v3398, 4294901760
        %3487 = vmatpush1.msra.mxu0 %v3486
        %v3488 = vand.u32 %v3395, 4294901760
        %3489 = vmatprep.subr.mxu0 %v3488
        %v3490 = vand.u32 %v3394, 4294901760
        %3491 = vmatpush1.msra.mxu0 %v3490
        %3492 = vmatprep.subr.mxu0 0.0
        %3493 = vmatpush2.msra.mxu0 0.0
        %3494 = vmatprep.subr.mxu0 0.0
        %3495 = vmatpush2.msra.mxu0 0.0
        %3496 = vmatprep.subr.mxu0 0.0
        %3497 = vmatpush2.msra.mxu0 0.0
        %3498 = vmatprep.subr.mxu0 0.0
        %3499 = vmatpush2.msra.mxu0 0.0
        %3500 = vmatprep.subr.mxu0 0.0
        %3501 = vmatpush2.msra.mxu0 0.0
        %3502 = vmatprep.subr.mxu0 0.0
        %3503 = vmatpush2.msra.mxu0 0.0
        %3504 = vmatprep.subr.mxu0 0.0
        %3505 = vmatpush2.msra.mxu0 0.0
        %3506 = vmatprep.subr.mxu0 0.0
        %3507 = vmatpush2.msra.mxu0 0.0
        %3508 = vmatprep.subr.mxu0 0.0
        %3509 = vmatpush2.msra.mxu0 0.0
        %3510 = vmatprep.subr.mxu0 0.0
        %3511 = vmatpush2.msra.mxu0 0.0
        %3512 = vmatprep.subr.mxu0 0.0
        %3513 = vmatpush2.msra.mxu0 0.0
        %3514 = vmatprep.subr.mxu0 0.0
        %3515 = vmatpush2.msra.mxu0 0.0
        %3516 = vmatprep.subr.mxu0 0.0
        %3517 = vmatpush2.msra.mxu0 0.0
        %3518 = vmatprep.subr.mxu0 0.0
        %3519 = vmatpush2.msra.mxu0 0.0
        %3520 = vmatprep.subr.mxu0 0.0
        %3521 = vmatpush2.msra.mxu0 0.0
        %3522 = vmatprep.subr.mxu0 0.0
        %3523 = vmatpush2.msra.mxu0 0.0
        %3524 = vmatprep.mubr.f32.mxu0 0.0
        %v3525 = vand.u32 %v3441, 4294901760
        %v3526 = vsub.f32 %v3441, %v3525
        %v3527 = vand.u32 %v3526, 4294901760
        %v3528 = vsub.f32 %v3526, %v3527
        %v3529 = vand.u32 %v3528, 4294901760
        %3530 = vmatmul.mubr.f32.gmra.mxu0 %v3529
        %v3531 = vpop.f32.mrf.mxu0
        %v3532 = vadd.f32 %v3423, %v3531
        %v3533 = vpop.f32.mrf.mxu0
        %v3534 = vadd.f32 %v3423, %v3533
        %3535 = vmatprep.mubr.f32.mxu0 0.0
        %v3536 = vand.u32 %v3444, 4294901760
        %v3537 = vsub.f32 %v3444, %v3536
        %v3538 = vand.u32 %v3537, 4294901760
        %v3539 = vsub.f32 %v3537, %v3538
        %v3540 = vand.u32 %v3539, 4294901760
        %3541 = vmatmul.mubr.f32.gmra.mxu0 %v3540
        %v3542 = vpop.f32.mrf.mxu0
        %v3543 = vadd.f32 %v3428, %v3542
        %v3544 = vpop.f32.mrf.mxu0
        %v3545 = vadd.f32 %v3428, %v3544
        %3546 = vmatprep.mubr.f32.mxu0 0.0
        %v3547 = vand.u32 %v3447, 4294901760
        %v3548 = vsub.f32 %v3447, %v3547
        %v3549 = vand.u32 %v3548, 4294901760
        %v3550 = vsub.f32 %v3548, %v3549
        %v3551 = vand.u32 %v3550, 4294901760
        %3552 = vmatmul.mubr.f32.gmra.mxu0 %v3551
        %v3553 = vpop.f32.mrf.mxu0
        %v3554 = vadd.f32 %v3433, %v3553
        %v3555 = vpop.f32.mrf.mxu0
        %v3556 = vadd.f32 %v3433, %v3555
        %3557 = vmatprep.mubr.f32.mxu0 0.0
        %v3558 = vand.u32 %v3450, 4294901760
        %v3559 = vsub.f32 %v3450, %v3558
        %v3560 = vand.u32 %v3559, 4294901760
        %v3561 = vsub.f32 %v3559, %v3560
        %v3562 = vand.u32 %v3561, 4294901760
        %3563 = vmatmul.mubr.f32.gmra.mxu0 %v3562
        %v3564 = vpop.f32.mrf.mxu0
        %v3565 = vadd.f32 %v3438, %v3564
        %v3566 = vpop.f32.mrf.mxu0
        %v3567 = vadd.f32 %v3438, %v3566
        %3568 = vdwg.mxu0
        %3569 = vmatprep.subr.mxu0 0.0
        %3570 = vmatpush1.msra.mxu0 0.0
        %3571 = vmatprep.subr.mxu0 0.0
        %3572 = vmatpush1.msra.mxu0 0.0
        %3573 = vmatprep.subr.mxu0 0.0
        %3574 = vmatpush1.msra.mxu0 0.0
        %3575 = vmatprep.subr.mxu0 0.0
        %3576 = vmatpush1.msra.mxu0 0.0
        %3577 = vmatprep.subr.mxu0 0.0
        %3578 = vmatpush1.msra.mxu0 0.0
        %3579 = vmatprep.subr.mxu0 0.0
        %3580 = vmatpush1.msra.mxu0 0.0
        %3581 = vmatprep.subr.mxu0 0.0
        %3582 = vmatpush1.msra.mxu0 0.0
        %3583 = vmatprep.subr.mxu0 0.0
        %3584 = vmatpush1.msra.mxu0 0.0
        %3585 = vmatprep.subr.mxu0 0.0
        %3586 = vmatpush1.msra.mxu0 0.0
        %3587 = vmatprep.subr.mxu0 0.0
        %3588 = vmatpush1.msra.mxu0 0.0
        %3589 = vmatprep.subr.mxu0 0.0
        %3590 = vmatpush1.msra.mxu0 0.0
        %3591 = vmatprep.subr.mxu0 0.0
        %3592 = vmatpush1.msra.mxu0 0.0
        %v3593 = vand.u32 %v3407, 4294901760
        %v3594 = vsub.f32 %v3407, %v3593
        %v3595 = vand.u32 %v3594, 4294901760
        %v3596 = vsub.f32 %v3594, %v3595
        %v3597 = vand.u32 %v3596, 4294901760
        %3598 = vmatprep.subr.mxu0 %v3597
        %v3599 = vand.u32 %v3406, 4294901760
        %v3600 = vsub.f32 %v3406, %v3599
        %v3601 = vand.u32 %v3600, 4294901760
        %v3602 = vsub.f32 %v3600, %v3601
        %v3603 = vand.u32 %v3602, 4294901760
        %3604 = vmatpush1.msra.mxu0 %v3603
        %v3605 = vand.u32 %v3403, 4294901760
        %v3606 = vsub.f32 %v3403, %v3605
        %v3607 = vand.u32 %v3606, 4294901760
        %v3608 = vsub.f32 %v3606, %v3607
        %v3609 = vand.u32 %v3608, 4294901760
        %3610 = vmatprep.subr.mxu0 %v3609
        %v3611 = vand.u32 %v3402, 4294901760
        %v3612 = vsub.f32 %v3402, %v3611
        %v3613 = vand.u32 %v3612, 4294901760
        %v3614 = vsub.f32 %v3612, %v3613
        %v3615 = vand.u32 %v3614, 4294901760
        %3616 = vmatpush1.msra.mxu0 %v3615
        %v3617 = vand.u32 %v3399, 4294901760
        %v3618 = vsub.f32 %v3399, %v3617
        %v3619 = vand.u32 %v3618, 4294901760
        %v3620 = vsub.f32 %v3618, %v3619
        %v3621 = vand.u32 %v3620, 4294901760
        %3622 = vmatprep.subr.mxu0 %v3621
        %v3623 = vand.u32 %v3398, 4294901760
        %v3624 = vsub.f32 %v3398, %v3623
        %v3625 = vand.u32 %v3624, 4294901760
        %v3626 = vsub.f32 %v3624, %v3625
        %v3627 = vand.u32 %v3626, 4294901760
        %3628 = vmatpush1.msra.mxu0 %v3627
        %v3629 = vand.u32 %v3395, 4294901760
        %v3630 = vsub.f32 %v3395, %v3629
        %v3631 = vand.u32 %v3630, 4294901760
        %v3632 = vsub.f32 %v3630, %v3631
        %v3633 = vand.u32 %v3632, 4294901760
        %3634 = vmatprep.subr.mxu0 %v3633
        %v3635 = vand.u32 %v3394, 4294901760
        %v3636 = vsub.f32 %v3394, %v3635
        %v3637 = vand.u32 %v3636, 4294901760
        %v3638 = vsub.f32 %v3636, %v3637
        %v3639 = vand.u32 %v3638, 4294901760
        %3640 = vmatpush1.msra.mxu0 %v3639
        %3641 = vmatprep.subr.mxu0 0.0
        %3642 = vmatpush2.msra.mxu0 0.0
        %3643 = vmatprep.subr.mxu0 0.0
        %3644 = vmatpush2.msra.mxu0 0.0
        %3645 = vmatprep.subr.mxu0 0.0
        %3646 = vmatpush2.msra.mxu0 0.0
        %3647 = vmatprep.subr.mxu0 0.0
        %3648 = vmatpush2.msra.mxu0 0.0
        %3649 = vmatprep.subr.mxu0 0.0
        %3650 = vmatpush2.msra.mxu0 0.0
        %3651 = vmatprep.subr.mxu0 0.0
        %3652 = vmatpush2.msra.mxu0 0.0
        %3653 = vmatprep.subr.mxu0 0.0
        %3654 = vmatpush2.msra.mxu0 0.0
        %3655 = vmatprep.subr.mxu0 0.0
        %3656 = vmatpush2.msra.mxu0 0.0
        %3657 = vmatprep.subr.mxu0 0.0
        %3658 = vmatpush2.msra.mxu0 0.0
        %3659 = vmatprep.subr.mxu0 0.0
        %3660 = vmatpush2.msra.mxu0 0.0
        %3661 = vmatprep.subr.mxu0 0.0
        %3662 = vmatpush2.msra.mxu0 0.0
        %3663 = vmatprep.subr.mxu0 0.0
        %3664 = vmatpush2.msra.mxu0 0.0
        %3665 = vmatprep.subr.mxu0 0.0
        %3666 = vmatpush2.msra.mxu0 0.0
        %3667 = vmatprep.subr.mxu0 0.0
        %3668 = vmatpush2.msra.mxu0 0.0
        %3669 = vmatprep.subr.mxu0 0.0
        %3670 = vmatpush2.msra.mxu0 0.0
        %3671 = vmatprep.subr.mxu0 0.0
        %3672 = vmatpush2.msra.mxu0 0.0
        %3673 = vmatprep.mubr.f32.mxu0 0.0
        %v3674 = vand.u32 %v3441, 4294901760
        %3675 = vmatmul.mubr.f32.gmra.mxu0 %v3674
        %v3676 = vpop.f32.mrf.mxu0
        %v3677 = vadd.f32 %v3532, %v3676
        %v3678 = vpop.f32.mrf.mxu0
        %v3679 = vadd.f32 %v3534, %v3678
        %3680 = vmatprep.mubr.f32.mxu0 0.0
        %v3681 = vand.u32 %v3444, 4294901760
        %3682 = vmatmul.mubr.f32.gmra.mxu0 %v3681
        %v3683 = vpop.f32.mrf.mxu0
        %v3684 = vadd.f32 %v3543, %v3683
        %v3685 = vpop.f32.mrf.mxu0
        %v3686 = vadd.f32 %v3545, %v3685
        %3687 = vmatprep.mubr.f32.mxu0 0.0
        %v3688 = vand.u32 %v3447, 4294901760
        %3689 = vmatmul.mubr.f32.gmra.mxu0 %v3688
        %v3690 = vpop.f32.mrf.mxu0
        %v3691 = vadd.f32 %v3554, %v3690
        %v3692 = vpop.f32.mrf.mxu0
        %v3693 = vadd.f32 %v3556, %v3692
        %3694 = vmatprep.mubr.f32.mxu0 0.0
        %v3695 = vand.u32 %v3450, 4294901760
        %3696 = vmatmul.mubr.f32.gmra.mxu0 %v3695
        %v3697 = vpop.f32.mrf.mxu0
        %v3698 = vadd.f32 %v3565, %v3697
        %v3699 = vpop.f32.mrf.mxu0
        %v3700 = vadd.f32 %v3567, %v3699
        %3701 = vdwg.mxu0
        %3702 = vmatprep.subr.mxu0 0.0
        %3703 = vmatpush1.msra.mxu0 0.0
        %3704 = vmatprep.subr.mxu0 0.0
        %3705 = vmatpush1.msra.mxu0 0.0
        %3706 = vmatprep.subr.mxu0 0.0
        %3707 = vmatpush1.msra.mxu0 0.0
        %3708 = vmatprep.subr.mxu0 0.0
        %3709 = vmatpush1.msra.mxu0 0.0
        %3710 = vmatprep.subr.mxu0 0.0
        %3711 = vmatpush1.msra.mxu0 0.0
        %3712 = vmatprep.subr.mxu0 0.0
        %3713 = vmatpush1.msra.mxu0 0.0
        %3714 = vmatprep.subr.mxu0 0.0
        %3715 = vmatpush1.msra.mxu0 0.0
        %3716 = vmatprep.subr.mxu0 0.0
        %3717 = vmatpush1.msra.mxu0 0.0
        %3718 = vmatprep.subr.mxu0 0.0
        %3719 = vmatpush1.msra.mxu0 0.0
        %3720 = vmatprep.subr.mxu0 0.0
        %3721 = vmatpush1.msra.mxu0 0.0
        %3722 = vmatprep.subr.mxu0 0.0
        %3723 = vmatpush1.msra.mxu0 0.0
        %3724 = vmatprep.subr.mxu0 0.0
        %3725 = vmatpush1.msra.mxu0 0.0
        %v3726 = vand.u32 %v3407, 4294901760
        %v3727 = vsub.f32 %v3407, %v3726
        %3728 = vmatprep.subr.mxu0 %v3727
        %v3729 = vand.u32 %v3406, 4294901760
        %v3730 = vsub.f32 %v3406, %v3729
        %3731 = vmatpush1.msra.mxu0 %v3730
        %v3732 = vand.u32 %v3403, 4294901760
        %v3733 = vsub.f32 %v3403, %v3732
        %3734 = vmatprep.subr.mxu0 %v3733
        %v3735 = vand.u32 %v3402, 4294901760
        %v3736 = vsub.f32 %v3402, %v3735
        %3737 = vmatpush1.msra.mxu0 %v3736
        %v3738 = vand.u32 %v3399, 4294901760
        %v3739 = vsub.f32 %v3399, %v3738
        %3740 = vmatprep.subr.mxu0 %v3739
        %v3741 = vand.u32 %v3398, 4294901760
        %v3742 = vsub.f32 %v3398, %v3741
        %3743 = vmatpush1.msra.mxu0 %v3742
        %v3744 = vand.u32 %v3395, 4294901760
        %v3745 = vsub.f32 %v3395, %v3744
        %3746 = vmatprep.subr.mxu0 %v3745
        %v3747 = vand.u32 %v3394, 4294901760
        %v3748 = vsub.f32 %v3394, %v3747
        %3749 = vmatpush1.msra.mxu0 %v3748
        %3750 = vmatprep.subr.mxu0 0.0
        %3751 = vmatpush2.msra.mxu0 0.0
        %3752 = vmatprep.subr.mxu0 0.0
        %3753 = vmatpush2.msra.mxu0 0.0
        %3754 = vmatprep.subr.mxu0 0.0
        %3755 = vmatpush2.msra.mxu0 0.0
        %3756 = vmatprep.subr.mxu0 0.0
        %3757 = vmatpush2.msra.mxu0 0.0
        %3758 = vmatprep.subr.mxu0 0.0
        %3759 = vmatpush2.msra.mxu0 0.0
        %3760 = vmatprep.subr.mxu0 0.0
        %3761 = vmatpush2.msra.mxu0 0.0
        %3762 = vmatprep.subr.mxu0 0.0
        %3763 = vmatpush2.msra.mxu0 0.0
        %3764 = vmatprep.subr.mxu0 0.0
        %3765 = vmatpush2.msra.mxu0 0.0
        %3766 = vmatprep.subr.mxu0 0.0
        %3767 = vmatpush2.msra.mxu0 0.0
        %3768 = vmatprep.subr.mxu0 0.0
        %3769 = vmatpush2.msra.mxu0 0.0
        %3770 = vmatprep.subr.mxu0 0.0
        %3771 = vmatpush2.msra.mxu0 0.0
        %3772 = vmatprep.subr.mxu0 0.0
        %3773 = vmatpush2.msra.mxu0 0.0
        %3774 = vmatprep.subr.mxu0 0.0
        %3775 = vmatpush2.msra.mxu0 0.0
        %3776 = vmatprep.subr.mxu0 0.0
        %3777 = vmatpush2.msra.mxu0 0.0
        %3778 = vmatprep.subr.mxu0 0.0
        %3779 = vmatpush2.msra.mxu0 0.0
        %3780 = vmatprep.subr.mxu0 0.0
        %3781 = vmatpush2.msra.mxu0 0.0
        %3782 = vmatprep.mubr.f32.mxu0 0.0
        %v3783 = vand.u32 %v3441, 4294901760
        %v3784 = vsub.f32 %v3441, %v3783
        %3785 = vmatmul.mubr.f32.gmra.mxu0 %v3784
        %v3786 = vpop.f32.mrf.mxu0
        %v3787 = vadd.f32 %v3677, %v3786
        %v3788 = vpop.f32.mrf.mxu0
        %v3789 = vadd.f32 %v3679, %v3788
        %3790 = vmatprep.mubr.f32.mxu0 0.0
        %v3791 = vand.u32 %v3444, 4294901760
        %v3792 = vsub.f32 %v3444, %v3791
        %3793 = vmatmul.mubr.f32.gmra.mxu0 %v3792
        %v3794 = vpop.f32.mrf.mxu0
        %v3795 = vadd.f32 %v3684, %v3794
        %v3796 = vpop.f32.mrf.mxu0
        %v3797 = vadd.f32 %v3686, %v3796
        %3798 = vmatprep.mubr.f32.mxu0 0.0
        %v3799 = vand.u32 %v3447, 4294901760
        %v3800 = vsub.f32 %v3447, %v3799
        %3801 = vmatmul.mubr.f32.gmra.mxu0 %v3800
        %v3802 = vpop.f32.mrf.mxu0
        %v3803 = vadd.f32 %v3691, %v3802
        %v3804 = vpop.f32.mrf.mxu0
        %v3805 = vadd.f32 %v3693, %v3804
        %3806 = vmatprep.mubr.f32.mxu0 0.0
        %v3807 = vand.u32 %v3450, 4294901760
        %v3808 = vsub.f32 %v3450, %v3807
        %3809 = vmatmul.mubr.f32.gmra.mxu0 %v3808
        %v3810 = vpop.f32.mrf.mxu0
        %v3811 = vadd.f32 %v3698, %v3810
        %v3812 = vpop.f32.mrf.mxu0
        %v3813 = vadd.f32 %v3700, %v3812
        %3814 = vdwg.mxu0
        %3815 = vmatprep.subr.mxu0 0.0
        %3816 = vmatpush1.msra.mxu0 0.0
        %3817 = vmatprep.subr.mxu0 0.0
        %3818 = vmatpush1.msra.mxu0 0.0
        %3819 = vmatprep.subr.mxu0 0.0
        %3820 = vmatpush1.msra.mxu0 0.0
        %3821 = vmatprep.subr.mxu0 0.0
        %3822 = vmatpush1.msra.mxu0 0.0
        %3823 = vmatprep.subr.mxu0 0.0
        %3824 = vmatpush1.msra.mxu0 0.0
        %3825 = vmatprep.subr.mxu0 0.0
        %3826 = vmatpush1.msra.mxu0 0.0
        %3827 = vmatprep.subr.mxu0 0.0
        %3828 = vmatpush1.msra.mxu0 0.0
        %3829 = vmatprep.subr.mxu0 0.0
        %3830 = vmatpush1.msra.mxu0 0.0
        %3831 = vmatprep.subr.mxu0 0.0
        %3832 = vmatpush1.msra.mxu0 0.0
        %3833 = vmatprep.subr.mxu0 0.0
        %3834 = vmatpush1.msra.mxu0 0.0
        %3835 = vmatprep.subr.mxu0 0.0
        %3836 = vmatpush1.msra.mxu0 0.0
        %3837 = vmatprep.subr.mxu0 0.0
        %3838 = vmatpush1.msra.mxu0 0.0
        %v3839 = vand.u32 %v3407, 4294901760
        %3840 = vmatprep.subr.mxu0 %v3839
        %v3841 = vand.u32 %v3406, 4294901760
        %3842 = vmatpush1.msra.mxu0 %v3841
        %v3843 = vand.u32 %v3403, 4294901760
        %3844 = vmatprep.subr.mxu0 %v3843
        %v3845 = vand.u32 %v3402, 4294901760
        %3846 = vmatpush1.msra.mxu0 %v3845
        %v3847 = vand.u32 %v3399, 4294901760
        %3848 = vmatprep.subr.mxu0 %v3847
        %v3849 = vand.u32 %v3398, 4294901760
        %3850 = vmatpush1.msra.mxu0 %v3849
        %v3851 = vand.u32 %v3395, 4294901760
        %3852 = vmatprep.subr.mxu0 %v3851
        %v3853 = vand.u32 %v3394, 4294901760
        %3854 = vmatpush1.msra.mxu0 %v3853
        %3855 = vmatprep.subr.mxu0 0.0
        %3856 = vmatpush2.msra.mxu0 0.0
        %3857 = vmatprep.subr.mxu0 0.0
        %3858 = vmatpush2.msra.mxu0 0.0
        %3859 = vmatprep.subr.mxu0 0.0
        %3860 = vmatpush2.msra.mxu0 0.0
        %3861 = vmatprep.subr.mxu0 0.0
        %3862 = vmatpush2.msra.mxu0 0.0
        %3863 = vmatprep.subr.mxu0 0.0
        %3864 = vmatpush2.msra.mxu0 0.0
        %3865 = vmatprep.subr.mxu0 0.0
        %3866 = vmatpush2.msra.mxu0 0.0
        %3867 = vmatprep.subr.mxu0 0.0
        %3868 = vmatpush2.msra.mxu0 0.0
        %3869 = vmatprep.subr.mxu0 0.0
        %3870 = vmatpush2.msra.mxu0 0.0
        %3871 = vmatprep.subr.mxu0 0.0
        %3872 = vmatpush2.msra.mxu0 0.0
        %3873 = vmatprep.subr.mxu0 0.0
        %3874 = vmatpush2.msra.mxu0 0.0
        %3875 = vmatprep.subr.mxu0 0.0
        %3876 = vmatpush2.msra.mxu0 0.0
        %3877 = vmatprep.subr.mxu0 0.0
        %3878 = vmatpush2.msra.mxu0 0.0
        %3879 = vmatprep.subr.mxu0 0.0
        %3880 = vmatpush2.msra.mxu0 0.0
        %3881 = vmatprep.subr.mxu0 0.0
        %3882 = vmatpush2.msra.mxu0 0.0
        %3883 = vmatprep.subr.mxu0 0.0
        %3884 = vmatpush2.msra.mxu0 0.0
        %3885 = vmatprep.subr.mxu0 0.0
        %3886 = vmatpush2.msra.mxu0 0.0
        %3887 = vmatprep.mubr.f32.mxu0 0.0
        %v3888 = vand.u32 %v3441, 4294901760
        %v3889 = vsub.f32 %v3441, %v3888
        %v3890 = vand.u32 %v3889, 4294901760
        %3891 = vmatmul.mubr.f32.gmra.mxu0 %v3890
        %v3892 = vpop.f32.mrf.mxu0
        %v3893 = vadd.f32 %v3787, %v3892
        %v3894 = vpop.f32.mrf.mxu0
        %v3895 = vadd.f32 %v3789, %v3894
        %3896 = vmatprep.mubr.f32.mxu0 0.0
        %v3897 = vand.u32 %v3444, 4294901760
        %v3898 = vsub.f32 %v3444, %v3897
        %v3899 = vand.u32 %v3898, 4294901760
        %3900 = vmatmul.mubr.f32.gmra.mxu0 %v3899
        %v3901 = vpop.f32.mrf.mxu0
        %v3902 = vadd.f32 %v3795, %v3901
        %v3903 = vpop.f32.mrf.mxu0
        %v3904 = vadd.f32 %v3797, %v3903
        %3905 = vmatprep.mubr.f32.mxu0 0.0
        %v3906 = vand.u32 %v3447, 4294901760
        %v3907 = vsub.f32 %v3447, %v3906
        %v3908 = vand.u32 %v3907, 4294901760
        %3909 = vmatmul.mubr.f32.gmra.mxu0 %v3908
        %v3910 = vpop.f32.mrf.mxu0
        %v3911 = vadd.f32 %v3803, %v3910
        %v3912 = vpop.f32.mrf.mxu0
        %v3913 = vadd.f32 %v3805, %v3912
        %3914 = vmatprep.mubr.f32.mxu0 0.0
        %v3915 = vand.u32 %v3450, 4294901760
        %v3916 = vsub.f32 %v3450, %v3915
        %v3917 = vand.u32 %v3916, 4294901760
        %3918 = vmatmul.mubr.f32.gmra.mxu0 %v3917
        %v3919 = vpop.f32.mrf.mxu0
        %v3920 = vadd.f32 %v3811, %v3919
        %v3921 = vpop.f32.mrf.mxu0
        %v3922 = vadd.f32 %v3813, %v3921
        %3923 = vdwg.mxu0
        %3924 = vmatprep.subr.mxu0 0.0
        %3925 = vmatpush1.msra.mxu0 0.0
        %3926 = vmatprep.subr.mxu0 0.0
        %3927 = vmatpush1.msra.mxu0 0.0
        %3928 = vmatprep.subr.mxu0 0.0
        %3929 = vmatpush1.msra.mxu0 0.0
        %3930 = vmatprep.subr.mxu0 0.0
        %3931 = vmatpush1.msra.mxu0 0.0
        %3932 = vmatprep.subr.mxu0 0.0
        %3933 = vmatpush1.msra.mxu0 0.0
        %3934 = vmatprep.subr.mxu0 0.0
        %3935 = vmatpush1.msra.mxu0 0.0
        %3936 = vmatprep.subr.mxu0 0.0
        %3937 = vmatpush1.msra.mxu0 0.0
        %3938 = vmatprep.subr.mxu0 0.0
        %3939 = vmatpush1.msra.mxu0 0.0
        %3940 = vmatprep.subr.mxu0 0.0
        %3941 = vmatpush1.msra.mxu0 0.0
        %3942 = vmatprep.subr.mxu0 0.0
        %3943 = vmatpush1.msra.mxu0 0.0
        %3944 = vmatprep.subr.mxu0 0.0
        %3945 = vmatpush1.msra.mxu0 0.0
        %3946 = vmatprep.subr.mxu0 0.0
        %3947 = vmatpush1.msra.mxu0 0.0
        %v3948 = vand.u32 %v3407, 4294901760
        %v3949 = vsub.f32 %v3407, %v3948
        %v3950 = vand.u32 %v3949, 4294901760
        %3951 = vmatprep.subr.mxu0 %v3950
        %v3952 = vand.u32 %v3406, 4294901760
        %v3953 = vsub.f32 %v3406, %v3952
        %v3954 = vand.u32 %v3953, 4294901760
        %3955 = vmatpush1.msra.mxu0 %v3954
        %v3956 = vand.u32 %v3403, 4294901760
        %v3957 = vsub.f32 %v3403, %v3956
        %v3958 = vand.u32 %v3957, 4294901760
        %3959 = vmatprep.subr.mxu0 %v3958
        %v3960 = vand.u32 %v3402, 4294901760
        %v3961 = vsub.f32 %v3402, %v3960
        %v3962 = vand.u32 %v3961, 4294901760
        %3963 = vmatpush1.msra.mxu0 %v3962
        %v3964 = vand.u32 %v3399, 4294901760
        %v3965 = vsub.f32 %v3399, %v3964
        %v3966 = vand.u32 %v3965, 4294901760
        %3967 = vmatprep.subr.mxu0 %v3966
        %v3968 = vand.u32 %v3398, 4294901760
        %v3969 = vsub.f32 %v3398, %v3968
        %v3970 = vand.u32 %v3969, 4294901760
        %3971 = vmatpush1.msra.mxu0 %v3970
        %v3972 = vand.u32 %v3395, 4294901760
        %v3973 = vsub.f32 %v3395, %v3972
        %v3974 = vand.u32 %v3973, 4294901760
        %3975 = vmatprep.subr.mxu0 %v3974
        %v3976 = vand.u32 %v3394, 4294901760
        %v3977 = vsub.f32 %v3394, %v3976
        %v3978 = vand.u32 %v3977, 4294901760
        %3979 = vmatpush1.msra.mxu0 %v3978
        %3980 = vmatprep.subr.mxu0 0.0
        %3981 = vmatpush2.msra.mxu0 0.0
        %3982 = vmatprep.subr.mxu0 0.0
        %3983 = vmatpush2.msra.mxu0 0.0
        %3984 = vmatprep.subr.mxu0 0.0
        %3985 = vmatpush2.msra.mxu0 0.0
        %3986 = vmatprep.subr.mxu0 0.0
        %3987 = vmatpush2.msra.mxu0 0.0
        %3988 = vmatprep.subr.mxu0 0.0
        %3989 = vmatpush2.msra.mxu0 0.0
        %3990 = vmatprep.subr.mxu0 0.0
        %3991 = vmatpush2.msra.mxu0 0.0
        %3992 = vmatprep.subr.mxu0 0.0
        %3993 = vmatpush2.msra.mxu0 0.0
        %3994 = vmatprep.subr.mxu0 0.0
        %3995 = vmatpush2.msra.mxu0 0.0
        %3996 = vmatprep.subr.mxu0 0.0
        %3997 = vmatpush2.msra.mxu0 0.0
        %3998 = vmatprep.subr.mxu0 0.0
        %3999 = vmatpush2.msra.mxu0 0.0
        %4000 = vmatprep.subr.mxu0 0.0
        %4001 = vmatpush2.msra.mxu0 0.0
        %4002 = vmatprep.subr.mxu0 0.0
        %4003 = vmatpush2.msra.mxu0 0.0
        %4004 = vmatprep.subr.mxu0 0.0
        %4005 = vmatpush2.msra.mxu0 0.0
        %4006 = vmatprep.subr.mxu0 0.0
        %4007 = vmatpush2.msra.mxu0 0.0
        %4008 = vmatprep.subr.mxu0 0.0
        %4009 = vmatpush2.msra.mxu0 0.0
        %4010 = vmatprep.subr.mxu0 0.0
        %4011 = vmatpush2.msra.mxu0 0.0
        %4012 = vmatprep.mubr.f32.mxu0 0.0
        %v4013 = vand.u32 %v3441, 4294901760
        %4014 = vmatmul.mubr.f32.gmra.mxu0 %v4013
        %v4015 = vpop.f32.mrf.mxu0
        %v4016 = vadd.f32 %v3893, %v4015
        %v4017 = vpop.f32.mrf.mxu0
        %v4018 = vadd.f32 %v3895, %v4017
        %4019 = vmatprep.mubr.f32.mxu0 0.0
        %v4020 = vand.u32 %v3444, 4294901760
        %4021 = vmatmul.mubr.f32.gmra.mxu0 %v4020
        %v4022 = vpop.f32.mrf.mxu0
        %v4023 = vadd.f32 %v3902, %v4022
        %v4024 = vpop.f32.mrf.mxu0
        %v4025 = vadd.f32 %v3904, %v4024
        %4026 = vmatprep.mubr.f32.mxu0 0.0
        %v4027 = vand.u32 %v3447, 4294901760
        %4028 = vmatmul.mubr.f32.gmra.mxu0 %v4027
        %v4029 = vpop.f32.mrf.mxu0
        %v4030 = vadd.f32 %v3911, %v4029
        %v4031 = vpop.f32.mrf.mxu0
        %v4032 = vadd.f32 %v3913, %v4031
        %4033 = vmatprep.mubr.f32.mxu0 0.0
        %v4034 = vand.u32 %v3450, 4294901760
        %4035 = vmatmul.mubr.f32.gmra.mxu0 %v4034
        %v4036 = vpop.f32.mrf.mxu0
        %v4037 = vadd.f32 %v3920, %v4036
        %v4038 = vpop.f32.mrf.mxu0
        %v4039 = vadd.f32 %v3922, %v4038
        %4040 = vdwg.mxu0
        %4041 = vmatprep.subr.mxu0 0.0
        %4042 = vmatpush1.msra.mxu0 0.0
        %4043 = vmatprep.subr.mxu0 0.0
        %4044 = vmatpush1.msra.mxu0 0.0
        %4045 = vmatprep.subr.mxu0 0.0
        %4046 = vmatpush1.msra.mxu0 0.0
        %4047 = vmatprep.subr.mxu0 0.0
        %4048 = vmatpush1.msra.mxu0 0.0
        %4049 = vmatprep.subr.mxu0 0.0
        %4050 = vmatpush1.msra.mxu0 0.0
        %4051 = vmatprep.subr.mxu0 0.0
        %4052 = vmatpush1.msra.mxu0 0.0
        %4053 = vmatprep.subr.mxu0 0.0
        %4054 = vmatpush1.msra.mxu0 0.0
        %4055 = vmatprep.subr.mxu0 0.0
        %4056 = vmatpush1.msra.mxu0 0.0
        %4057 = vmatprep.subr.mxu0 0.0
        %4058 = vmatpush1.msra.mxu0 0.0
        %4059 = vmatprep.subr.mxu0 0.0
        %4060 = vmatpush1.msra.mxu0 0.0
        %4061 = vmatprep.subr.mxu0 0.0
        %4062 = vmatpush1.msra.mxu0 0.0
        %4063 = vmatprep.subr.mxu0 0.0
        %4064 = vmatpush1.msra.mxu0 0.0
        %v4065 = vand.u32 %v3407, 4294901760
        %4066 = vmatprep.subr.mxu0 %v4065
        %v4067 = vand.u32 %v3406, 4294901760
        %4068 = vmatpush1.msra.mxu0 %v4067
        %v4069 = vand.u32 %v3403, 4294901760
        %4070 = vmatprep.subr.mxu0 %v4069
        %v4071 = vand.u32 %v3402, 4294901760
        %4072 = vmatpush1.msra.mxu0 %v4071
        %v4073 = vand.u32 %v3399, 4294901760
        %4074 = vmatprep.subr.mxu0 %v4073
        %v4075 = vand.u32 %v3398, 4294901760
        %4076 = vmatpush1.msra.mxu0 %v4075
        %v4077 = vand.u32 %v3395, 4294901760
        %4078 = vmatprep.subr.mxu0 %v4077
        %v4079 = vand.u32 %v3394, 4294901760
        %4080 = vmatpush1.msra.mxu0 %v4079
        %4081 = vmatprep.subr.mxu0 0.0
        %4082 = vmatpush2.msra.mxu0 0.0
        %4083 = vmatprep.subr.mxu0 0.0
        %4084 = vmatpush2.msra.mxu0 0.0
        %4085 = vmatprep.subr.mxu0 0.0
        %4086 = vmatpush2.msra.mxu0 0.0
        %4087 = vmatprep.subr.mxu0 0.0
        %4088 = vmatpush2.msra.mxu0 0.0
        %4089 = vmatprep.subr.mxu0 0.0
        %4090 = vmatpush2.msra.mxu0 0.0
        %4091 = vmatprep.subr.mxu0 0.0
        %4092 = vmatpush2.msra.mxu0 0.0
        %4093 = vmatprep.subr.mxu0 0.0
        %4094 = vmatpush2.msra.mxu0 0.0
        %4095 = vmatprep.subr.mxu0 0.0
        %4096 = vmatpush2.msra.mxu0 0.0
        %4097 = vmatprep.subr.mxu0 0.0
        %4098 = vmatpush2.msra.mxu0 0.0
        %4099 = vmatprep.subr.mxu0 0.0
        %4100 = vmatpush2.msra.mxu0 0.0
        %4101 = vmatprep.subr.mxu0 0.0
        %4102 = vmatpush2.msra.mxu0 0.0
        %4103 = vmatprep.subr.mxu0 0.0
        %4104 = vmatpush2.msra.mxu0 0.0
        %4105 = vmatprep.subr.mxu0 0.0
        %4106 = vmatpush2.msra.mxu0 0.0
        %4107 = vmatprep.subr.mxu0 0.0
        %4108 = vmatpush2.msra.mxu0 0.0
        %4109 = vmatprep.subr.mxu0 0.0
        %4110 = vmatpush2.msra.mxu0 0.0
        %4111 = vmatprep.subr.mxu0 0.0
        %4112 = vmatpush2.msra.mxu0 0.0
        %4113 = vmatprep.mubr.f32.mxu0 0.0
        %v4114 = vand.u32 %v3441, 4294901760
        %4115 = vmatmul.mubr.f32.gmra.mxu0 %v4114
        %v4116 = vpop.f32.mrf.mxu0
        %v4117 = vadd.f32 %v4016, %v4116
        %v4118 = vpop.f32.mrf.mxu0
        %v4119 = vadd.f32 %v4018, %v4118
        %4120 = vmatprep.mubr.f32.mxu0 0.0
        %v4121 = vand.u32 %v3444, 4294901760
        %4122 = vmatmul.mubr.f32.gmra.mxu0 %v4121
        %v4123 = vpop.f32.mrf.mxu0
        %v4124 = vadd.f32 %v4023, %v4123
        %v4125 = vpop.f32.mrf.mxu0
        %v4126 = vadd.f32 %v4025, %v4125
        %4127 = vmatprep.mubr.f32.mxu0 0.0
        %v4128 = vand.u32 %v3447, 4294901760
        %4129 = vmatmul.mubr.f32.gmra.mxu0 %v4128
        %v4130 = vpop.f32.mrf.mxu0
        %v4131 = vadd.f32 %v4030, %v4130
        %v4132 = vpop.f32.mrf.mxu0
        %v4133 = vadd.f32 %v4032, %v4132
        %4134 = vmatprep.mubr.f32.mxu0 0.0
        %v4135 = vand.u32 %v3450, 4294901760
        %4136 = vmatmul.mubr.f32.gmra.mxu0 %v4135
        %v4137 = vpop.f32.mrf.mxu0
        %v4138 = vadd.f32 %v4037, %v4137
        %v4139 = vpop.f32.mrf.mxu0
        %v4140 = vadd.f32 %v4039, %v4139
        %4141 = vdwg.mxu0
        %4142 = vmatprep.subr.mxu0 0.0
        %4143 = vmatpush1.msra.mxu0 0.0
        %4144 = vmatprep.subr.mxu0 0.0
        %4145 = vmatpush1.msra.mxu0 0.0
        %4146 = vmatprep.subr.mxu0 0.0
        %4147 = vmatpush1.msra.mxu0 0.0
        %4148 = vmatprep.subr.mxu0 0.0
        %4149 = vmatpush1.msra.mxu0 0.0
        %4150 = vmatprep.subr.mxu0 0.0
        %4151 = vmatpush1.msra.mxu0 0.0
        %4152 = vmatprep.subr.mxu0 0.0
        %4153 = vmatpush1.msra.mxu0 0.0
        %4154 = vmatprep.subr.mxu0 0.0
        %4155 = vmatpush1.msra.mxu0 0.0
        %4156 = vmatprep.subr.mxu0 0.0
        %4157 = vmatpush1.msra.mxu0 0.0
        %4158 = vmatprep.subr.mxu0 0.0
        %4159 = vmatpush1.msra.mxu0 0.0
        %4160 = vmatprep.subr.mxu0 0.0
        %4161 = vmatpush1.msra.mxu0 0.0
        %4162 = vmatprep.subr.mxu0 0.0
        %4163 = vmatpush1.msra.mxu0 0.0
        %4164 = vmatprep.subr.mxu0 0.0
        %4165 = vmatpush1.msra.mxu0 0.0
        %v4166 = vand.u32 %v3409, 4294901760
        %4167 = vmatprep.subr.mxu0 %v4166
        %v4168 = vand.u32 %v3408, 4294901760
        %4169 = vmatpush1.msra.mxu0 %v4168
        %v4170 = vand.u32 %v3405, 4294901760
        %4171 = vmatprep.subr.mxu0 %v4170
        %v4172 = vand.u32 %v3404, 4294901760
        %4173 = vmatpush1.msra.mxu0 %v4172
        %v4174 = vand.u32 %v3401, 4294901760
        %4175 = vmatprep.subr.mxu0 %v4174
        %v4176 = vand.u32 %v3400, 4294901760
        %4177 = vmatpush1.msra.mxu0 %v4176
        %v4178 = vand.u32 %v3397, 4294901760
        %4179 = vmatprep.subr.mxu0 %v4178
        %v4180 = vand.u32 %v3396, 4294901760
        %4181 = vmatpush1.msra.mxu0 %v4180
        %4182 = vmatprep.subr.mxu0 0.0
        %4183 = vmatpush2.msra.mxu0 0.0
        %4184 = vmatprep.subr.mxu0 0.0
        %4185 = vmatpush2.msra.mxu0 0.0
        %4186 = vmatprep.subr.mxu0 0.0
        %4187 = vmatpush2.msra.mxu0 0.0
        %4188 = vmatprep.subr.mxu0 0.0
        %4189 = vmatpush2.msra.mxu0 0.0
        %4190 = vmatprep.subr.mxu0 0.0
        %4191 = vmatpush2.msra.mxu0 0.0
        %4192 = vmatprep.subr.mxu0 0.0
        %4193 = vmatpush2.msra.mxu0 0.0
        %4194 = vmatprep.subr.mxu0 0.0
        %4195 = vmatpush2.msra.mxu0 0.0
        %4196 = vmatprep.subr.mxu0 0.0
        %4197 = vmatpush2.msra.mxu0 0.0
        %4198 = vmatprep.subr.mxu0 0.0
        %4199 = vmatpush2.msra.mxu0 0.0
        %4200 = vmatprep.subr.mxu0 0.0
        %4201 = vmatpush2.msra.mxu0 0.0
        %4202 = vmatprep.subr.mxu0 0.0
        %4203 = vmatpush2.msra.mxu0 0.0
        %4204 = vmatprep.subr.mxu0 0.0
        %4205 = vmatpush2.msra.mxu0 0.0
        %4206 = vmatprep.subr.mxu0 0.0
        %4207 = vmatpush2.msra.mxu0 0.0
        %4208 = vmatprep.subr.mxu0 0.0
        %4209 = vmatpush2.msra.mxu0 0.0
        %4210 = vmatprep.subr.mxu0 0.0
        %4211 = vmatpush2.msra.mxu0 0.0
        %4212 = vmatprep.subr.mxu0 0.0
        %4213 = vmatpush2.msra.mxu0 0.0
        %4214 = vmatprep.mubr.f32.mxu0 0.0
        %v4215 = vand.u32 %v3441, 4294901760
        %v4216 = vsub.f32 %v3441, %v4215
        %v4217 = vand.u32 %v4216, 4294901760
        %v4218 = vsub.f32 %v4216, %v4217
        %v4219 = vand.u32 %v4218, 4294901760
        %4220 = vmatmul.mubr.f32.gmra.mxu0 %v4219
        %v4221 = vpop.f32.mrf.mxu0
        %v4222 = vadd.f32 %v3423, %v4221
        %v4223 = vpop.f32.mrf.mxu0
        %v4224 = vadd.f32 %v3423, %v4223
        %4225 = vmatprep.mubr.f32.mxu0 0.0
        %v4226 = vand.u32 %v3444, 4294901760
        %v4227 = vsub.f32 %v3444, %v4226
        %v4228 = vand.u32 %v4227, 4294901760
        %v4229 = vsub.f32 %v4227, %v4228
        %v4230 = vand.u32 %v4229, 4294901760
        %4231 = vmatmul.mubr.f32.gmra.mxu0 %v4230
        %v4232 = vpop.f32.mrf.mxu0
        %v4233 = vadd.f32 %v3428, %v4232
        %v4234 = vpop.f32.mrf.mxu0
        %v4235 = vadd.f32 %v3428, %v4234
        %4236 = vmatprep.mubr.f32.mxu0 0.0
        %v4237 = vand.u32 %v3447, 4294901760
        %v4238 = vsub.f32 %v3447, %v4237
        %v4239 = vand.u32 %v4238, 4294901760
        %v4240 = vsub.f32 %v4238, %v4239
        %v4241 = vand.u32 %v4240, 4294901760
        %4242 = vmatmul.mubr.f32.gmra.mxu0 %v4241
        %v4243 = vpop.f32.mrf.mxu0
        %v4244 = vadd.f32 %v3433, %v4243
        %v4245 = vpop.f32.mrf.mxu0
        %v4246 = vadd.f32 %v3433, %v4245
        %4247 = vmatprep.mubr.f32.mxu0 0.0
        %v4248 = vand.u32 %v3450, 4294901760
        %v4249 = vsub.f32 %v3450, %v4248
        %v4250 = vand.u32 %v4249, 4294901760
        %v4251 = vsub.f32 %v4249, %v4250
        %v4252 = vand.u32 %v4251, 4294901760
        %4253 = vmatmul.mubr.f32.gmra.mxu0 %v4252
        %v4254 = vpop.f32.mrf.mxu0
        %v4255 = vadd.f32 %v3438, %v4254
        %v4256 = vpop.f32.mrf.mxu0
        %v4257 = vadd.f32 %v3438, %v4256
        %4258 = vdwg.mxu0
        %4259 = vmatprep.subr.mxu0 0.0
        %4260 = vmatpush1.msra.mxu0 0.0
        %4261 = vmatprep.subr.mxu0 0.0
        %4262 = vmatpush1.msra.mxu0 0.0
        %4263 = vmatprep.subr.mxu0 0.0
        %4264 = vmatpush1.msra.mxu0 0.0
        %4265 = vmatprep.subr.mxu0 0.0
        %4266 = vmatpush1.msra.mxu0 0.0
        %4267 = vmatprep.subr.mxu0 0.0
        %4268 = vmatpush1.msra.mxu0 0.0
        %4269 = vmatprep.subr.mxu0 0.0
        %4270 = vmatpush1.msra.mxu0 0.0
        %4271 = vmatprep.subr.mxu0 0.0
        %4272 = vmatpush1.msra.mxu0 0.0
        %4273 = vmatprep.subr.mxu0 0.0
        %4274 = vmatpush1.msra.mxu0 0.0
        %4275 = vmatprep.subr.mxu0 0.0
        %4276 = vmatpush1.msra.mxu0 0.0
        %4277 = vmatprep.subr.mxu0 0.0
        %4278 = vmatpush1.msra.mxu0 0.0
        %4279 = vmatprep.subr.mxu0 0.0
        %4280 = vmatpush1.msra.mxu0 0.0
        %4281 = vmatprep.subr.mxu0 0.0
        %4282 = vmatpush1.msra.mxu0 0.0
        %v4283 = vand.u32 %v3409, 4294901760
        %v4284 = vsub.f32 %v3409, %v4283
        %v4285 = vand.u32 %v4284, 4294901760
        %v4286 = vsub.f32 %v4284, %v4285
        %v4287 = vand.u32 %v4286, 4294901760
        %4288 = vmatprep.subr.mxu0 %v4287
        %v4289 = vand.u32 %v3408, 4294901760
        %v4290 = vsub.f32 %v3408, %v4289
        %v4291 = vand.u32 %v4290, 4294901760
        %v4292 = vsub.f32 %v4290, %v4291
        %v4293 = vand.u32 %v4292, 4294901760
        %4294 = vmatpush1.msra.mxu0 %v4293
        %v4295 = vand.u32 %v3405, 4294901760
        %v4296 = vsub.f32 %v3405, %v4295
        %v4297 = vand.u32 %v4296, 4294901760
        %v4298 = vsub.f32 %v4296, %v4297
        %v4299 = vand.u32 %v4298, 4294901760
        %4300 = vmatprep.subr.mxu0 %v4299
        %v4301 = vand.u32 %v3404, 4294901760
        %v4302 = vsub.f32 %v3404, %v4301
        %v4303 = vand.u32 %v4302, 4294901760
        %v4304 = vsub.f32 %v4302, %v4303
        %v4305 = vand.u32 %v4304, 4294901760
        %4306 = vmatpush1.msra.mxu0 %v4305
        %v4307 = vand.u32 %v3401, 4294901760
        %v4308 = vsub.f32 %v3401, %v4307
        %v4309 = vand.u32 %v4308, 4294901760
        %v4310 = vsub.f32 %v4308, %v4309
        %v4311 = vand.u32 %v4310, 4294901760
        %4312 = vmatprep.subr.mxu0 %v4311
        %v4313 = vand.u32 %v3400, 4294901760
        %v4314 = vsub.f32 %v3400, %v4313
        %v4315 = vand.u32 %v4314, 4294901760
        %v4316 = vsub.f32 %v4314, %v4315
        %v4317 = vand.u32 %v4316, 4294901760
        %4318 = vmatpush1.msra.mxu0 %v4317
        %v4319 = vand.u32 %v3397, 4294901760
        %v4320 = vsub.f32 %v3397, %v4319
        %v4321 = vand.u32 %v4320, 4294901760
        %v4322 = vsub.f32 %v4320, %v4321
        %v4323 = vand.u32 %v4322, 4294901760
        %4324 = vmatprep.subr.mxu0 %v4323
        %v4325 = vand.u32 %v3396, 4294901760
        %v4326 = vsub.f32 %v3396, %v4325
        %v4327 = vand.u32 %v4326, 4294901760
        %v4328 = vsub.f32 %v4326, %v4327
        %v4329 = vand.u32 %v4328, 4294901760
        %4330 = vmatpush1.msra.mxu0 %v4329
        %4331 = vmatprep.subr.mxu0 0.0
        %4332 = vmatpush2.msra.mxu0 0.0
        %4333 = vmatprep.subr.mxu0 0.0
        %4334 = vmatpush2.msra.mxu0 0.0
        %4335 = vmatprep.subr.mxu0 0.0
        %4336 = vmatpush2.msra.mxu0 0.0
        %4337 = vmatprep.subr.mxu0 0.0
        %4338 = vmatpush2.msra.mxu0 0.0
        %4339 = vmatprep.subr.mxu0 0.0
        %4340 = vmatpush2.msra.mxu0 0.0
        %4341 = vmatprep.subr.mxu0 0.0
        %4342 = vmatpush2.msra.mxu0 0.0
        %4343 = vmatprep.subr.mxu0 0.0
        %4344 = vmatpush2.msra.mxu0 0.0
        %4345 = vmatprep.subr.mxu0 0.0
        %4346 = vmatpush2.msra.mxu0 0.0
        %4347 = vmatprep.subr.mxu0 0.0
        %4348 = vmatpush2.msra.mxu0 0.0
        %4349 = vmatprep.subr.mxu0 0.0
        %4350 = vmatpush2.msra.mxu0 0.0
        %4351 = vmatprep.subr.mxu0 0.0
        %4352 = vmatpush2.msra.mxu0 0.0
        %4353 = vmatprep.subr.mxu0 0.0
        %4354 = vmatpush2.msra.mxu0 0.0
        %4355 = vmatprep.subr.mxu0 0.0
        %4356 = vmatpush2.msra.mxu0 0.0
        %4357 = vmatprep.subr.mxu0 0.0
        %4358 = vmatpush2.msra.mxu0 0.0
        %4359 = vmatprep.subr.mxu0 0.0
        %4360 = vmatpush2.msra.mxu0 0.0
        %4361 = vmatprep.subr.mxu0 0.0
        %4362 = vmatpush2.msra.mxu0 0.0
        %4363 = vmatprep.mubr.f32.mxu0 0.0
        %v4364 = vand.u32 %v3441, 4294901760
        %4365 = vmatmul.mubr.f32.gmra.mxu0 %v4364
        %v4366 = vpop.f32.mrf.mxu0
        %v4367 = vadd.f32 %v4222, %v4366
        %v4368 = vpop.f32.mrf.mxu0
        %v4369 = vadd.f32 %v4224, %v4368
        %4370 = vmatprep.mubr.f32.mxu0 0.0
        %v4371 = vand.u32 %v3444, 4294901760
        %4372 = vmatmul.mubr.f32.gmra.mxu0 %v4371
        %v4373 = vpop.f32.mrf.mxu0
        %v4374 = vadd.f32 %v4233, %v4373
        %v4375 = vpop.f32.mrf.mxu0
        %v4376 = vadd.f32 %v4235, %v4375
        %4377 = vmatprep.mubr.f32.mxu0 0.0
        %v4378 = vand.u32 %v3447, 4294901760
        %4379 = vmatmul.mubr.f32.gmra.mxu0 %v4378
        %v4380 = vpop.f32.mrf.mxu0
        %v4381 = vadd.f32 %v4244, %v4380
        %v4382 = vpop.f32.mrf.mxu0
        %v4383 = vadd.f32 %v4246, %v4382
        %4384 = vmatprep.mubr.f32.mxu0 0.0
        %v4385 = vand.u32 %v3450, 4294901760
        %4386 = vmatmul.mubr.f32.gmra.mxu0 %v4385
        %v4387 = vpop.f32.mrf.mxu0
        %v4388 = vadd.f32 %v4255, %v4387
        %v4389 = vpop.f32.mrf.mxu0
        %v4390 = vadd.f32 %v4257, %v4389
        %4391 = vdwg.mxu0
        %4392 = vmatprep.subr.mxu0 0.0
        %4393 = vmatpush1.msra.mxu0 0.0
        %4394 = vmatprep.subr.mxu0 0.0
        %4395 = vmatpush1.msra.mxu0 0.0
        %4396 = vmatprep.subr.mxu0 0.0
        %4397 = vmatpush1.msra.mxu0 0.0
        %4398 = vmatprep.subr.mxu0 0.0
        %4399 = vmatpush1.msra.mxu0 0.0
        %4400 = vmatprep.subr.mxu0 0.0
        %4401 = vmatpush1.msra.mxu0 0.0
        %4402 = vmatprep.subr.mxu0 0.0
        %4403 = vmatpush1.msra.mxu0 0.0
        %4404 = vmatprep.subr.mxu0 0.0
        %4405 = vmatpush1.msra.mxu0 0.0
        %4406 = vmatprep.subr.mxu0 0.0
        %4407 = vmatpush1.msra.mxu0 0.0
        %4408 = vmatprep.subr.mxu0 0.0
        %4409 = vmatpush1.msra.mxu0 0.0
        %4410 = vmatprep.subr.mxu0 0.0
        %4411 = vmatpush1.msra.mxu0 0.0
        %4412 = vmatprep.subr.mxu0 0.0
        %4413 = vmatpush1.msra.mxu0 0.0
        %4414 = vmatprep.subr.mxu0 0.0
        %4415 = vmatpush1.msra.mxu0 0.0
        %v4416 = vand.u32 %v3409, 4294901760
        %v4417 = vsub.f32 %v3409, %v4416
        %4418 = vmatprep.subr.mxu0 %v4417
        %v4419 = vand.u32 %v3408, 4294901760
        %v4420 = vsub.f32 %v3408, %v4419
        %4421 = vmatpush1.msra.mxu0 %v4420
        %v4422 = vand.u32 %v3405, 4294901760
        %v4423 = vsub.f32 %v3405, %v4422
        %4424 = vmatprep.subr.mxu0 %v4423
        %v4425 = vand.u32 %v3404, 4294901760
        %v4426 = vsub.f32 %v3404, %v4425
        %4427 = vmatpush1.msra.mxu0 %v4426
        %v4428 = vand.u32 %v3401, 4294901760
        %v4429 = vsub.f32 %v3401, %v4428
        %4430 = vmatprep.subr.mxu0 %v4429
        %v4431 = vand.u32 %v3400, 4294901760
        %v4432 = vsub.f32 %v3400, %v4431
        %4433 = vmatpush1.msra.mxu0 %v4432
        %v4434 = vand.u32 %v3397, 4294901760
        %v4435 = vsub.f32 %v3397, %v4434
        %4436 = vmatprep.subr.mxu0 %v4435
        %v4437 = vand.u32 %v3396, 4294901760
        %v4438 = vsub.f32 %v3396, %v4437
        %4439 = vmatpush1.msra.mxu0 %v4438
        %4440 = vmatprep.subr.mxu0 0.0
        %4441 = vmatpush2.msra.mxu0 0.0
        %4442 = vmatprep.subr.mxu0 0.0
        %4443 = vmatpush2.msra.mxu0 0.0
        %4444 = vmatprep.subr.mxu0 0.0
        %4445 = vmatpush2.msra.mxu0 0.0
        %4446 = vmatprep.subr.mxu0 0.0
        %4447 = vmatpush2.msra.mxu0 0.0
        %4448 = vmatprep.subr.mxu0 0.0
        %4449 = vmatpush2.msra.mxu0 0.0
        %4450 = vmatprep.subr.mxu0 0.0
        %4451 = vmatpush2.msra.mxu0 0.0
        %4452 = vmatprep.subr.mxu0 0.0
        %4453 = vmatpush2.msra.mxu0 0.0
        %4454 = vmatprep.subr.mxu0 0.0
        %4455 = vmatpush2.msra.mxu0 0.0
        %4456 = vmatprep.subr.mxu0 0.0
        %4457 = vmatpush2.msra.mxu0 0.0
        %4458 = vmatprep.subr.mxu0 0.0
        %4459 = vmatpush2.msra.mxu0 0.0
        %4460 = vmatprep.subr.mxu0 0.0
        %4461 = vmatpush2.msra.mxu0 0.0
        %4462 = vmatprep.subr.mxu0 0.0
        %4463 = vmatpush2.msra.mxu0 0.0
        %4464 = vmatprep.subr.mxu0 0.0
        %4465 = vmatpush2.msra.mxu0 0.0
        %4466 = vmatprep.subr.mxu0 0.0
        %4467 = vmatpush2.msra.mxu0 0.0
        %4468 = vmatprep.subr.mxu0 0.0
        %4469 = vmatpush2.msra.mxu0 0.0
        %4470 = vmatprep.subr.mxu0 0.0
        %4471 = vmatpush2.msra.mxu0 0.0
        %4472 = vmatprep.mubr.f32.mxu0 0.0
        %v4473 = vand.u32 %v3441, 4294901760
        %v4474 = vsub.f32 %v3441, %v4473
        %4475 = vmatmul.mubr.f32.gmra.mxu0 %v4474
        %v4476 = vpop.f32.mrf.mxu0
        %v4477 = vadd.f32 %v4367, %v4476
        %v4478 = vpop.f32.mrf.mxu0
        %v4479 = vadd.f32 %v4369, %v4478
        %4480 = vmatprep.mubr.f32.mxu0 0.0
        %v4481 = vand.u32 %v3444, 4294901760
        %v4482 = vsub.f32 %v3444, %v4481
        %4483 = vmatmul.mubr.f32.gmra.mxu0 %v4482
        %v4484 = vpop.f32.mrf.mxu0
        %v4485 = vadd.f32 %v4374, %v4484
        %v4486 = vpop.f32.mrf.mxu0
        %v4487 = vadd.f32 %v4376, %v4486
        %4488 = vmatprep.mubr.f32.mxu0 0.0
        %v4489 = vand.u32 %v3447, 4294901760
        %v4490 = vsub.f32 %v3447, %v4489
        %4491 = vmatmul.mubr.f32.gmra.mxu0 %v4490
        %v4492 = vpop.f32.mrf.mxu0
        %v4493 = vadd.f32 %v4381, %v4492
        %v4494 = vpop.f32.mrf.mxu0
        %v4495 = vadd.f32 %v4383, %v4494
        %4496 = vmatprep.mubr.f32.mxu0 0.0
        %v4497 = vand.u32 %v3450, 4294901760
        %v4498 = vsub.f32 %v3450, %v4497
        %4499 = vmatmul.mubr.f32.gmra.mxu0 %v4498
        %v4500 = vpop.f32.mrf.mxu0
        %v4501 = vadd.f32 %v4388, %v4500
        %v4502 = vpop.f32.mrf.mxu0
        %v4503 = vadd.f32 %v4390, %v4502
        %4504 = vdwg.mxu0
        %4505 = vmatprep.subr.mxu0 0.0
        %4506 = vmatpush1.msra.mxu0 0.0
        %4507 = vmatprep.subr.mxu0 0.0
        %4508 = vmatpush1.msra.mxu0 0.0
        %4509 = vmatprep.subr.mxu0 0.0
        %4510 = vmatpush1.msra.mxu0 0.0
        %4511 = vmatprep.subr.mxu0 0.0
        %4512 = vmatpush1.msra.mxu0 0.0
        %4513 = vmatprep.subr.mxu0 0.0
        %4514 = vmatpush1.msra.mxu0 0.0
        %4515 = vmatprep.subr.mxu0 0.0
        %4516 = vmatpush1.msra.mxu0 0.0
        %4517 = vmatprep.subr.mxu0 0.0
        %4518 = vmatpush1.msra.mxu0 0.0
        %4519 = vmatprep.subr.mxu0 0.0
        %4520 = vmatpush1.msra.mxu0 0.0
        %4521 = vmatprep.subr.mxu0 0.0
        %4522 = vmatpush1.msra.mxu0 0.0
        %4523 = vmatprep.subr.mxu0 0.0
        %4524 = vmatpush1.msra.mxu0 0.0
        %4525 = vmatprep.subr.mxu0 0.0
        %4526 = vmatpush1.msra.mxu0 0.0
        %4527 = vmatprep.subr.mxu0 0.0
        %4528 = vmatpush1.msra.mxu0 0.0
        %v4529 = vand.u32 %v3409, 4294901760
        %4530 = vmatprep.subr.mxu0 %v4529
        %v4531 = vand.u32 %v3408, 4294901760
        %4532 = vmatpush1.msra.mxu0 %v4531
        %v4533 = vand.u32 %v3405, 4294901760
        %4534 = vmatprep.subr.mxu0 %v4533
        %v4535 = vand.u32 %v3404, 4294901760
        %4536 = vmatpush1.msra.mxu0 %v4535
        %v4537 = vand.u32 %v3401, 4294901760
        %4538 = vmatprep.subr.mxu0 %v4537
        %v4539 = vand.u32 %v3400, 4294901760
        %4540 = vmatpush1.msra.mxu0 %v4539
        %v4541 = vand.u32 %v3397, 4294901760
        %4542 = vmatprep.subr.mxu0 %v4541
        %v4543 = vand.u32 %v3396, 4294901760
        %4544 = vmatpush1.msra.mxu0 %v4543
        %4545 = vmatprep.subr.mxu0 0.0
        %4546 = vmatpush2.msra.mxu0 0.0
        %4547 = vmatprep.subr.mxu0 0.0
        %4548 = vmatpush2.msra.mxu0 0.0
        %4549 = vmatprep.subr.mxu0 0.0
        %4550 = vmatpush2.msra.mxu0 0.0
        %4551 = vmatprep.subr.mxu0 0.0
        %4552 = vmatpush2.msra.mxu0 0.0
        %4553 = vmatprep.subr.mxu0 0.0
        %4554 = vmatpush2.msra.mxu0 0.0
        %4555 = vmatprep.subr.mxu0 0.0
        %4556 = vmatpush2.msra.mxu0 0.0
        %4557 = vmatprep.subr.mxu0 0.0
        %4558 = vmatpush2.msra.mxu0 0.0
        %4559 = vmatprep.subr.mxu0 0.0
        %4560 = vmatpush2.msra.mxu0 0.0
        %4561 = vmatprep.subr.mxu0 0.0
        %4562 = vmatpush2.msra.mxu0 0.0
        %4563 = vmatprep.subr.mxu0 0.0
        %4564 = vmatpush2.msra.mxu0 0.0
        %4565 = vmatprep.subr.mxu0 0.0
        %4566 = vmatpush2.msra.mxu0 0.0
        %4567 = vmatprep.subr.mxu0 0.0
        %4568 = vmatpush2.msra.mxu0 0.0
        %4569 = vmatprep.subr.mxu0 0.0
        %4570 = vmatpush2.msra.mxu0 0.0
        %4571 = vmatprep.subr.mxu0 0.0
        %4572 = vmatpush2.msra.mxu0 0.0
        %4573 = vmatprep.subr.mxu0 0.0
        %4574 = vmatpush2.msra.mxu0 0.0
        %4575 = vmatprep.subr.mxu0 0.0
        %4576 = vmatpush2.msra.mxu0 0.0
        %4577 = vmatprep.mubr.f32.mxu0 0.0
        %v4578 = vand.u32 %v3441, 4294901760
        %v4579 = vsub.f32 %v3441, %v4578
        %v4580 = vand.u32 %v4579, 4294901760
        %4581 = vmatmul.mubr.f32.gmra.mxu0 %v4580
        %v4582 = vpop.f32.mrf.mxu0
        %v4583 = vadd.f32 %v4477, %v4582
        %v4584 = vpop.f32.mrf.mxu0
        %v4585 = vadd.f32 %v4479, %v4584
        %4586 = vmatprep.mubr.f32.mxu0 0.0
        %v4587 = vand.u32 %v3444, 4294901760
        %v4588 = vsub.f32 %v3444, %v4587
        %v4589 = vand.u32 %v4588, 4294901760
        %4590 = vmatmul.mubr.f32.gmra.mxu0 %v4589
        %v4591 = vpop.f32.mrf.mxu0
        %v4592 = vadd.f32 %v4485, %v4591
        %v4593 = vpop.f32.mrf.mxu0
        %v4594 = vadd.f32 %v4487, %v4593
        %4595 = vmatprep.mubr.f32.mxu0 0.0
        %v4596 = vand.u32 %v3447, 4294901760
        %v4597 = vsub.f32 %v3447, %v4596
        %v4598 = vand.u32 %v4597, 4294901760
        %4599 = vmatmul.mubr.f32.gmra.mxu0 %v4598
        %v4600 = vpop.f32.mrf.mxu0
        %v4601 = vadd.f32 %v4493, %v4600
        %v4602 = vpop.f32.mrf.mxu0
        %v4603 = vadd.f32 %v4495, %v4602
        %4604 = vmatprep.mubr.f32.mxu0 0.0
        %v4605 = vand.u32 %v3450, 4294901760
        %v4606 = vsub.f32 %v3450, %v4605
        %v4607 = vand.u32 %v4606, 4294901760
        %4608 = vmatmul.mubr.f32.gmra.mxu0 %v4607
        %v4609 = vpop.f32.mrf.mxu0
        %v4610 = vadd.f32 %v4501, %v4609
        %v4611 = vpop.f32.mrf.mxu0
        %v4612 = vadd.f32 %v4503, %v4611
        %4613 = vdwg.mxu0
        %4614 = vmatprep.subr.mxu0 0.0
        %4615 = vmatpush1.msra.mxu0 0.0
        %4616 = vmatprep.subr.mxu0 0.0
        %4617 = vmatpush1.msra.mxu0 0.0
        %4618 = vmatprep.subr.mxu0 0.0
        %4619 = vmatpush1.msra.mxu0 0.0
        %4620 = vmatprep.subr.mxu0 0.0
        %4621 = vmatpush1.msra.mxu0 0.0
        %4622 = vmatprep.subr.mxu0 0.0
        %4623 = vmatpush1.msra.mxu0 0.0
        %4624 = vmatprep.subr.mxu0 0.0
        %4625 = vmatpush1.msra.mxu0 0.0
        %4626 = vmatprep.subr.mxu0 0.0
        %4627 = vmatpush1.msra.mxu0 0.0
        %4628 = vmatprep.subr.mxu0 0.0
        %4629 = vmatpush1.msra.mxu0 0.0
        %4630 = vmatprep.subr.mxu0 0.0
        %4631 = vmatpush1.msra.mxu0 0.0
        %4632 = vmatprep.subr.mxu0 0.0
        %4633 = vmatpush1.msra.mxu0 0.0
        %4634 = vmatprep.subr.mxu0 0.0
        %4635 = vmatpush1.msra.mxu0 0.0
        %4636 = vmatprep.subr.mxu0 0.0
        %4637 = vmatpush1.msra.mxu0 0.0
        %v4638 = vand.u32 %v3409, 4294901760
        %v4639 = vsub.f32 %v3409, %v4638
        %v4640 = vand.u32 %v4639, 4294901760
        %4641 = vmatprep.subr.mxu0 %v4640
        %v4642 = vand.u32 %v3408, 4294901760
        %v4643 = vsub.f32 %v3408, %v4642
        %v4644 = vand.u32 %v4643, 4294901760
        %4645 = vmatpush1.msra.mxu0 %v4644
        %v4646 = vand.u32 %v3405, 4294901760
        %v4647 = vsub.f32 %v3405, %v4646
        %v4648 = vand.u32 %v4647, 4294901760
        %4649 = vmatprep.subr.mxu0 %v4648
        %v4650 = vand.u32 %v3404, 4294901760
        %v4651 = vsub.f32 %v3404, %v4650
        %v4652 = vand.u32 %v4651, 4294901760
        %4653 = vmatpush1.msra.mxu0 %v4652
        %v4654 = vand.u32 %v3401, 4294901760
        %v4655 = vsub.f32 %v3401, %v4654
        %v4656 = vand.u32 %v4655, 4294901760
        %4657 = vmatprep.subr.mxu0 %v4656
        %v4658 = vand.u32 %v3400, 4294901760
        %v4659 = vsub.f32 %v3400, %v4658
        %v4660 = vand.u32 %v4659, 4294901760
        %4661 = vmatpush1.msra.mxu0 %v4660
        %v4662 = vand.u32 %v3397, 4294901760
        %v4663 = vsub.f32 %v3397, %v4662
        %v4664 = vand.u32 %v4663, 4294901760
        %4665 = vmatprep.subr.mxu0 %v4664
        %v4666 = vand.u32 %v3396, 4294901760
        %v4667 = vsub.f32 %v3396, %v4666
        %v4668 = vand.u32 %v4667, 4294901760
        %4669 = vmatpush1.msra.mxu0 %v4668
        %4670 = vmatprep.subr.mxu0 0.0
        %4671 = vmatpush2.msra.mxu0 0.0
        %4672 = vmatprep.subr.mxu0 0.0
        %4673 = vmatpush2.msra.mxu0 0.0
        %4674 = vmatprep.subr.mxu0 0.0
        %4675 = vmatpush2.msra.mxu0 0.0
        %4676 = vmatprep.subr.mxu0 0.0
        %4677 = vmatpush2.msra.mxu0 0.0
        %4678 = vmatprep.subr.mxu0 0.0
        %4679 = vmatpush2.msra.mxu0 0.0
        %4680 = vmatprep.subr.mxu0 0.0
        %4681 = vmatpush2.msra.mxu0 0.0
        %4682 = vmatprep.subr.mxu0 0.0
        %4683 = vmatpush2.msra.mxu0 0.0
        %4684 = vmatprep.subr.mxu0 0.0
        %4685 = vmatpush2.msra.mxu0 0.0
        %4686 = vmatprep.subr.mxu0 0.0
        %4687 = vmatpush2.msra.mxu0 0.0
        %4688 = vmatprep.subr.mxu0 0.0
        %4689 = vmatpush2.msra.mxu0 0.0
        %4690 = vmatprep.subr.mxu0 0.0
        %4691 = vmatpush2.msra.mxu0 0.0
        %4692 = vmatprep.subr.mxu0 0.0
        %4693 = vmatpush2.msra.mxu0 0.0
        %4694 = vmatprep.subr.mxu0 0.0
        %4695 = vmatpush2.msra.mxu0 0.0
        %4696 = vmatprep.subr.mxu0 0.0
        %4697 = vmatpush2.msra.mxu0 0.0
        %4698 = vmatprep.subr.mxu0 0.0
        %4699 = vmatpush2.msra.mxu0 0.0
        %4700 = vmatprep.subr.mxu0 0.0
        %4701 = vmatpush2.msra.mxu0 0.0
        %4702 = vmatprep.mubr.f32.mxu0 0.0
        %v4703 = vand.u32 %v3441, 4294901760
        %4704 = vmatmul.mubr.f32.gmra.mxu0 %v4703
        %v4705 = vpop.f32.mrf.mxu0
        %v4706 = vadd.f32 %v4583, %v4705
        %v4707 = vpop.f32.mrf.mxu0
        %v4708 = vadd.f32 %v4585, %v4707
        %4709 = vmatprep.mubr.f32.mxu0 0.0
        %v4710 = vand.u32 %v3444, 4294901760
        %4711 = vmatmul.mubr.f32.gmra.mxu0 %v4710
        %v4712 = vpop.f32.mrf.mxu0
        %v4713 = vadd.f32 %v4592, %v4712
        %v4714 = vpop.f32.mrf.mxu0
        %v4715 = vadd.f32 %v4594, %v4714
        %4716 = vmatprep.mubr.f32.mxu0 0.0
        %v4717 = vand.u32 %v3447, 4294901760
        %4718 = vmatmul.mubr.f32.gmra.mxu0 %v4717
        %v4719 = vpop.f32.mrf.mxu0
        %v4720 = vadd.f32 %v4601, %v4719
        %v4721 = vpop.f32.mrf.mxu0
        %v4722 = vadd.f32 %v4603, %v4721
        %4723 = vmatprep.mubr.f32.mxu0 0.0
        %v4724 = vand.u32 %v3450, 4294901760
        %4725 = vmatmul.mubr.f32.gmra.mxu0 %v4724
        %v4726 = vpop.f32.mrf.mxu0
        %v4727 = vadd.f32 %v4610, %v4726
        %v4728 = vpop.f32.mrf.mxu0
        %v4729 = vadd.f32 %v4612, %v4728
        %4730 = vdwg.mxu0
        %4731 = vmatprep.subr.mxu0 0.0
        %4732 = vmatpush1.msra.mxu0 0.0
        %4733 = vmatprep.subr.mxu0 0.0
        %4734 = vmatpush1.msra.mxu0 0.0
        %4735 = vmatprep.subr.mxu0 0.0
        %4736 = vmatpush1.msra.mxu0 0.0
        %4737 = vmatprep.subr.mxu0 0.0
        %4738 = vmatpush1.msra.mxu0 0.0
        %4739 = vmatprep.subr.mxu0 0.0
        %4740 = vmatpush1.msra.mxu0 0.0
        %4741 = vmatprep.subr.mxu0 0.0
        %4742 = vmatpush1.msra.mxu0 0.0
        %4743 = vmatprep.subr.mxu0 0.0
        %4744 = vmatpush1.msra.mxu0 0.0
        %4745 = vmatprep.subr.mxu0 0.0
        %4746 = vmatpush1.msra.mxu0 0.0
        %4747 = vmatprep.subr.mxu0 0.0
        %4748 = vmatpush1.msra.mxu0 0.0
        %4749 = vmatprep.subr.mxu0 0.0
        %4750 = vmatpush1.msra.mxu0 0.0
        %4751 = vmatprep.subr.mxu0 0.0
        %4752 = vmatpush1.msra.mxu0 0.0
        %4753 = vmatprep.subr.mxu0 0.0
        %4754 = vmatpush1.msra.mxu0 0.0
        %v4755 = vand.u32 %v3409, 4294901760
        %4756 = vmatprep.subr.mxu0 %v4755
        %v4757 = vand.u32 %v3408, 4294901760
        %4758 = vmatpush1.msra.mxu0 %v4757
        %v4759 = vand.u32 %v3405, 4294901760
        %4760 = vmatprep.subr.mxu0 %v4759
        %v4761 = vand.u32 %v3404, 4294901760
        %4762 = vmatpush1.msra.mxu0 %v4761
        %v4763 = vand.u32 %v3401, 4294901760
        %4764 = vmatprep.subr.mxu0 %v4763
        %v4765 = vand.u32 %v3400, 4294901760
        %4766 = vmatpush1.msra.mxu0 %v4765
        %v4767 = vand.u32 %v3397, 4294901760
        %4768 = vmatprep.subr.mxu0 %v4767
        %v4769 = vand.u32 %v3396, 4294901760
        %4770 = vmatpush1.msra.mxu0 %v4769
        %4771 = vmatprep.subr.mxu0 0.0
        %4772 = vmatpush2.msra.mxu0 0.0
        %4773 = vmatprep.subr.mxu0 0.0
        %4774 = vmatpush2.msra.mxu0 0.0
        %4775 = vmatprep.subr.mxu0 0.0
        %4776 = vmatpush2.msra.mxu0 0.0
        %4777 = vmatprep.subr.mxu0 0.0
        %4778 = vmatpush2.msra.mxu0 0.0
        %4779 = vmatprep.subr.mxu0 0.0
        %4780 = vmatpush2.msra.mxu0 0.0
        %4781 = vmatprep.subr.mxu0 0.0
        %4782 = vmatpush2.msra.mxu0 0.0
        %4783 = vmatprep.subr.mxu0 0.0
        %4784 = vmatpush2.msra.mxu0 0.0
        %4785 = vmatprep.subr.mxu0 0.0
        %4786 = vmatpush2.msra.mxu0 0.0
        %4787 = vmatprep.subr.mxu0 0.0
        %4788 = vmatpush2.msra.mxu0 0.0
        %4789 = vmatprep.subr.mxu0 0.0
        %4790 = vmatpush2.msra.mxu0 0.0
        %4791 = vmatprep.subr.mxu0 0.0
        %4792 = vmatpush2.msra.mxu0 0.0
        %4793 = vmatprep.subr.mxu0 0.0
        %4794 = vmatpush2.msra.mxu0 0.0
        %4795 = vmatprep.subr.mxu0 0.0
        %4796 = vmatpush2.msra.mxu0 0.0
        %4797 = vmatprep.subr.mxu0 0.0
        %4798 = vmatpush2.msra.mxu0 0.0
        %4799 = vmatprep.subr.mxu0 0.0
        %4800 = vmatpush2.msra.mxu0 0.0
        %4801 = vmatprep.subr.mxu0 0.0
        %4802 = vmatpush2.msra.mxu0 0.0
        %4803 = vmatprep.mubr.f32.mxu0 0.0
        %v4804 = vand.u32 %v3441, 4294901760
        %4805 = vmatmul.mubr.f32.gmra.mxu0 %v4804
        %v4806 = vpop.f32.mrf.mxu0
        %v4807 = vadd.f32 %v4706, %v4806
        %v4808 = vpop.f32.mrf.mxu0
        %v4809 = vadd.f32 %v4708, %v4808
        %4810 = vmatprep.mubr.f32.mxu0 0.0
        %v4811 = vand.u32 %v3444, 4294901760
        %4812 = vmatmul.mubr.f32.gmra.mxu0 %v4811
        %v4813 = vpop.f32.mrf.mxu0
        %v4814 = vadd.f32 %v4713, %v4813
        %v4815 = vpop.f32.mrf.mxu0
        %v4816 = vadd.f32 %v4715, %v4815
        %4817 = vmatprep.mubr.f32.mxu0 0.0
        %v4818 = vand.u32 %v3447, 4294901760
        %4819 = vmatmul.mubr.f32.gmra.mxu0 %v4818
        %v4820 = vpop.f32.mrf.mxu0
        %v4821 = vadd.f32 %v4720, %v4820
        %v4822 = vpop.f32.mrf.mxu0
        %v4823 = vadd.f32 %v4722, %v4822
        %4824 = vmatprep.mubr.f32.mxu0 0.0
        %v4825 = vand.u32 %v3450, 4294901760
        %4826 = vmatmul.mubr.f32.gmra.mxu0 %v4825
        %v4827 = vpop.f32.mrf.mxu0
        %v4828 = vadd.f32 %v4727, %v4827
        %v4829 = vpop.f32.mrf.mxu0
        %v4830 = vadd.f32 %v4729, %v4829
        %4831 = vdwg.mxu0
        %v4832 = vtanh.pop %v4117
        %v4833 = vtanh.pop %v4119
        %v4834 = vtanh.pop %v4807
        %v4835 = vtanh.pop %v4809
        %v4836 = vtanh.pop %v4124
        %v4837 = vtanh.pop %v4126
        %v4838 = vtanh.pop %v4814
        %v4839 = vtanh.pop %v4816
        %v4840 = vtanh.pop %v4131
        %v4841 = vtanh.pop %v4133
        %v4842 = vtanh.pop %v4821
        %v4843 = vtanh.pop %v4823
        %v4844 = vtanh.pop %v4138
        %v4845 = vtanh.pop %v4140
        %v4846 = vtanh.pop %v4828
        %v4847 = vtanh.pop %v4830
        %v4848 = vld [vmem:[%s6] sm:$0xff]
        %v4849 = vld [vmem:[%s6 + $0x8] sm:$0xff]
        %v4850 = vld [vmem:[%s6 + $0x10] sm:$0xff]
        %v4851 = vld [vmem:[%s6 + $0x18] sm:$0xff]
        %4853 = vset.pattern.permute.xlu0 0
        %4854 = vperm.xlu0 %4853, %v4848
        %v4855 = vpop.permute.xlu0 %4854
        %4858 = vset.pattern.permute.xlu0 0
        %4859 = vperm.xlu0 %4858, %v4849
        %v4860 = vpop.permute.xlu0 %4859
        %4863 = vset.pattern.permute.xlu0 0
        %4864 = vperm.xlu0 %4863, %v4850
        %v4865 = vpop.permute.xlu0 %4864
        %4868 = vset.pattern.permute.xlu0 0
        %4869 = vperm.xlu0 %4868, %v4851
        %v4870 = vpop.permute.xlu0 %4869
        %v4872 = vmul.f32 %v4855, %v4832
        %v4873 = vmul.f32 %v4855, %v4833
        %v4874 = vmul.f32 %v4855, %v4834
        %v4875 = vmul.f32 %v4855, %v4835
        %v4876 = vmul.f32 %v4860, %v4836
        %v4877 = vmul.f32 %v4860, %v4837
        %v4878 = vmul.f32 %v4860, %v4838
        %v4879 = vmul.f32 %v4860, %v4839
        %v4880 = vmul.f32 %v4865, %v4840
        %v4881 = vmul.f32 %v4865, %v4841
        %v4882 = vmul.f32 %v4865, %v4842
        %v4883 = vmul.f32 %v4865, %v4843
        %v4884 = vmul.f32 %v4870, %v4844
        %v4885 = vmul.f32 %v4870, %v4845
        %v4886 = vmul.f32 %v4870, %v4846
        %v4887 = vmul.f32 %v4870, %v4847
        %v4888 = vadd.f32 %v4872, %v4876
        %v4889 = vadd.f32 %v4888, %v4880
        %v4890 = vadd.f32 %v4889, %v4884
        %v4891 = vrot.slane %v4890, 4
        %v4892 = vadd.f32 %v4890, %v4891
        %v4893 = vrot.slane %v4892, 2
        %v4894 = vadd.f32 %v4892, %v4893
        %v4895 = vrot.slane %v4894, 1
        %v4896 = vadd.f32 %v4894, %v4895
        %v4897 = vadd.f32 %v4873, %v4877
        %v4898 = vadd.f32 %v4897, %v4881
        %v4899 = vadd.f32 %v4898, %v4885
        %v4900 = vrot.slane %v4899, 4
        %v4901 = vadd.f32 %v4899, %v4900
        %v4902 = vrot.slane %v4901, 2
        %v4903 = vadd.f32 %v4901, %v4902
        %v4904 = vrot.slane %v4903, 1
        %v4905 = vadd.f32 %v4903, %v4904
        %v4906 = vadd.f32 %v4874, %v4878
        %v4907 = vadd.f32 %v4906, %v4882
        %v4908 = vadd.f32 %v4907, %v4886
        %v4909 = vrot.slane %v4908, 4
        %v4910 = vadd.f32 %v4908, %v4909
        %v4911 = vrot.slane %v4910, 2
        %v4912 = vadd.f32 %v4910, %v4911
        %v4913 = vrot.slane %v4912, 1
        %v4914 = vadd.f32 %v4912, %v4913
        %v4915 = vadd.f32 %v4875, %v4879
        %v4916 = vadd.f32 %v4915, %v4883
        %v4917 = vadd.f32 %v4916, %v4887
        %v4918 = vrot.slane %v4917, 4
        %v4919 = vadd.f32 %v4917, %v4918
        %v4920 = vrot.slane %v4919, 2
        %v4921 = vadd.f32 %v4919, %v4920
        %v4922 = vrot.slane %v4921, 1
        %v4923 = vadd.f32 %v4921, %v4922
        %v4924 = vld [vmem:[#allocation2] sm:$0x1]
        %4926 = vset.pattern.permute.xlu0 0
        %4927 = vperm.xlu0 %4926, %v4924
        %v4928 = vpop.permute.xlu0 %4927
        %v4930 = vlaneseq
        %v4931 = vshrl.u32 %v4930, 7
        %v4932 = vsub.s32 0, %v4931
        %v4933 = vrot.slane %v4928, %v4932
        %v4934 = vadd.f32 %v4896, %v4933
        %v4935 = vadd.f32 %v4905, %v4933
        %v4936 = vadd.f32 %v4914, %v4933
        %v4937 = vadd.f32 %v4923, %v4933
        %v4938 = vxor.u32 %v4934, 2147483648
        %v4939 = vxor.u32 %v4935, 2147483648
        %v4940 = vxor.u32 %v4936, 2147483648
        %v4941 = vxor.u32 %v4937, 2147483648
        %v4942 = vmul.f32 %v4938, 1.442695
        %v4943 = vpow.pop %v4942
        %v4944 = vmul.f32 %v4939, 1.442695
        %v4945 = vpow.pop %v4944
        %v4946 = vmul.f32 %v4940, 1.442695
        %v4947 = vpow.pop %v4946
        %v4948 = vmul.f32 %v4941, 1.442695
        %v4949 = vpow.pop %v4948
        %v4950 = vadd.f32 %v4943, 1.0
        %v4951 = vadd.f32 %v4945, 1.0
        %v4952 = vadd.f32 %v4947, 1.0
        %v4953 = vadd.f32 %v4949, 1.0
        %v4954 = vrcp.pop %v4950
        %v4955 = vmul.f32 1.0, %v4954
        %v4956 = vrcp.pop %v4951
        %v4957 = vmul.f32 1.0, %v4956
        %v4958 = vrcp.pop %v4952
        %v4959 = vmul.f32 1.0, %v4958
        %v4960 = vrcp.pop %v4953
        %v4961 = vmul.f32 1.0, %v4960
        %v4966 = vcombine.low %v4955, %v4957
        %v4967 = vcombine.low %v4959, %v4961
        %v4969 = vunpack.c.l.s4 1966171168
        %v4970 = vunpack.c.0.s8 %v4969
        %v4971 = vlaneseq
        %v4972 = vshrl.u32 %v4971, 7
        %v4973 = vsub.s32 %v4970, %v4972
        %v4974 = vrot.slane %v4966, %v4973
        %v4976 = vunpack.c.l.s4 1966171168
        %v4977 = vunpack.c.0.s8 %v4976
        %v4978 = vlaneseq
        %v4979 = vshrl.u32 %v4978, 7
        %v4980 = vsub.s32 %v4977, %v4979
        %v4981 = vrot.slane %v4967, %v4980
        %v4982 = vcombine.low %v4974, %v4981
        %v4984 = vunpack.c.l.s4 1966171168
        %v4985 = vunpack.c.0.s8 %v4984
        %v4986 = vlaneseq
        %v4987 = vshrl.u32 %v4986, 7
        %v4988 = vsub.s32 %v4985, %v4987
        %v4989 = vrot.slane %v4982, %v4988
        %v4991 = vlaneseq
        %vm4992 = vcmp.ge.s32.totalorder %v4991, 0
        %vm4993 = vcmp.lt.s32.totalorder %v4991, 512
        %vm4994 = vmand %vm4992, %vm4993
        %4995 = vst.msk [vmem:[%s301] sm:$0xf] %vm4994, %v4989
        %s4996 = sand.u32 %s205, 1
        %s4997 = scalar_lea.sflag [#allocation4], %s4996
        %s4998 = sand.u32 %s205, 1
        %s4999 = smul.addr %s4998, 4
        %s5000 = scalar_lea.vmem [#allocation3], %s4999
        // Predicated region
        $region53: #{tpu_custom_call.1} parent=51 // pred_check
          %p5001 = pneg %p215
        $region54: #{tpu_custom_call.1} parent=51 // pred_check_branch
          %5003 = sbr.rel (%p5001) target = $region56
        $region55: #{tpu_custom_call.1} parent=51 // pred_region
          %s5004 = smul.u32 4, %s24
          %s5006 = ssub.s32 64, 64
          %5007 = vsyncadd %s4997, %s5006
          %s5008 = smul.addr %s5004, 16
          %s5009 = scalar_lea.hbm %s8, %s5008
          %s5011 = sshll.u32 %s5000, 4
          %s5012 = int_to_ptr.vmem [resolvable:$true] %s5011
          %5014 = dma.vmem_to_hbm [thread:$0]  %s5012, 64, %s5009, %s4997
        $region56: #{tpu_custom_call.1} parent=51 // pred_fallthru
          _
      $region52: #{tpu_custom_call.1} parent=5 // pred_fallthru
        _
      %p5015 = scmp.le.s32.totalorder 2, %s19
      // Predicated region
      $region57: #{tpu_custom_call.1} parent=5 // pred_check
        %p5016 = pneg %p5015
      $region58: #{tpu_custom_call.1} parent=5 // pred_check_branch
        %5018 = sbr.rel (%p5016) target = $region60
      $region59: #{tpu_custom_call.1} parent=5 // pred_region
        %s5019 = ssub.s32 %s19, 2
        // Predicated region
        $region61: #{tpu_custom_call.1} parent=59 // pred_check
          %p5020 = pneg %p221
        $region62: #{tpu_custom_call.1} parent=59 // pred_check_branch
          %5022 = sbr.rel (%p5020) target = $region64
        $region63: #{tpu_custom_call.1} parent=59 // pred_region
          %s5023 = sand.u32 %s206, 1
          %s5024 = scalar_lea.sflag [#allocation4], %s5023
          %s5025 = sand.u32 %s206, 1
          %s5026 = smul.addr %s5025, 4
          %s5027 = scalar_lea.vmem [#allocation3], %s5026
          %5028 = dma.done %s5024, 64
        $region64: #{tpu_custom_call.1} parent=59 // pred_fallthru
          _
      $region60: #{tpu_custom_call.1} parent=5 // pred_fallthru
        _
    $region6: #{tpu_custom_call.1} parent=1 // loop_footer
      %s23 = sadd.s32 1, %s19
    $region7: #{tpu_custom_call.1} parent=1 // loop_footer_branch
      %18 = sbr.rel target = $region3
    $region8: #{tpu_custom_call.1} parent=1 // loop_exit
      _
    %5029 = vsyncpa [#allocation4], 1
    %s5030 = scalar_lea.sflag [#allocation4], 1
    %5031 = vsyncpa %s5030, 1

</llo_original>
